<compile_context>
chip_gen: v5e
topology: v5e:2x2
jax: 0.10.0
libtpu: 0.0.40
codegen_flags: <defaults>
</compile_context>

<pallas_src>
import functools

import numpy as np

import jax
import jax.numpy as jnp
from jax.experimental import pallas as pl
from jax.experimental.pallas import tpu as pltpu


def _gcn_kernel(num_layers, num_tiles, row_tile, col_w, deq_scale, *refs):
    """Whole-model kernel: L x (GCNConv, ReLU, BN, residual) -> attention
    softmax over nodes -> global mean pool -> output Linear.

    A_hat is streamed from HBM (int8, column-windowed row tiles, double
    buffered); node features / hidden state stay VMEM-resident."""
    (x_ref, a_hbm_ref, coff_ref, valid_ref, pmask_ref, invc_ref) = refs[:6]
    idx = 6
    layers = []
    for _ in range(num_layers):
        layers.append(refs[idx:idx + 4])          # (W_bf16, b, bn_scale, bn_bias)
        idx += 4
    aw1_ref, ab1_ref, aw2_ref, ab2_ref, ow_ref, ob_ref = refs[idx:idx + 6]
    idx += 6
    out_ref = refs[idx]
    idx += 1
    h_ref, hb_ref, xw_ref, a_buf, scores_ref, sem = refs[idx:idx + 6]

    bf16 = jnp.bfloat16
    f32 = jnp.float32
    hidden = h_ref.shape[1]

    def a_copy(t, slot):
        """DMA descriptor for A_hat row tile t (int8, column-windowed)."""
        roff = t * row_tile
        if not isinstance(roff, int):
            roff = pl.multiple_of(roff, row_tile)
        coff = pl.multiple_of(coff_ref[t], 128)
        return pltpu.make_async_copy(
            a_hbm_ref.at[pl.ds(roff, row_tile), pl.ds(coff, col_w)],
            a_buf.at[slot], sem.at[slot])

    def gcn_layer(x_in_bf16, w_ref, b_ref, s_ref, bb_ref, residual):
        # Prime tile 0 BEFORE the X @ W matmul so its DMA hides behind the MXU.
        a_copy(0, 0).start()

        # X @ W (bf16 MXU, f32 acc).  Fold the int8 dequant scale of A_hat
        # here:  A_q @ (XW * s)  ==  (A_q * s) @ XW  ==  A_hat @ XW.
        xw_ref[...] = (jnp.dot(x_in_bf16, w_ref[...],
                               preferred_element_type=f32)
                       * deq_scale).astype(bf16)

        # Hoist [1,H] -> [row_tile,H] broadcasts out of the tile loop
        # (JAX does not CSE broadcast_in_dim inside the traced loop body).
        b_full = jnp.broadcast_to(b_ref[...], (row_tile, hidden))
        s_full = jnp.broadcast_to(s_ref[...], (row_tile, hidden))
        bb_full = jnp.broadcast_to(bb_ref[...], (row_tile, hidden))

        @pl.loop(0, num_tiles)
        def _(t):
            slot = t % 2
            # Start the NEXT tile's DMA before waiting on the current one.
            @pl.when(t + 1 < num_tiles)
            def _():
                a_copy(t + 1, 1 - slot).start()
            a_copy(t, slot).wait()

            roff = pl.multiple_of(t * row_tile, row_tile)
            coff = pl.multiple_of(coff_ref[t], 128)
            # int8 -> bf16 upcast on the VPU (hidden under DMA/MXU slack).
            a_tile = a_buf[slot].astype(f32).astype(bf16)
            xw_win = xw_ref[pl.ds(coff, col_w), :]
            rows = jnp.dot(a_tile, xw_win, preferred_element_type=f32) + b_full
            rows = jnp.maximum(rows, 0.0)                  # ReLU
            rows = rows * s_full + bb_full                 # BatchNorm1d (folded)
            if residual:
                rows = rows + h_ref[pl.ds(roff, row_tile), :]
            h_ref[pl.ds(roff, row_tile), :] = rows         # Dropout == identity
            hb_ref[pl.ds(roff, row_tile), :] = rows.astype(bf16)

    # ---- GCN stack (input BatchNorm already folded into x in the JAX glue) --
    w0, b0, s0, bb0 = layers[0]
    gcn_layer(x_ref[...], w0, b0, s0, bb0, residual=False)
    for li in range(1, num_layers):
        w, b, s, bb = layers[li]
        gcn_layer(hb_ref[...], w, b, s, bb, residual=True)

    # ---- attention scores, tiled over row tiles (bounds epilogue temps) -----
    half = aw1_ref.shape[1]
    ab1_full = jnp.broadcast_to(ab1_ref[...], (row_tile, half))
    aw2_full = jnp.broadcast_to(aw2_ref[...], (row_tile, half))

    @pl.loop(0, num_tiles)
    def _(t):
        roff = pl.multiple_of(t * row_tile, row_tile)
        hb = hb_ref[pl.ds(roff, row_tile), :]
        s1 = jnp.dot(hb, aw1_ref[...], preferred_element_type=f32) + ab1_full
        s1 = jnp.where(s1 > 0, s1, 0.01 * s1)              # LeakyReLU(0.01)
        # lane-width-1 matmul replaced by VPU multiply + lane reduction
        sc = jnp.sum(s1 * aw2_full, axis=-1, keepdims=True) + ab2_ref[...]
        sc = jnp.where(valid_ref[pl.ds(roff, row_tile), :] > 0, sc, -1e30)
        scores_ref[pl.ds(roff, row_tile), :] = sc

    # softmax over ALL nodes (torch.softmax(dim=0)); padded nodes masked out.
    sc_all = scores_ref[...]
    m = jnp.max(sc_all, axis=0, keepdims=True)
    den = jnp.sum(jnp.exp(sc_all - m), axis=0, keepdims=True)
    inv_den = pl.reciprocal(den, approx=True)

    # ---- weighted features, tiled; reuse the (dead) XW buffer as the bf16
    # [N_pad, H] slab so no extra VMEM and no N_pad*H f32 temporaries. --------
    @pl.loop(0, num_tiles)
    def _(t):
        roff = pl.multiple_of(t * row_tile, row_tile)
        attn = jnp.exp(scores_ref[pl.ds(roff, row_tile), :] - m) * inv_den
        xw_ref[pl.ds(roff, row_tile), :] = (
            h_ref[pl.ds(roff, row_tile), :] * attn).astype(bf16)

    # ---- global_mean_pool via precomputed one-hot mask, output Linear -------
    pooled = jnp.dot(pmask_ref[...], xw_ref[...],
                     preferred_element_type=f32) * invc_ref[...]      # [G, H]
    out_ref[...] = (jnp.dot(pooled, ow_ref[...], preferred_element_type=f32)
                    + ob_ref[...])


def init_params(key, input_dim, hidden_dim=256, output_dim=2, num_layers=3):
    """Deterministic He (kaiming-normal, fan_in, relu) init; biases = 0;
    BatchNorm running stats folded into per-feature scale/bias."""
    eps = 1e-5

    def he(k, fan_in, shape):
        return jax.random.normal(k, shape, jnp.float32) * jnp.sqrt(2.0 / fan_in)

    def bn_folded(dim):
        gamma = jnp.ones((1, dim), jnp.float32)
        beta = jnp.zeros((1, dim), jnp.float32)
        mean = jnp.zeros((1, dim), jnp.float32)
        var = jnp.ones((1, dim), jnp.float32)
        scale = gamma / jnp.sqrt(var + eps)
        return scale, beta - mean * scale

    keys = jax.random.split(key, num_layers + 3)
    params = list(bn_folded(input_dim))            # input BN (folded in glue)
    in_dim = input_dim
    for i in range(num_layers):
        w = he(keys[i], in_dim, (in_dim, hidden_dim))
        b = jnp.zeros((1, hidden_dim), jnp.float32)
        s, bb = bn_folded(hidden_dim)
        params += [w, b, s, bb]
        in_dim = hidden_dim
    aw1 = he(keys[num_layers], hidden_dim, (hidden_dim, hidden_dim // 2))
    ab1 = jnp.zeros((1, hidden_dim // 2), jnp.float32)
    aw2 = he(keys[num_layers + 1], hidden_dim // 2, (hidden_dim // 2, 1))
    ab2 = jnp.zeros((1, 1), jnp.float32)
    ow = he(keys[num_layers + 2], hidden_dim, (hidden_dim, output_dim))
    ob = jnp.zeros((1, output_dim), jnp.float32)
    params += [aw1, ab1, aw2, ab2, ow, ob]
    return params


def _pad_vmem_bytes(shape, dtype):
    """Approximate VMEM footprint of an array, padded to TPU tiling."""
    itemsize = jnp.dtype(dtype).itemsize
    sub = {4: 8, 2: 16, 1: 32}.get(itemsize, 8)
    if len(shape) == 1:
        lead, r, c = 1, 1, int(shape[0])
    else:
        r, c = int(shape[-2]), int(shape[-1])
        lead = 1
        for d in shape[:-2]:
            lead *= int(d)
    rp = -(-r // sub) * sub
    cp = -(-c // 128) * 128
    return lead * rp * cp * itemsize


def optimized_graphtransgeo_gcn(x, edge_index, batch, params, *,
                                num_graphs, num_layers=3, output_dim=2,
                                row_tile=256):
    """Host-side glue.  Does concrete (eager, non-jittable) preprocessing of
    the adjacency: int8 quantization scale + per-row-tile column windows."""
    assert row_tile % 128 == 0
    n = x.shape[0]
    n_pad = ((n + row_tile - 1) // row_tile) * row_tile
    num_tiles = n_pad // row_tile
    hidden = params[2].shape[1]                    # W0 is [Din, H]

    # ---- dense symmetric-normalized adjacency with self loops (host side) ---
    ei = np.asarray(jax.device_get(edge_index))
    src, dst = ei[0], ei[1]
    adj = np.zeros((n, n), np.float32)
    np.add.at(adj, (dst, src), 1.0)
    adj += np.eye(n, dtype=np.float32)                     # add self loops
    deg = adj.sum(axis=1)
    dinv = 1.0 / np.sqrt(np.maximum(deg, 1e-12))
    a_hat = adj * dinv[:, None] * dinv[None, :]
    a_full = np.zeros((n_pad, n_pad), np.float32)
    a_full[:n, :n] = a_hat

    # ---- int8 + global-scale compression of A_hat (half the HBM traffic of
    # bf16 on the bandwidth-bound A-stream); dequant scale folded into XW. ----
    a_scale = float(max(a_full.max(), 1e-12))
    a_q = np.rint(a_full / a_scale * 127.0).astype(np.int8)
    deq_scale = a_scale / 127.0

    # ---- per-row-tile column windows (block-diagonal batched-graph A_hat):
    # only the 128-aligned nonzero column span of each row tile is DMA'd. -----
    col_offs, widths = [], []
    for t in range(num_tiles):
        rows = a_q[t * row_tile:(t + 1) * row_tile]
        nz = np.nonzero(rows.any(axis=0))[0]
        lo, hi = (int(nz[0]), int(nz[-1]) + 1) if nz.size else (0, 1)
        lo = (lo // 128) * 128
        widths.append(-(-(hi - lo) // 128) * 128)
        col_offs.append(lo)
    col_w = max(128, max(widths))                  # static max window width
    col_offs = np.asarray([min(o, n_pad - col_w) for o in col_offs], np.int32)

    # ---- input BatchNorm1d folded here; x enters the kernel as bf16 ---------
    bn_in_s, bn_in_b = params[0], params[1]
    x_bn = jnp.asarray(x, jnp.float32) * bn_in_s + bn_in_b
    x_pad = jnp.pad(x_bn, ((0, n_pad - n), (0, 0))).astype(jnp.bfloat16)

    # ---- node validity mask, pooling one-hot mask and 1/counts --------------
    batch_np = np.asarray(jax.device_get(batch)).astype(np.int32)
    batch_pad = np.concatenate([batch_np, np.full(n_pad - n, -1, np.int32)])
    valid = (batch_pad >= 0).astype(np.float32).reshape(n_pad, 1)
    gids = np.arange(num_graphs, dtype=np.int32)[:, None]
    mask = (batch_pad[None, :] == gids).astype(np.float32)         # [G, N_pad]
    counts = np.maximum(mask.sum(axis=1, keepdims=True), 1.0)
    inv_counts = (1.0 / counts).astype(np.float32)

    # ---- cast parameters: bf16 for MXU operands, f32 for elementwise --------
    kparams = []
    idx = 2
    for _ in range(num_layers):
        w, b, s, bb = params[idx:idx + 4]
        idx += 4
        kparams += [w.astype(jnp.bfloat16), b, s, bb]
    aw1, ab1, aw2, ab2, ow, ob = params[idx:idx + 6]
    kparams += [aw1.astype(jnp.bfloat16), ab1, aw2.reshape(1, -1), ab2, ow, ob]

    inputs = ([x_pad,
               jnp.asarray(a_q),                   # int8 A_hat, stays in HBM
               jnp.asarray(col_offs),              # SMEM column-window table
               jnp.asarray(valid),
               jnp.asarray(mask).astype(jnp.bfloat16),
               jnp.asarray(inv_counts)] + kparams)

    vmem = pl.BlockSpec(memory_space=pltpu.MemorySpace.VMEM)
    smem = pl.BlockSpec(memory_space=pltpu.MemorySpace.SMEM)
    any_spec = pl.BlockSpec(memory_space=pl.ANY)   # A_hat stays in HBM
    in_specs = [vmem, any_spec, smem] + [vmem] * (len(inputs) - 3)

    scratch_shapes = [
        pltpu.VMEM((n_pad, hidden), jnp.float32),      # resident hidden (f32)
        pltpu.VMEM((n_pad, hidden), jnp.bfloat16),     # bf16 copy of hidden
        pltpu.VMEM((n_pad, hidden), jnp.bfloat16),     # X@W / weighted feats
        pltpu.VMEM((2, row_tile, col_w), jnp.int8),    # A row-tile double buf
        pltpu.VMEM((n_pad, 1), jnp.float32),           # attention scores
        pltpu.SemaphoreType.DMA((2,)),
    ]

    # ---- scoped-VMEM budget: resident footprint + per-tile temporaries,
    # clamped to physical capacity (no grid => inputs not double-buffered). ---
    est = sum(_pad_vmem_bytes(a.shape, a.dtype)
              for a in [inputs[0]] + inputs[3:])
    est += _pad_vmem_bytes((num_graphs, output_dim), jnp.float32)
    est += _pad_vmem_bytes((n_pad, hidden), jnp.float32)
    est += 2 * _pad_vmem_bytes((n_pad, hidden), jnp.bfloat16)
    est += _pad_vmem_bytes((2, row_tile, col_w), jnp.int8)
    est += _pad_vmem_bytes((n_pad, 1), jnp.float32)
    est += 3 * _pad_vmem_bytes((row_tile, col_w), jnp.float32)   # A upcasts
    est += 4 * _pad_vmem_bytes((row_tile, hidden), jnp.float32)  # epilogue tmp
    try:
        cap = int(pltpu.get_tpu_info().vmem_capacity_bytes)
    except Exception:
        cap = 64 * 2**20
    vmem_limit = min(cap - (2 << 20), max(32 * 2**20, int(est) + (8 << 20)))

    # TODO(synk): on v7x, split the A row-tile loop across both TensorCores
    # (pltpu.create_tensorcore_mesh + pl.core_map, shared h/xw, core_barrier
    # between layers and before the epilogue); kept single-core here.
    return pl.pallas_call(
        functools.partial(_gcn_kernel, num_layers, num_tiles, row_tile,
                          col_w, deq_scale),
        out_shape=jax.ShapeDtypeStruct((num_graphs, output_dim), jnp.float32),
        in_specs=in_specs,
        out_specs=vmem,
        scratch_shapes=scratch_shapes,
        compiler_params=pltpu.CompilerParams(vmem_limit_bytes=vmem_limit),
    )(*inputs)


if __name__ == "__main__":
    # 4 graphs x 50 nodes = 200 nodes (padded to 256 -> two 128-row A tiles,
    # exercising the double-buffered A stream).
    N, DIN, H, DOUT, L, G = 200, 16, 128, 2, 3, 4
    PER = N // G

    key = jax.random.PRNGKey(0)
    k_x, k_p = jax.random.split(key)

    x = jax.random.normal(k_x, (N, DIN), jnp.float32)

    # undirected ring within each graph of PER nodes
    nodes = jnp.arange(N, dtype=jnp.int32)
    grp = nodes // PER
    nxt = jnp.where((nodes + 1) // PER == grp, nodes + 1, nodes - (PER - 1))
    edge_index = jnp.stack([jnp.concatenate([nodes, nxt]),
                            jnp.concatenate([nxt, nodes])]).astype(jnp.int32)
    batch = grp.astype(jnp.int32)

    params = init_params(k_p, DIN, hidden_dim=H, output_dim=DOUT, num_layers=L)

    out = optimized_graphtransgeo_gcn(x, edge_index, batch, params,
                                      num_graphs=G, num_layers=L,
                                      output_dim=DOUT, row_tile=128)
    out = jax.block_until_ready(out)
    assert out.shape == (G, DOUT) and out.dtype == jnp.float32
    assert bool(jnp.all(jnp.isfinite(out)))
    print("KERNEL_OK")
</pallas_src>

<mosaic_0001>
module attributes {stable_mosaic.version = 11 : i64} {
  func.func @_gcn_kernel(%arg0: memref<256x16xbf16, #tpu.memory_space<vmem>>, %arg1: memref<256x256xi8, #tpu.memory_space<any>>, %arg2: memref<2xi32, #tpu.memory_space<smem>>, %arg3: memref<256x1xf32, #tpu.memory_space<vmem>>, %arg4: memref<4x256xbf16, #tpu.memory_space<vmem>>, %arg5: memref<4x1xf32, #tpu.memory_space<vmem>>, %arg6: memref<16x128xbf16, #tpu.memory_space<vmem>>, %arg7: memref<1x128xf32, #tpu.memory_space<vmem>>, %arg8: memref<1x128xf32, #tpu.memory_space<vmem>>, %arg9: memref<1x128xf32, #tpu.memory_space<vmem>>, %arg10: memref<128x128xbf16, #tpu.memory_space<vmem>>, %arg11: memref<1x128xf32, #tpu.memory_space<vmem>>, %arg12: memref<1x128xf32, #tpu.memory_space<vmem>>, %arg13: memref<1x128xf32, #tpu.memory_space<vmem>>, %arg14: memref<128x128xbf16, #tpu.memory_space<vmem>>, %arg15: memref<1x128xf32, #tpu.memory_space<vmem>>, %arg16: memref<1x128xf32, #tpu.memory_space<vmem>>, %arg17: memref<1x128xf32, #tpu.memory_space<vmem>>, %arg18: memref<128x64xbf16, #tpu.memory_space<vmem>>, %arg19: memref<1x64xf32, #tpu.memory_space<vmem>>, %arg20: memref<1x64xf32, #tpu.memory_space<vmem>>, %arg21: memref<1x1xf32, #tpu.memory_space<vmem>>, %arg22: memref<128x2xf32, #tpu.memory_space<vmem>>, %arg23: memref<1x2xf32, #tpu.memory_space<vmem>>, %arg24: memref<4x2xf32, #tpu.memory_space<vmem>>, %arg25: memref<256x128xf32, #tpu.memory_space<vmem>>, %arg26: memref<256x128xbf16, #tpu.memory_space<vmem>>, %arg27: memref<256x128xbf16, #tpu.memory_space<vmem>>, %arg28: memref<2x128x256xi8, #tpu.memory_space<vmem>>, %arg29: memref<256x1xf32, #tpu.memory_space<vmem>>, %arg30: memref<2x!tpu.dma_semaphore, #tpu.memory_space<semaphore_mem>>) attributes {dimension_semantics = [], scalar_prefetch = 0 : i64, scratch_operands = 6 : i64, tpu.core_type = #tpu.core_type<tc>} {
    %c0 = arith.constant 0 : index
    %c0_0 = arith.constant 0 : index
    %0 = vector.load %arg0[%c0, %c0_0] : memref<256x16xbf16, #tpu.memory_space<vmem>>, vector<256x16xbf16>
    %c0_1 = arith.constant 0 : index
    %1 = memref.load %arg2[%c0_1] : memref<2xi32, #tpu.memory_space<smem>>
    %2 = tpu.assume_multiple %1, 128 : i32
    %c0_i32 = arith.constant 0 : i32
    %c0_i32_2 = arith.constant 0 : i32
    %c0_i32_3 = arith.constant 0 : i32
    %3 = tpu.memref_slice %arg1[%c0_i32_3, %2] : memref<256x256xi8, #tpu.memory_space<any>> -> memref<128x256xi8, #tpu.memory_space<any>>
    %c0_i32_4 = arith.constant 0 : i32
    %c0_i32_5 = arith.constant 0 : i32
    %4 = tpu.memref_slice %arg28[%c0_i32, %c0_i32_4, %c0_i32_5] : memref<2x128x256xi8, #tpu.memory_space<vmem>> -> memref<1x128x256xi8, #tpu.memory_space<vmem>>
    %5 = tpu.memref_squeeze %4 : memref<1x128x256xi8, #tpu.memory_space<vmem>> -> memref<128x256xi8, #tpu.memory_space<vmem>>
    %6 = tpu.memref_slice %arg30[%c0_i32_2] : memref<2x!tpu.dma_semaphore, #tpu.memory_space<semaphore_mem>> -> memref<1x!tpu.dma_semaphore, #tpu.memory_space<semaphore_mem>>
    %7 = tpu.memref_squeeze %6 : memref<1x!tpu.dma_semaphore, #tpu.memory_space<semaphore_mem>> -> memref<!tpu.dma_semaphore, #tpu.memory_space<semaphore_mem>>
    tpu.enqueue_dma source(%3 : memref<128x256xi8, #tpu.memory_space<any>>) target(%5 : memref<128x256xi8, #tpu.memory_space<vmem>>) target_semaphore(%7 : memref<!tpu.dma_semaphore, #tpu.memory_space<semaphore_mem>>)
    %c0_6 = arith.constant 0 : index
    %c0_7 = arith.constant 0 : index
    %8 = vector.load %arg6[%c0_6, %c0_7] : memref<16x128xbf16, #tpu.memory_space<vmem>>, vector<16x128xbf16>
    %cst = arith.constant dense<0.000000e+00> : vector<256x128xf32>
    %9 = tpu.matmul %0, %8, %cst {dimension_numbers = #tpu.dot_dimension_numbers<[1], [0], [0], [1], [0, 0, 1, 1], [], []>} : vector<256x16xbf16>, vector<16x128xbf16>, vector<256x128xf32> -> vector<256x128xf32>
    %cst_8 = arith.constant 0.00262467167 : f32
    %10 = vector.broadcast %cst_8 : f32 to vector<256x128xf32>
    %11 = arith.mulf %9, %10 : vector<256x128xf32>
    %12 = arith.truncf %11 : vector<256x128xf32> to vector<256x128xbf16>
    %c0_9 = arith.constant 0 : index
    %c0_10 = arith.constant 0 : index
    %13 = vector.load %arg27[%c0_9, %c0_10] : memref<256x128xbf16, #tpu.memory_space<vmem>>, vector<256x128xbf16>
    tpu.vector_store %arg27[%c0_9, %c0_10], %12 {strides = array<i32>} : memref<256x128xbf16, #tpu.memory_space<vmem>>, vector<256x128xbf16>,
    %c0_11 = arith.constant 0 : index
    %c0_12 = arith.constant 0 : index
    %14 = vector.load %arg7[%c0_11, %c0_12] : memref<1x128xf32, #tpu.memory_space<vmem>>, vector<1x128xf32>
    %15 = vector.shape_cast %14 : vector<1x128xf32> to vector<1x128xf32>
    %16 = vector.broadcast %15 : vector<1x128xf32> to vector<128x128xf32>
    %c0_13 = arith.constant 0 : index
    %c0_14 = arith.constant 0 : index
    %17 = vector.load %arg8[%c0_13, %c0_14] : memref<1x128xf32, #tpu.memory_space<vmem>>, vector<1x128xf32>
    %18 = vector.shape_cast %17 : vector<1x128xf32> to vector<1x128xf32>
    %19 = vector.broadcast %18 : vector<1x128xf32> to vector<128x128xf32>
    %c0_15 = arith.constant 0 : index
    %c0_16 = arith.constant 0 : index
    %20 = vector.load %arg9[%c0_15, %c0_16] : memref<1x128xf32, #tpu.memory_space<vmem>>, vector<1x128xf32>
    %21 = vector.shape_cast %20 : vector<1x128xf32> to vector<1x128xf32>
    %22 = vector.broadcast %21 : vector<1x128xf32> to vector<128x128xf32>
    %c0_i32_17 = arith.constant 0 : i32
    %c2_i32 = arith.constant 2 : i32
    %23 = arith.addi %c0_i32_17, %c2_i32 : i32
    %c1_i32 = arith.constant 1 : i32
    scf.for %arg31 = %c0_i32_17 to %23 step %c1_i32  : i32 {
      %c1_i32_97 = arith.constant 1 : i32
      %101 = arith.muli %arg31, %c1_i32_97 : i32
      %c0_i32_98 = arith.constant 0 : i32
      %102 = arith.addi %c0_i32_98, %101 : i32
      %c2_i32_99 = arith.constant 2 : i32
      %c0_i32_100 = arith.constant 0 : i32
      %103 = arith.cmpi eq, %c2_i32_99, %c0_i32_100 : i32
      %c1_i32_101 = arith.constant 1 : i32
      %104 = arith.select %103, %c1_i32_101, %c2_i32_99 : i32
      %105 = arith.remsi %102, %104 : i32
      %c0_i32_102 = arith.constant 0 : i32
      %106 = arith.cmpi ne, %105, %c0_i32_102 : i32
      %c0_i32_103 = arith.constant 0 : i32
      %107 = arith.cmpi slt, %105, %c0_i32_103 : i32
      %c0_i32_104 = arith.constant 0 : i32
      %108 = arith.cmpi slt, %104, %c0_i32_104 : i32
      %109 = arith.xori %107, %108 : i1
      %110 = arith.andi %109, %106 : i1
      %111 = arith.addi %105, %104 : i32
      %112 = arith.select %110, %111, %105 : i32
      %c1_i32_105 = arith.constant 1 : i32
      %113 = arith.addi %102, %c1_i32_105 : i32
      %c2_i32_106 = arith.constant 2 : i32
      %114 = arith.cmpi slt, %113, %c2_i32_106 : i32
      %115 = arith.extui %114 : i1 to i32
      %c0_i32_107 = arith.constant 0 : i32
      %116 = arith.cmpi ne, %115, %c0_i32_107 : i32
      scf.if %116 {
        %c1_i32_118 = arith.constant 1 : i32
        %150 = arith.addi %102, %c1_i32_118 : i32
        %c1_i32_119 = arith.constant 1 : i32
        %151 = arith.subi %c1_i32_119, %112 : i32
        %c128_i32_120 = arith.constant 128 : i32
        %152 = arith.muli %150, %c128_i32_120 : i32
        %153 = tpu.assume_multiple %152, 128 : i32
        %154 = arith.index_cast %150 : i32 to index
        %155 = memref.load %arg2[%154] : memref<2xi32, #tpu.memory_space<smem>>
        %156 = tpu.assume_multiple %155, 128 : i32
        %157 = tpu.memref_slice %arg1[%153, %156] : memref<256x256xi8, #tpu.memory_space<any>> -> memref<128x256xi8, #tpu.memory_space<any>>
        %c0_i32_121 = arith.constant 0 : i32
        %c0_i32_122 = arith.constant 0 : i32
        %158 = tpu.memref_slice %arg28[%151, %c0_i32_121, %c0_i32_122] : memref<2x128x256xi8, #tpu.memory_space<vmem>> -> memref<1x128x256xi8, #tpu.memory_space<vmem>>
        %159 = tpu.memref_squeeze %158 : memref<1x128x256xi8, #tpu.memory_space<vmem>> -> memref<128x256xi8, #tpu.memory_space<vmem>>
        %160 = tpu.memref_slice %arg30[%151] : memref<2x!tpu.dma_semaphore, #tpu.memory_space<semaphore_mem>> -> memref<1x!tpu.dma_semaphore, #tpu.memory_space<semaphore_mem>>
        %161 = tpu.memref_squeeze %160 : memref<1x!tpu.dma_semaphore, #tpu.memory_space<semaphore_mem>> -> memref<!tpu.dma_semaphore, #tpu.memory_space<semaphore_mem>>
        tpu.enqueue_dma source(%157 : memref<128x256xi8, #tpu.memory_space<any>>) target(%159 : memref<128x256xi8, #tpu.memory_space<vmem>>) target_semaphore(%161 : memref<!tpu.dma_semaphore, #tpu.memory_space<semaphore_mem>>)
      } else {
      }
      %c128_i32 = arith.constant 128 : i32
      %117 = arith.muli %102, %c128_i32 : i32
      %118 = tpu.assume_multiple %117, 128 : i32
      %119 = arith.index_cast %102 : i32 to index
      %120 = memref.load %arg2[%119] : memref<2xi32, #tpu.memory_space<smem>>
      %121 = tpu.assume_multiple %120, 128 : i32
      %122 = tpu.memref_slice %arg1[%118, %121] : memref<256x256xi8, #tpu.memory_space<any>> -> memref<128x256xi8, #tpu.memory_space<any>>
      %c0_i32_108 = arith.constant 0 : i32
      %c0_i32_109 = arith.constant 0 : i32
      %123 = tpu.memref_slice %arg28[%112, %c0_i32_108, %c0_i32_109] : memref<2x128x256xi8, #tpu.memory_space<vmem>> -> memref<1x128x256xi8, #tpu.memory_space<vmem>>
      %124 = tpu.memref_squeeze %123 : memref<1x128x256xi8, #tpu.memory_space<vmem>> -> memref<128x256xi8, #tpu.memory_space<vmem>>
      %125 = tpu.memref_slice %arg30[%112] : memref<2x!tpu.dma_semaphore, #tpu.memory_space<semaphore_mem>> -> memref<1x!tpu.dma_semaphore, #tpu.memory_space<semaphore_mem>>
      %126 = tpu.memref_squeeze %125 : memref<1x!tpu.dma_semaphore, #tpu.memory_space<semaphore_mem>> -> memref<!tpu.dma_semaphore, #tpu.memory_space<semaphore_mem>>
      tpu.wait_dma2 semaphore(%126 : memref<!tpu.dma_semaphore, #tpu.memory_space<semaphore_mem>>) src(%122 : memref<128x256xi8, #tpu.memory_space<any>>) dst(%124 : memref<128x256xi8, #tpu.memory_space<vmem>>)
      %c128_i32_110 = arith.constant 128 : i32
      %127 = arith.muli %102, %c128_i32_110 : i32
      %128 = tpu.assume_multiple %127, 128 : i32
      %129 = arith.index_cast %102 : i32 to index
      %130 = memref.load %arg2[%129] : memref<2xi32, #tpu.memory_space<smem>>
      %131 = tpu.assume_multiple %130, 128 : i32
      %132 = arith.index_cast %112 : i32 to index
      %c0_111 = arith.constant 0 : index
      %c0_112 = arith.constant 0 : index
      %133 = vector.load %arg28[%132, %c0_111, %c0_112] : memref<2x128x256xi8, #tpu.memory_space<vmem>>, vector<1x128x256xi8>
      %134 = vector.shape_cast %133 : vector<1x128x256xi8> to vector<128x256xi8>
      %135 = arith.sitofp %134 : vector<128x256xi8> to vector<128x256xf32>
      %136 = arith.truncf %135 : vector<128x256xf32> to vector<128x256xbf16>
      %137 = arith.index_cast %131 : i32 to index
      %c0_113 = arith.constant 0 : index
      %138 = vector.load %arg27[%137, %c0_113] : memref<256x128xbf16, #tpu.memory_space<vmem>>, vector<256x128xbf16>
      %cst_114 = arith.constant dense<0.000000e+00> : vector<128x128xf32>
      %139 = tpu.matmul %136, %138, %cst_114 {dimension_numbers = #tpu.dot_dimension_numbers<[1], [0], [0], [1], [0, 0, 1, 1], [], []>} : vector<128x256xbf16>, vector<256x128xbf16>, vector<128x128xf32> -> vector<128x128xf32>
      %140 = arith.addf %139, %16 : vector<128x128xf32>
      %cst_115 = arith.constant 0.000000e+00 : f32
      %141 = vector.broadcast %cst_115 : f32 to vector<128x128xf32>
      %142 = arith.maximumf %140, %141 : vector<128x128xf32>
      %143 = arith.mulf %142, %19 : vector<128x128xf32>
      %144 = arith.addf %143, %22 : vector<128x128xf32>
      %145 = arith.index_cast %128 : i32 to index
      %c0_116 = arith.constant 0 : index
      %146 = vector.load %arg25[%145, %c0_116] : memref<256x128xf32, #tpu.memory_space<vmem>>, vector<128x128xf32>
      tpu.vector_store %arg25[%145, %c0_116], %144 {strides = array<i32>} : memref<256x128xf32, #tpu.memory_space<vmem>>, vector<128x128xf32>,
      %147 = arith.truncf %144 : vector<128x128xf32> to vector<128x128xbf16>
      %148 = arith.index_cast %128 : i32 to index
      %c0_117 = arith.constant 0 : index
      %149 = vector.load %arg26[%148, %c0_117] : memref<256x128xbf16, #tpu.memory_space<vmem>>, vector<128x128xbf16>
      tpu.vector_store %arg26[%148, %c0_117], %147 {strides = array<i32>} : memref<256x128xbf16, #tpu.memory_space<vmem>>, vector<128x128xbf16>,
    }
    %c2_i32_18 = arith.constant 2 : i32
    %c0_19 = arith.constant 0 : index
    %c0_20 = arith.constant 0 : index
    %24 = vector.load %arg26[%c0_19, %c0_20] : memref<256x128xbf16, #tpu.memory_space<vmem>>, vector<256x128xbf16>
    %c0_21 = arith.constant 0 : index
    %25 = memref.load %arg2[%c0_21] : memref<2xi32, #tpu.memory_space<smem>>
    %26 = tpu.assume_multiple %25, 128 : i32
    %c0_i32_22 = arith.constant 0 : i32
    %c0_i32_23 = arith.constant 0 : i32
    %c0_i32_24 = arith.constant 0 : i32
    %27 = tpu.memref_slice %arg1[%c0_i32_24, %26] : memref<256x256xi8, #tpu.memory_space<any>> -> memref<128x256xi8, #tpu.memory_space<any>>
    %c0_i32_25 = arith.constant 0 : i32
    %c0_i32_26 = arith.constant 0 : i32
    %28 = tpu.memref_slice %arg28[%c0_i32_22, %c0_i32_25, %c0_i32_26] : memref<2x128x256xi8, #tpu.memory_space<vmem>> -> memref<1x128x256xi8, #tpu.memory_space<vmem>>
    %29 = tpu.memref_squeeze %28 : memref<1x128x256xi8, #tpu.memory_space<vmem>> -> memref<128x256xi8, #tpu.memory_space<vmem>>
    %30 = tpu.memref_slice %arg30[%c0_i32_23] : memref<2x!tpu.dma_semaphore, #tpu.memory_space<semaphore_mem>> -> memref<1x!tpu.dma_semaphore, #tpu.memory_space<semaphore_mem>>
    %31 = tpu.memref_squeeze %30 : memref<1x!tpu.dma_semaphore, #tpu.memory_space<semaphore_mem>> -> memref<!tpu.dma_semaphore, #tpu.memory_space<semaphore_mem>>
    tpu.enqueue_dma source(%27 : memref<128x256xi8, #tpu.memory_space<any>>) target(%29 : memref<128x256xi8, #tpu.memory_space<vmem>>) target_semaphore(%31 : memref<!tpu.dma_semaphore, #tpu.memory_space<semaphore_mem>>)
    %c0_27 = arith.constant 0 : index
    %c0_28 = arith.constant 0 : index
    %32 = vector.load %arg10[%c0_27, %c0_28] : memref<128x128xbf16, #tpu.memory_space<vmem>>, vector<128x128xbf16>
    %cst_29 = arith.constant dense<0.000000e+00> : vector<256x128xf32>
    %33 = tpu.matmul %24, %32, %cst_29 {dimension_numbers = #tpu.dot_dimension_numbers<[1], [0], [0], [1], [0, 0, 1, 1], [], []>} : vector<256x128xbf16>, vector<128x128xbf16>, vector<256x128xf32> -> vector<256x128xf32>
    %cst_30 = arith.constant 0.00262467167 : f32
    %34 = vector.broadcast %cst_30 : f32 to vector<256x128xf32>
    %35 = arith.mulf %33, %34 : vector<256x128xf32>
    %36 = arith.truncf %35 : vector<256x128xf32> to vector<256x128xbf16>
    %c0_31 = arith.constant 0 : index
    %c0_32 = arith.constant 0 : index
    %37 = vector.load %arg27[%c0_31, %c0_32] : memref<256x128xbf16, #tpu.memory_space<vmem>>, vector<256x128xbf16>
    tpu.vector_store %arg27[%c0_31, %c0_32], %36 {strides = array<i32>} : memref<256x128xbf16, #tpu.memory_space<vmem>>, vector<256x128xbf16>,
    %c0_33 = arith.constant 0 : index
    %c0_34 = arith.constant 0 : index
    %38 = vector.load %arg11[%c0_33, %c0_34] : memref<1x128xf32, #tpu.memory_space<vmem>>, vector<1x128xf32>
    %39 = vector.shape_cast %38 : vector<1x128xf32> to vector<1x128xf32>
    %40 = vector.broadcast %39 : vector<1x128xf32> to vector<128x128xf32>
    %c0_35 = arith.constant 0 : index
    %c0_36 = arith.constant 0 : index
    %41 = vector.load %arg12[%c0_35, %c0_36] : memref<1x128xf32, #tpu.memory_space<vmem>>, vector<1x128xf32>
    %42 = vector.shape_cast %41 : vector<1x128xf32> to vector<1x128xf32>
    %43 = vector.broadcast %42 : vector<1x128xf32> to vector<128x128xf32>
    %c0_37 = arith.constant 0 : index
    %c0_38 = arith.constant 0 : index
    %44 = vector.load %arg13[%c0_37, %c0_38] : memref<1x128xf32, #tpu.memory_space<vmem>>, vector<1x128xf32>
    %45 = vector.shape_cast %44 : vector<1x128xf32> to vector<1x128xf32>
    %46 = vector.broadcast %45 : vector<1x128xf32> to vector<128x128xf32>
    %c0_i32_39 = arith.constant 0 : i32
    %c2_i32_40 = arith.constant 2 : i32
    %47 = arith.addi %c0_i32_39, %c2_i32_40 : i32
    %c1_i32_41 = arith.constant 1 : i32
    scf.for %arg31 = %c0_i32_39 to %47 step %c1_i32_41  : i32 {
      %c1_i32_97 = arith.constant 1 : i32
      %101 = arith.muli %arg31, %c1_i32_97 : i32
      %c0_i32_98 = arith.constant 0 : i32
      %102 = arith.addi %c0_i32_98, %101 : i32
      %c2_i32_99 = arith.constant 2 : i32
      %c0_i32_100 = arith.constant 0 : i32
      %103 = arith.cmpi eq, %c2_i32_99, %c0_i32_100 : i32
      %c1_i32_101 = arith.constant 1 : i32
      %104 = arith.select %103, %c1_i32_101, %c2_i32_99 : i32
      %105 = arith.remsi %102, %104 : i32
      %c0_i32_102 = arith.constant 0 : i32
      %106 = arith.cmpi ne, %105, %c0_i32_102 : i32
      %c0_i32_103 = arith.constant 0 : i32
      %107 = arith.cmpi slt, %105, %c0_i32_103 : i32
      %c0_i32_104 = arith.constant 0 : i32
      %108 = arith.cmpi slt, %104, %c0_i32_104 : i32
      %109 = arith.xori %107, %108 : i1
      %110 = arith.andi %109, %106 : i1
      %111 = arith.addi %105, %104 : i32
      %112 = arith.select %110, %111, %105 : i32
      %c1_i32_105 = arith.constant 1 : i32
      %113 = arith.addi %102, %c1_i32_105 : i32
      %c2_i32_106 = arith.constant 2 : i32
      %114 = arith.cmpi slt, %113, %c2_i32_106 : i32
      %115 = arith.extui %114 : i1 to i32
      %c0_i32_107 = arith.constant 0 : i32
      %116 = arith.cmpi ne, %115, %c0_i32_107 : i32
      scf.if %116 {
        %c1_i32_119 = arith.constant 1 : i32
        %153 = arith.addi %102, %c1_i32_119 : i32
        %c1_i32_120 = arith.constant 1 : i32
        %154 = arith.subi %c1_i32_120, %112 : i32
        %c128_i32_121 = arith.constant 128 : i32
        %155 = arith.muli %153, %c128_i32_121 : i32
        %156 = tpu.assume_multiple %155, 128 : i32
        %157 = arith.index_cast %153 : i32 to index
        %158 = memref.load %arg2[%157] : memref<2xi32, #tpu.memory_space<smem>>
        %159 = tpu.assume_multiple %158, 128 : i32
        %160 = tpu.memref_slice %arg1[%156, %159] : memref<256x256xi8, #tpu.memory_space<any>> -> memref<128x256xi8, #tpu.memory_space<any>>
        %c0_i32_122 = arith.constant 0 : i32
        %c0_i32_123 = arith.constant 0 : i32
        %161 = tpu.memref_slice %arg28[%154, %c0_i32_122, %c0_i32_123] : memref<2x128x256xi8, #tpu.memory_space<vmem>> -> memref<1x128x256xi8, #tpu.memory_space<vmem>>
        %162 = tpu.memref_squeeze %161 : memref<1x128x256xi8, #tpu.memory_space<vmem>> -> memref<128x256xi8, #tpu.memory_space<vmem>>
        %163 = tpu.memref_slice %arg30[%154] : memref<2x!tpu.dma_semaphore, #tpu.memory_space<semaphore_mem>> -> memref<1x!tpu.dma_semaphore, #tpu.memory_space<semaphore_mem>>
        %164 = tpu.memref_squeeze %163 : memref<1x!tpu.dma_semaphore, #tpu.memory_space<semaphore_mem>> -> memref<!tpu.dma_semaphore, #tpu.memory_space<semaphore_mem>>
        tpu.enqueue_dma source(%160 : memref<128x256xi8, #tpu.memory_space<any>>) target(%162 : memref<128x256xi8, #tpu.memory_space<vmem>>) target_semaphore(%164 : memref<!tpu.dma_semaphore, #tpu.memory_space<semaphore_mem>>)
      } else {
      }
      %c128_i32 = arith.constant 128 : i32
      %117 = arith.muli %102, %c128_i32 : i32
      %118 = tpu.assume_multiple %117, 128 : i32
      %119 = arith.index_cast %102 : i32 to index
      %120 = memref.load %arg2[%119] : memref<2xi32, #tpu.memory_space<smem>>
      %121 = tpu.assume_multiple %120, 128 : i32
      %122 = tpu.memref_slice %arg1[%118, %121] : memref<256x256xi8, #tpu.memory_space<any>> -> memref<128x256xi8, #tpu.memory_space<any>>
      %c0_i32_108 = arith.constant 0 : i32
      %c0_i32_109 = arith.constant 0 : i32
      %123 = tpu.memref_slice %arg28[%112, %c0_i32_108, %c0_i32_109] : memref<2x128x256xi8, #tpu.memory_space<vmem>> -> memref<1x128x256xi8, #tpu.memory_space<vmem>>
      %124 = tpu.memref_squeeze %123 : memref<1x128x256xi8, #tpu.memory_space<vmem>> -> memref<128x256xi8, #tpu.memory_space<vmem>>
      %125 = tpu.memref_slice %arg30[%112] : memref<2x!tpu.dma_semaphore, #tpu.memory_space<semaphore_mem>> -> memref<1x!tpu.dma_semaphore, #tpu.memory_space<semaphore_mem>>
      %126 = tpu.memref_squeeze %125 : memref<1x!tpu.dma_semaphore, #tpu.memory_space<semaphore_mem>> -> memref<!tpu.dma_semaphore, #tpu.memory_space<semaphore_mem>>
      tpu.wait_dma2 semaphore(%126 : memref<!tpu.dma_semaphore, #tpu.memory_space<semaphore_mem>>) src(%122 : memref<128x256xi8, #tpu.memory_space<any>>) dst(%124 : memref<128x256xi8, #tpu.memory_space<vmem>>)
      %c128_i32_110 = arith.constant 128 : i32
      %127 = arith.muli %102, %c128_i32_110 : i32
      %128 = tpu.assume_multiple %127, 128 : i32
      %129 = arith.index_cast %102 : i32 to index
      %130 = memref.load %arg2[%129] : memref<2xi32, #tpu.memory_space<smem>>
      %131 = tpu.assume_multiple %130, 128 : i32
      %132 = arith.index_cast %112 : i32 to index
      %c0_111 = arith.constant 0 : index
      %c0_112 = arith.constant 0 : index
      %133 = vector.load %arg28[%132, %c0_111, %c0_112] : memref<2x128x256xi8, #tpu.memory_space<vmem>>, vector<1x128x256xi8>
      %134 = vector.shape_cast %133 : vector<1x128x256xi8> to vector<128x256xi8>
      %135 = arith.sitofp %134 : vector<128x256xi8> to vector<128x256xf32>
      %136 = arith.truncf %135 : vector<128x256xf32> to vector<128x256xbf16>
      %137 = arith.index_cast %131 : i32 to index
      %c0_113 = arith.constant 0 : index
      %138 = vector.load %arg27[%137, %c0_113] : memref<256x128xbf16, #tpu.memory_space<vmem>>, vector<256x128xbf16>
      %cst_114 = arith.constant dense<0.000000e+00> : vector<128x128xf32>
      %139 = tpu.matmul %136, %138, %cst_114 {dimension_numbers = #tpu.dot_dimension_numbers<[1], [0], [0], [1], [0, 0, 1, 1], [], []>} : vector<128x256xbf16>, vector<256x128xbf16>, vector<128x128xf32> -> vector<128x128xf32>
      %140 = arith.addf %139, %40 : vector<128x128xf32>
      %cst_115 = arith.constant 0.000000e+00 : f32
      %141 = vector.broadcast %cst_115 : f32 to vector<128x128xf32>
      %142 = arith.maximumf %140, %141 : vector<128x128xf32>
      %143 = arith.mulf %142, %43 : vector<128x128xf32>
      %144 = arith.addf %143, %46 : vector<128x128xf32>
      %145 = arith.index_cast %128 : i32 to index
      %c0_116 = arith.constant 0 : index
      %146 = vector.load %arg25[%145, %c0_116] : memref<256x128xf32, #tpu.memory_space<vmem>>, vector<128x128xf32>
      %147 = arith.addf %144, %146 : vector<128x128xf32>
      %148 = arith.index_cast %128 : i32 to index
      %c0_117 = arith.constant 0 : index
      %149 = vector.load %arg25[%148, %c0_117] : memref<256x128xf32, #tpu.memory_space<vmem>>, vector<128x128xf32>
      tpu.vector_store %arg25[%148, %c0_117], %147 {strides = array<i32>} : memref<256x128xf32, #tpu.memory_space<vmem>>, vector<128x128xf32>,
      %150 = arith.truncf %147 : vector<128x128xf32> to vector<128x128xbf16>
      %151 = arith.index_cast %128 : i32 to index
      %c0_118 = arith.constant 0 : index
      %152 = vector.load %arg26[%151, %c0_118] : memref<256x128xbf16, #tpu.memory_space<vmem>>, vector<128x128xbf16>
      tpu.vector_store %arg26[%151, %c0_118], %150 {strides = array<i32>} : memref<256x128xbf16, #tpu.memory_space<vmem>>, vector<128x128xbf16>,
    }
    %c2_i32_42 = arith.constant 2 : i32
    %c0_43 = arith.constant 0 : index
    %c0_44 = arith.constant 0 : index
    %48 = vector.load %arg26[%c0_43, %c0_44] : memref<256x128xbf16, #tpu.memory_space<vmem>>, vector<256x128xbf16>
    %c0_45 = arith.constant 0 : index
    %49 = memref.load %arg2[%c0_45] : memref<2xi32, #tpu.memory_space<smem>>
    %50 = tpu.assume_multiple %49, 128 : i32
    %c0_i32_46 = arith.constant 0 : i32
    %c0_i32_47 = arith.constant 0 : i32
    %c0_i32_48 = arith.constant 0 : i32
    %51 = tpu.memref_slice %arg1[%c0_i32_48, %50] : memref<256x256xi8, #tpu.memory_space<any>> -> memref<128x256xi8, #tpu.memory_space<any>>
    %c0_i32_49 = arith.constant 0 : i32
    %c0_i32_50 = arith.constant 0 : i32
    %52 = tpu.memref_slice %arg28[%c0_i32_46, %c0_i32_49, %c0_i32_50] : memref<2x128x256xi8, #tpu.memory_space<vmem>> -> memref<1x128x256xi8, #tpu.memory_space<vmem>>
    %53 = tpu.memref_squeeze %52 : memref<1x128x256xi8, #tpu.memory_space<vmem>> -> memref<128x256xi8, #tpu.memory_space<vmem>>
    %54 = tpu.memref_slice %arg30[%c0_i32_47] : memref<2x!tpu.dma_semaphore, #tpu.memory_space<semaphore_mem>> -> memref<1x!tpu.dma_semaphore, #tpu.memory_space<semaphore_mem>>
    %55 = tpu.memref_squeeze %54 : memref<1x!tpu.dma_semaphore, #tpu.memory_space<semaphore_mem>> -> memref<!tpu.dma_semaphore, #tpu.memory_space<semaphore_mem>>
    tpu.enqueue_dma source(%51 : memref<128x256xi8, #tpu.memory_space<any>>) target(%53 : memref<128x256xi8, #tpu.memory_space<vmem>>) target_semaphore(%55 : memref<!tpu.dma_semaphore, #tpu.memory_space<semaphore_mem>>)
    %c0_51 = arith.constant 0 : index
    %c0_52 = arith.constant 0 : index
    %56 = vector.load %arg14[%c0_51, %c0_52] : memref<128x128xbf16, #tpu.memory_space<vmem>>, vector<128x128xbf16>
    %cst_53 = arith.constant dense<0.000000e+00> : vector<256x128xf32>
    %57 = tpu.matmul %48, %56, %cst_53 {dimension_numbers = #tpu.dot_dimension_numbers<[1], [0], [0], [1], [0, 0, 1, 1], [], []>} : vector<256x128xbf16>, vector<128x128xbf16>, vector<256x128xf32> -> vector<256x128xf32>
    %cst_54 = arith.constant 0.00262467167 : f32
    %58 = vector.broadcast %cst_54 : f32 to vector<256x128xf32>
    %59 = arith.mulf %57, %58 : vector<256x128xf32>
    %60 = arith.truncf %59 : vector<256x128xf32> to vector<256x128xbf16>
    %c0_55 = arith.constant 0 : index
    %c0_56 = arith.constant 0 : index
    %61 = vector.load %arg27[%c0_55, %c0_56] : memref<256x128xbf16, #tpu.memory_space<vmem>>, vector<256x128xbf16>
    tpu.vector_store %arg27[%c0_55, %c0_56], %60 {strides = array<i32>} : memref<256x128xbf16, #tpu.memory_space<vmem>>, vector<256x128xbf16>,
    %c0_57 = arith.constant 0 : index
    %c0_58 = arith.constant 0 : index
    %62 = vector.load %arg15[%c0_57, %c0_58] : memref<1x128xf32, #tpu.memory_space<vmem>>, vector<1x128xf32>
    %63 = vector.shape_cast %62 : vector<1x128xf32> to vector<1x128xf32>
    %64 = vector.broadcast %63 : vector<1x128xf32> to vector<128x128xf32>
    %c0_59 = arith.constant 0 : index
    %c0_60 = arith.constant 0 : index
    %65 = vector.load %arg16[%c0_59, %c0_60] : memref<1x128xf32, #tpu.memory_space<vmem>>, vector<1x128xf32>
    %66 = vector.shape_cast %65 : vector<1x128xf32> to vector<1x128xf32>
    %67 = vector.broadcast %66 : vector<1x128xf32> to vector<128x128xf32>
    %c0_61 = arith.constant 0 : index
    %c0_62 = arith.constant 0 : index
    %68 = vector.load %arg17[%c0_61, %c0_62] : memref<1x128xf32, #tpu.memory_space<vmem>>, vector<1x128xf32>
    %69 = vector.shape_cast %68 : vector<1x128xf32> to vector<1x128xf32>
    %70 = vector.broadcast %69 : vector<1x128xf32> to vector<128x128xf32>
    %c0_i32_63 = arith.constant 0 : i32
    %c2_i32_64 = arith.constant 2 : i32
    %71 = arith.addi %c0_i32_63, %c2_i32_64 : i32
    %c1_i32_65 = arith.constant 1 : i32
    scf.for %arg31 = %c0_i32_63 to %71 step %c1_i32_65  : i32 {
      %c1_i32_97 = arith.constant 1 : i32
      %101 = arith.muli %arg31, %c1_i32_97 : i32
      %c0_i32_98 = arith.constant 0 : i32
      %102 = arith.addi %c0_i32_98, %101 : i32
      %c2_i32_99 = arith.constant 2 : i32
      %c0_i32_100 = arith.constant 0 : i32
      %103 = arith.cmpi eq, %c2_i32_99, %c0_i32_100 : i32
      %c1_i32_101 = arith.constant 1 : i32
      %104 = arith.select %103, %c1_i32_101, %c2_i32_99 : i32
      %105 = arith.remsi %102, %104 : i32
      %c0_i32_102 = arith.constant 0 : i32
      %106 = arith.cmpi ne, %105, %c0_i32_102 : i32
      %c0_i32_103 = arith.constant 0 : i32
      %107 = arith.cmpi slt, %105, %c0_i32_103 : i32
      %c0_i32_104 = arith.constant 0 : i32
      %108 = arith.cmpi slt, %104, %c0_i32_104 : i32
      %109 = arith.xori %107, %108 : i1
      %110 = arith.andi %109, %106 : i1
      %111 = arith.addi %105, %104 : i32
      %112 = arith.select %110, %111, %105 : i32
      %c1_i32_105 = arith.constant 1 : i32
      %113 = arith.addi %102, %c1_i32_105 : i32
      %c2_i32_106 = arith.constant 2 : i32
      %114 = arith.cmpi slt, %113, %c2_i32_106 : i32
      %115 = arith.extui %114 : i1 to i32
      %c0_i32_107 = arith.constant 0 : i32
      %116 = arith.cmpi ne, %115, %c0_i32_107 : i32
      scf.if %116 {
        %c1_i32_119 = arith.constant 1 : i32
        %153 = arith.addi %102, %c1_i32_119 : i32
        %c1_i32_120 = arith.constant 1 : i32
        %154 = arith.subi %c1_i32_120, %112 : i32
        %c128_i32_121 = arith.constant 128 : i32
        %155 = arith.muli %153, %c128_i32_121 : i32
        %156 = tpu.assume_multiple %155, 128 : i32
        %157 = arith.index_cast %153 : i32 to index
        %158 = memref.load %arg2[%157] : memref<2xi32, #tpu.memory_space<smem>>
        %159 = tpu.assume_multiple %158, 128 : i32
        %160 = tpu.memref_slice %arg1[%156, %159] : memref<256x256xi8, #tpu.memory_space<any>> -> memref<128x256xi8, #tpu.memory_space<any>>
        %c0_i32_122 = arith.constant 0 : i32
        %c0_i32_123 = arith.constant 0 : i32
        %161 = tpu.memref_slice %arg28[%154, %c0_i32_122, %c0_i32_123] : memref<2x128x256xi8, #tpu.memory_space<vmem>> -> memref<1x128x256xi8, #tpu.memory_space<vmem>>
        %162 = tpu.memref_squeeze %161 : memref<1x128x256xi8, #tpu.memory_space<vmem>> -> memref<128x256xi8, #tpu.memory_space<vmem>>
        %163 = tpu.memref_slice %arg30[%154] : memref<2x!tpu.dma_semaphore, #tpu.memory_space<semaphore_mem>> -> memref<1x!tpu.dma_semaphore, #tpu.memory_space<semaphore_mem>>
        %164 = tpu.memref_squeeze %163 : memref<1x!tpu.dma_semaphore, #tpu.memory_space<semaphore_mem>> -> memref<!tpu.dma_semaphore, #tpu.memory_space<semaphore_mem>>
        tpu.enqueue_dma source(%160 : memref<128x256xi8, #tpu.memory_space<any>>) target(%162 : memref<128x256xi8, #tpu.memory_space<vmem>>) target_semaphore(%164 : memref<!tpu.dma_semaphore, #tpu.memory_space<semaphore_mem>>)
      } else {
      }
      %c128_i32 = arith.constant 128 : i32
      %117 = arith.muli %102, %c128_i32 : i32
      %118 = tpu.assume_multiple %117, 128 : i32
      %119 = arith.index_cast %102 : i32 to index
      %120 = memref.load %arg2[%119] : memref<2xi32, #tpu.memory_space<smem>>
      %121 = tpu.assume_multiple %120, 128 : i32
      %122 = tpu.memref_slice %arg1[%118, %121] : memref<256x256xi8, #tpu.memory_space<any>> -> memref<128x256xi8, #tpu.memory_space<any>>
      %c0_i32_108 = arith.constant 0 : i32
      %c0_i32_109 = arith.constant 0 : i32
      %123 = tpu.memref_slice %arg28[%112, %c0_i32_108, %c0_i32_109] : memref<2x128x256xi8, #tpu.memory_space<vmem>> -> memref<1x128x256xi8, #tpu.memory_space<vmem>>
      %124 = tpu.memref_squeeze %123 : memref<1x128x256xi8, #tpu.memory_space<vmem>> -> memref<128x256xi8, #tpu.memory_space<vmem>>
      %125 = tpu.memref_slice %arg30[%112] : memref<2x!tpu.dma_semaphore, #tpu.memory_space<semaphore_mem>> -> memref<1x!tpu.dma_semaphore, #tpu.memory_space<semaphore_mem>>
      %126 = tpu.memref_squeeze %125 : memref<1x!tpu.dma_semaphore, #tpu.memory_space<semaphore_mem>> -> memref<!tpu.dma_semaphore, #tpu.memory_space<semaphore_mem>>
      tpu.wait_dma2 semaphore(%126 : memref<!tpu.dma_semaphore, #tpu.memory_space<semaphore_mem>>) src(%122 : memref<128x256xi8, #tpu.memory_space<any>>) dst(%124 : memref<128x256xi8, #tpu.memory_space<vmem>>)
      %c128_i32_110 = arith.constant 128 : i32
      %127 = arith.muli %102, %c128_i32_110 : i32
      %128 = tpu.assume_multiple %127, 128 : i32
      %129 = arith.index_cast %102 : i32 to index
      %130 = memref.load %arg2[%129] : memref<2xi32, #tpu.memory_space<smem>>
      %131 = tpu.assume_multiple %130, 128 : i32
      %132 = arith.index_cast %112 : i32 to index
      %c0_111 = arith.constant 0 : index
      %c0_112 = arith.constant 0 : index
      %133 = vector.load %arg28[%132, %c0_111, %c0_112] : memref<2x128x256xi8, #tpu.memory_space<vmem>>, vector<1x128x256xi8>
      %134 = vector.shape_cast %133 : vector<1x128x256xi8> to vector<128x256xi8>
      %135 = arith.sitofp %134 : vector<128x256xi8> to vector<128x256xf32>
      %136 = arith.truncf %135 : vector<128x256xf32> to vector<128x256xbf16>
      %137 = arith.index_cast %131 : i32 to index
      %c0_113 = arith.constant 0 : index
      %138 = vector.load %arg27[%137, %c0_113] : memref<256x128xbf16, #tpu.memory_space<vmem>>, vector<256x128xbf16>
      %cst_114 = arith.constant dense<0.000000e+00> : vector<128x128xf32>
      %139 = tpu.matmul %136, %138, %cst_114 {dimension_numbers = #tpu.dot_dimension_numbers<[1], [0], [0], [1], [0, 0, 1, 1], [], []>} : vector<128x256xbf16>, vector<256x128xbf16>, vector<128x128xf32> -> vector<128x128xf32>
      %140 = arith.addf %139, %64 : vector<128x128xf32>
      %cst_115 = arith.constant 0.000000e+00 : f32
      %141 = vector.broadcast %cst_115 : f32 to vector<128x128xf32>
      %142 = arith.maximumf %140, %141 : vector<128x128xf32>
      %143 = arith.mulf %142, %67 : vector<128x128xf32>
      %144 = arith.addf %143, %70 : vector<128x128xf32>
      %145 = arith.index_cast %128 : i32 to index
      %c0_116 = arith.constant 0 : index
      %146 = vector.load %arg25[%145, %c0_116] : memref<256x128xf32, #tpu.memory_space<vmem>>, vector<128x128xf32>
      %147 = arith.addf %144, %146 : vector<128x128xf32>
      %148 = arith.index_cast %128 : i32 to index
      %c0_117 = arith.constant 0 : index
      %149 = vector.load %arg25[%148, %c0_117] : memref<256x128xf32, #tpu.memory_space<vmem>>, vector<128x128xf32>
      tpu.vector_store %arg25[%148, %c0_117], %147 {strides = array<i32>} : memref<256x128xf32, #tpu.memory_space<vmem>>, vector<128x128xf32>,
      %150 = arith.truncf %147 : vector<128x128xf32> to vector<128x128xbf16>
      %151 = arith.index_cast %128 : i32 to index
      %c0_118 = arith.constant 0 : index
      %152 = vector.load %arg26[%151, %c0_118] : memref<256x128xbf16, #tpu.memory_space<vmem>>, vector<128x128xbf16>
      tpu.vector_store %arg26[%151, %c0_118], %150 {strides = array<i32>} : memref<256x128xbf16, #tpu.memory_space<vmem>>, vector<128x128xbf16>,
    }
    %c2_i32_66 = arith.constant 2 : i32
    %c0_67 = arith.constant 0 : index
    %c0_68 = arith.constant 0 : index
    %72 = vector.load %arg19[%c0_67, %c0_68] : memref<1x64xf32, #tpu.memory_space<vmem>>, vector<1x64xf32>
    %73 = vector.shape_cast %72 : vector<1x64xf32> to vector<1x64xf32>
    %74 = vector.broadcast %73 : vector<1x64xf32> to vector<128x64xf32>
    %c0_69 = arith.constant 0 : index
    %c0_70 = arith.constant 0 : index
    %75 = vector.load %arg20[%c0_69, %c0_70] : memref<1x64xf32, #tpu.memory_space<vmem>>, vector<1x64xf32>
    %76 = vector.shape_cast %75 : vector<1x64xf32> to vector<1x64xf32>
    %77 = vector.broadcast %76 : vector<1x64xf32> to vector<128x64xf32>
    %c0_i32_71 = arith.constant 0 : i32
    %c2_i32_72 = arith.constant 2 : i32
    %78 = arith.addi %c0_i32_71, %c2_i32_72 : i32
    %c1_i32_73 = arith.constant 1 : i32
    scf.for %arg31 = %c0_i32_71 to %78 step %c1_i32_73  : i32 {
      %c1_i32_97 = arith.constant 1 : i32
      %101 = arith.muli %arg31, %c1_i32_97 : i32
      %c0_i32_98 = arith.constant 0 : i32
      %102 = arith.addi %c0_i32_98, %101 : i32
      %c128_i32 = arith.constant 128 : i32
      %103 = arith.muli %102, %c128_i32 : i32
      %104 = tpu.assume_multiple %103, 128 : i32
      %105 = arith.index_cast %104 : i32 to index
      %c0_99 = arith.constant 0 : index
      %106 = vector.load %arg26[%105, %c0_99] : memref<256x128xbf16, #tpu.memory_space<vmem>>, vector<128x128xbf16>
      %c0_100 = arith.constant 0 : index
      %c0_101 = arith.constant 0 : index
      %107 = vector.load %arg18[%c0_100, %c0_101] : memref<128x64xbf16, #tpu.memory_space<vmem>>, vector<128x64xbf16>
      %cst_102 = arith.constant dense<0.000000e+00> : vector<128x64xf32>
      %108 = tpu.matmul %106, %107, %cst_102 {dimension_numbers = #tpu.dot_dimension_numbers<[1], [0], [0], [1], [0, 0, 1, 1], [], []>} : vector<128x128xbf16>, vector<128x64xbf16>, vector<128x64xf32> -> vector<128x64xf32>
      %109 = arith.addf %108, %74 : vector<128x64xf32>
      %cst_103 = arith.constant 0.000000e+00 : f32
      %110 = vector.broadcast %cst_103 : f32 to vector<128x64xf32>
      %111 = arith.cmpf ogt, %109, %110 : vector<128x64xf32>
      %cst_104 = arith.constant 0.00999999977 : f32
      %112 = vector.broadcast %cst_104 : f32 to vector<128x64xf32>
      %113 = arith.mulf %112, %109 : vector<128x64xf32>
      %114 = arith.select %111, %109, %113 : vector<128x64xi1>, vector<128x64xf32>
      %115 = arith.mulf %114, %77 : vector<128x64xf32>
      %cst_105 = arith.constant dense<0.000000e+00> : vector<128xf32>
      %116 = vector.multi_reduction <add>, %115, %cst_105 [1] : vector<128x64xf32> to vector<128xf32>
      %117 = vector.shape_cast %116 : vector<128xf32> to vector<128x1xf32>
      %c0_106 = arith.constant 0 : index
      %c0_107 = arith.constant 0 : index
      %118 = vector.load %arg21[%c0_106, %c0_107] : memref<1x1xf32, #tpu.memory_space<vmem>>, vector<1x1xf32>
      %119 = vector.broadcast %118 : vector<1x1xf32> to vector<128x1xf32>
      %120 = arith.addf %117, %119 : vector<128x1xf32>
      %121 = arith.index_cast %104 : i32 to index
      %c0_108 = arith.constant 0 : index
      %122 = vector.load %arg3[%121, %c0_108] : memref<256x1xf32, #tpu.memory_space<vmem>>, vector<128x1xf32>
      %cst_109 = arith.constant 0.000000e+00 : f32
      %123 = vector.broadcast %cst_109 : f32 to vector<128x1xf32>
      %124 = arith.cmpf ogt, %122, %123 : vector<128x1xf32>
      %cst_110 = arith.constant -1.000000e+30 : f32
      %125 = vector.broadcast %cst_110 : f32 to vector<128x1xf32>
      %126 = arith.select %124, %120, %125 : vector<128x1xi1>, vector<128x1xf32>
      %127 = arith.index_cast %104 : i32 to index
      %c0_111 = arith.constant 0 : index
      %128 = vector.load %arg29[%127, %c0_111] : memref<256x1xf32, #tpu.memory_space<vmem>>, vector<128x1xf32>
      tpu.vector_store %arg29[%127, %c0_111], %126 {strides = array<i32>} : memref<256x1xf32, #tpu.memory_space<vmem>>, vector<128x1xf32>,
    }
    %c2_i32_74 = arith.constant 2 : i32
    %c0_75 = arith.constant 0 : index
    %c0_76 = arith.constant 0 : index
    %79 = vector.load %arg29[%c0_75, %c0_76] : memref<256x1xf32, #tpu.memory_space<vmem>>, vector<256x1xf32>
    %cst_77 = arith.constant dense<0xFF800000> : vector<1xf32>
    %80 = vector.multi_reduction <maximumf>, %79, %cst_77 [0] : vector<256x1xf32> to vector<1xf32>
    %81 = vector.shape_cast %80 : vector<1xf32> to vector<1x1xf32>
    %82 = vector.broadcast %81 : vector<1x1xf32> to vector<256x1xf32>
    %83 = arith.subf %79, %82 : vector<256x1xf32>
    %84 = math.exp %83 : vector<256x1xf32>
    %cst_78 = arith.constant dense<0.000000e+00> : vector<1xf32>
    %85 = vector.multi_reduction <add>, %84, %cst_78 [0] : vector<256x1xf32> to vector<1xf32>
    %86 = vector.shape_cast %85 : vector<1xf32> to vector<1x1xf32>
    %87 = tpu.reciprocal %86 {approx = true} : vector<1x1xf32> -> vector<1x1xf32>
    %c0_i32_79 = arith.constant 0 : i32
    %c2_i32_80 = arith.constant 2 : i32
    %88 = arith.addi %c0_i32_79, %c2_i32_80 : i32
    %c1_i32_81 = arith.constant 1 : i32
    scf.for %arg31 = %c0_i32_79 to %88 step %c1_i32_81  : i32 {
      %c1_i32_97 = arith.constant 1 : i32
      %101 = arith.muli %arg31, %c1_i32_97 : i32
      %c0_i32_98 = arith.constant 0 : i32
      %102 = arith.addi %c0_i32_98, %101 : i32
      %c128_i32 = arith.constant 128 : i32
      %103 = arith.muli %102, %c128_i32 : i32
      %104 = tpu.assume_multiple %103, 128 : i32
      %105 = arith.index_cast %104 : i32 to index
      %c0_99 = arith.constant 0 : index
      %106 = vector.load %arg29[%105, %c0_99] : memref<256x1xf32, #tpu.memory_space<vmem>>, vector<128x1xf32>
      %107 = vector.broadcast %81 : vector<1x1xf32> to vector<128x1xf32>
      %108 = arith.subf %106, %107 : vector<128x1xf32>
      %109 = math.exp %108 : vector<128x1xf32>
      %110 = vector.broadcast %87 : vector<1x1xf32> to vector<128x1xf32>
      %111 = arith.mulf %109, %110 : vector<128x1xf32>
      %112 = arith.index_cast %104 : i32 to index
      %c0_100 = arith.constant 0 : index
      %113 = vector.load %arg25[%112, %c0_100] : memref<256x128xf32, #tpu.memory_space<vmem>>, vector<128x128xf32>
      %114 = vector.broadcast %111 : vector<128x1xf32> to vector<128x128xf32>
      %115 = arith.mulf %113, %114 : vector<128x128xf32>
      %116 = arith.truncf %115 : vector<128x128xf32> to vector<128x128xbf16>
      %117 = arith.index_cast %104 : i32 to index
      %c0_101 = arith.constant 0 : index
      %118 = vector.load %arg27[%117, %c0_101] : memref<256x128xbf16, #tpu.memory_space<vmem>>, vector<128x128xbf16>
      tpu.vector_store %arg27[%117, %c0_101], %116 {strides = array<i32>} : memref<256x128xbf16, #tpu.memory_space<vmem>>, vector<128x128xbf16>,
    }
    %c2_i32_82 = arith.constant 2 : i32
    %c0_83 = arith.constant 0 : index
    %c0_84 = arith.constant 0 : index
    %89 = vector.load %arg4[%c0_83, %c0_84] : memref<4x256xbf16, #tpu.memory_space<vmem>>, vector<4x256xbf16>
    %c0_85 = arith.constant 0 : index
    %c0_86 = arith.constant 0 : index
    %90 = vector.load %arg27[%c0_85, %c0_86] : memref<256x128xbf16, #tpu.memory_space<vmem>>, vector<256x128xbf16>
    %cst_87 = arith.constant dense<0.000000e+00> : vector<4x128xf32>
    %91 = tpu.matmul %89, %90, %cst_87 {dimension_numbers = #tpu.dot_dimension_numbers<[1], [0], [0], [1], [0, 0, 1, 1], [], []>} : vector<4x256xbf16>, vector<256x128xbf16>, vector<4x128xf32> -> vector<4x128xf32>
    %c0_88 = arith.constant 0 : index
    %c0_89 = arith.constant 0 : index
    %92 = vector.load %arg5[%c0_88, %c0_89] : memref<4x1xf32, #tpu.memory_space<vmem>>, vector<4x1xf32>
    %93 = vector.broadcast %92 : vector<4x1xf32> to vector<4x128xf32>
    %94 = arith.mulf %91, %93 : vector<4x128xf32>
    %c0_90 = arith.constant 0 : index
    %c0_91 = arith.constant 0 : index
    %95 = vector.load %arg22[%c0_90, %c0_91] : memref<128x2xf32, #tpu.memory_space<vmem>>, vector<128x2xf32>
    %cst_92 = arith.constant dense<0.000000e+00> : vector<4x2xf32>
    %96 = tpu.matmul %94, %95, %cst_92 {dimension_numbers = #tpu.dot_dimension_numbers<[1], [0], [0], [1], [0, 0, 1, 1], [], []>} : vector<4x128xf32>, vector<128x2xf32>, vector<4x2xf32> -> vector<4x2xf32>
    %c0_93 = arith.constant 0 : index
    %c0_94 = arith.constant 0 : index
    %97 = vector.load %arg23[%c0_93, %c0_94] : memref<1x2xf32, #tpu.memory_space<vmem>>, vector<1x2xf32>
    %98 = vector.broadcast %97 : vector<1x2xf32> to vector<4x2xf32>
    %99 = arith.addf %96, %98 : vector<4x2xf32>
    %c0_95 = arith.constant 0 : index
    %c0_96 = arith.constant 0 : index
    %100 = vector.load %arg24[%c0_95, %c0_96] : memref<4x2xf32, #tpu.memory_space<vmem>>, vector<4x2xf32>
    tpu.vector_store %arg24[%c0_95, %c0_96], %99 {strides = array<i32>} : memref<4x2xf32, #tpu.memory_space<vmem>>, vector<4x2xf32>,
    return
  }
}

</mosaic_0001>

<llo_original>
// kernel: tpu_custom_call.1
$region0: #{tpu_custom_call.1}
  #allocation0 [shape = 'u32[]', space=smem, size = 0x4, offset = 0x4, fixed_abs, tag = 'smem constant byte address 0x4 - core index']
  #allocation1 [shape = 'u32[72,128]{1,0:T(1,128)}', space=vmem, size = 0x9000, scoped, tag = 'internal scratch']
  #allocation2 [shape = 'f32[256,128]{1,0:T(8,128)}', space=vmem, size = 0x20000, scoped, tag = 'scratch operand']
  #allocation3 [shape = 'bf16[256,128]{1,0:T(8,128)(2,1)}', space=vmem, size = 0x10000, scoped, tag = 'scratch operand']
  #allocation4 [shape = 'bf16[256,128]{1,0:T(8,128)(2,1)}', space=vmem, size = 0x10000, scoped, tag = 'scratch operand']
  #allocation5 [shape = 's8[2,128,256]{2,1,0:T(32,128)(4,1)}', space=vmem, size = 0x10000, scoped, tag = 'scratch operand']
  #allocation6 [shape = 'f32[256,1]{1,0:T(8,128)}', space=vmem, size = 0x20000, scoped, tag = 'scratch operand']
  #allocation7 [shape = 's32[2]{0}', space=sflag, size = 0x8, scoped, tag = 'scratch operand']
  #allocation8 [shape = 'f32[1,1]{1,0:T(1,128)S(1)}', space=vmem, size = 0x200, scoped, tag = 'scoped memory for tpu_custom_call.1']
  #allocation11 [shape = 's32[]', space=sflag, size = 0x4, offset = 0, fixed_abs, tag = 'sflag constant byte address 0x0 - dummy sync flag']
  #allocation12 [shape = 's32[]', space=sflag, size = 0x4, offset = 0, fixed_abs, tag = 'sflag constant byte address 0x0 - dummy sync flag']
  #allocation13 [shape = 's32[]', space=sflag, size = 0x4, offset = 0, fixed_abs, tag = 'sflag constant byte address 0x0 - dummy sync flag']
  #allocation14 [shape = 's32[]', space=sflag, size = 0x4, offset = 0, fixed_abs, tag = 'sflag constant byte address 0x0 - dummy sync flag']
  #allocation15 [shape = 's32[]', space=sflag, size = 0x4, offset = 0, fixed_abs, tag = 'sflag constant byte address 0x0 - dummy sync flag']
  #allocation16 [shape = 's32[]', space=sflag, size = 0x4, offset = 0, fixed_abs, tag = 'sflag constant byte address 0x0 - dummy sync flag']
  %s0 = inlined_call_operand.vmem [shape: bf16[256,16], index: 0, kind: input, shape index: {}]
  %s1 = inlined_call_operand.vmem [shape: s8[256,256], index: 1, kind: input, shape index: {}]
  %s2 = inlined_call_operand.vmem [shape: s32[2], index: 2, kind: input, shape index: {}]
  %s3 = inlined_call_operand.vmem [shape: f32[256,1], index: 3, kind: input, shape index: {}]
  %s4 = inlined_call_operand.vmem [shape: bf16[4,256], index: 4, kind: input, shape index: {}]
  %s5 = inlined_call_operand.vmem [shape: f32[4,1], index: 5, kind: input, shape index: {}]
  %s6 = inlined_call_operand.vmem [shape: bf16[16,128], index: 6, kind: input, shape index: {}]
  %s7 = inlined_call_operand.vmem [shape: f32[1,128], index: 7, kind: input, shape index: {}]
  %s8 = inlined_call_operand.vmem [shape: f32[1,128], index: 8, kind: input, shape index: {}]
  %s9 = inlined_call_operand.vmem [shape: f32[1,128], index: 9, kind: input, shape index: {}]
  %s10 = inlined_call_operand.vmem [shape: bf16[128,128], index: 10, kind: input, shape index: {}]
  %s11 = inlined_call_operand.vmem [shape: f32[1,128], index: 11, kind: input, shape index: {}]
  %s12 = inlined_call_operand.vmem [shape: f32[1,128], index: 12, kind: input, shape index: {}]
  %s13 = inlined_call_operand.vmem [shape: f32[1,128], index: 13, kind: input, shape index: {}]
  %s14 = inlined_call_operand.vmem [shape: bf16[128,128], index: 14, kind: input, shape index: {}]
  %s15 = inlined_call_operand.vmem [shape: f32[1,128], index: 15, kind: input, shape index: {}]
  %s16 = inlined_call_operand.vmem [shape: f32[1,128], index: 16, kind: input, shape index: {}]
  %s17 = inlined_call_operand.vmem [shape: f32[1,128], index: 17, kind: input, shape index: {}]
  %s18 = inlined_call_operand.vmem [shape: bf16[128,64], index: 18, kind: input, shape index: {}]
  %s19 = inlined_call_operand.vmem [shape: f32[1,64], index: 19, kind: input, shape index: {}]
  %s20 = inlined_call_operand.vmem [shape: f32[1,64], index: 20, kind: input, shape index: {}]
  %s21 = inlined_call_operand.<no memory space> [shape: f32[1,1], index: 21, kind: input, shape index: {}]
  %s22 = inlined_call_operand.vmem [shape: f32[128,2], index: 22, kind: input, shape index: {}]
  %s23 = inlined_call_operand.vmem [shape: f32[1,2], index: 23, kind: input, shape index: {}]
  %s24 = inlined_call_operand.vmem [shape: f32[4,2], index: 24, kind: output, shape index: {}]
  %s25 = sld [smem:[#allocation0]]
  $region267: #{tpu_custom_call.1} parent=0
    _
  %s27 = ssub.s32 1, %s25
  %s28 = scalar_select 0, %s27, %s25
  %v29 = vstv %s21
  %30 = vst [vmem:[#allocation8] sm:$0x1] %v29
  $region1: #{tpu_custom_call.1} parent=0
    #allocation9 [shape = 'u8[512]{0}', space=smem, size = 0x200, scoped, tag = 'input window, operand 2, single buffered']
    #allocation10 [shape = 's32[1]{0}', space=sflag, size = 0x4, scoped, tag = 'scoped memory for tpu_custom_call.1']
    %31 = vsyncpa [#allocation10], 0
    // Predicated region
    $region2: #{tpu_custom_call.1} parent=1 // pred_check
      _
    $region3: #{tpu_custom_call.1} parent=1 // pred_check_branch
      %33 = sbr.rel (0) target = $region5
    $region4: #{tpu_custom_call.1} parent=1 // pred_region
      _
    $region5: #{tpu_custom_call.1} parent=1 // pred_fallthru
      _
    // Predicated region
    $region6: #{tpu_custom_call.1} parent=1 // pred_check
      _
    $region7: #{tpu_custom_call.1} parent=1 // pred_check_branch
      %35 = sbr.rel (0) target = $region9
    $region8: #{tpu_custom_call.1} parent=1 // pred_region
      %37 = vsyncadd [#allocation10], 0
      %s39 = sshll.u32 %s2, 4
      %s40 = int_to_ptr.vmem [resolvable:$true] %s39
      %42 = dma.vmem_to_smem %s40, 16, [#allocation9], [#allocation10]
    $region9: #{tpu_custom_call.1} parent=1 // pred_fallthru
      _
    // Predicated region
    $region10: #{tpu_custom_call.1} parent=1 // pred_check
      _
    $region11: #{tpu_custom_call.1} parent=1 // pred_check_branch
      %44 = sbr.rel (0) target = $region13
    $region12: #{tpu_custom_call.1} parent=1 // pred_region
      _
    $region13: #{tpu_custom_call.1} parent=1 // pred_fallthru
      _
    // Predicated region
    $region14: #{tpu_custom_call.1} parent=1 // pred_check
      _
    $region15: #{tpu_custom_call.1} parent=1 // pred_check_branch
      %46 = sbr.rel (0) target = $region17
    $region16: #{tpu_custom_call.1} parent=1 // pred_region
      _
    $region17: #{tpu_custom_call.1} parent=1 // pred_fallthru
      _
    // Predicated region
    $region18: #{tpu_custom_call.1} parent=1 // pred_check
      _
    $region19: #{tpu_custom_call.1} parent=1 // pred_check_branch
      %48 = sbr.rel (0) target = $region21
    $region20: #{tpu_custom_call.1} parent=1 // pred_region
      _
    $region21: #{tpu_custom_call.1} parent=1 // pred_fallthru
      _
    // Predicated region
    $region22: #{tpu_custom_call.1} parent=1 // pred_check
      _
    $region23: #{tpu_custom_call.1} parent=1 // pred_check_branch
      %50 = sbr.rel (0) target = $region25
    $region24: #{tpu_custom_call.1} parent=1 // pred_region
      _
    $region25: #{tpu_custom_call.1} parent=1 // pred_fallthru
      _
    // Predicated region
    $region26: #{tpu_custom_call.1} parent=1 // pred_check
      _
    $region27: #{tpu_custom_call.1} parent=1 // pred_check_branch
      %52 = sbr.rel (0) target = $region29
    $region28: #{tpu_custom_call.1} parent=1 // pred_region
      _
    $region29: #{tpu_custom_call.1} parent=1 // pred_fallthru
      _
    // Predicated region
    $region30: #{tpu_custom_call.1} parent=1 // pred_check
      _
    $region31: #{tpu_custom_call.1} parent=1 // pred_check_branch
      %54 = sbr.rel (0) target = $region33
    $region32: #{tpu_custom_call.1} parent=1 // pred_region
      _
    $region33: #{tpu_custom_call.1} parent=1 // pred_fallthru
      _
    // Predicated region
    $region34: #{tpu_custom_call.1} parent=1 // pred_check
      _
    $region35: #{tpu_custom_call.1} parent=1 // pred_check_branch
      %56 = sbr.rel (0) target = $region37
    $region36: #{tpu_custom_call.1} parent=1 // pred_region
      _
    $region37: #{tpu_custom_call.1} parent=1 // pred_fallthru
      _
    // Predicated region
    $region38: #{tpu_custom_call.1} parent=1 // pred_check
      _
    $region39: #{tpu_custom_call.1} parent=1 // pred_check_branch
      %58 = sbr.rel (0) target = $region41
    $region40: #{tpu_custom_call.1} parent=1 // pred_region
      _
    $region41: #{tpu_custom_call.1} parent=1 // pred_fallthru
      _
    // Predicated region
    $region42: #{tpu_custom_call.1} parent=1 // pred_check
      _
    $region43: #{tpu_custom_call.1} parent=1 // pred_check_branch
      %60 = sbr.rel (0) target = $region45
    $region44: #{tpu_custom_call.1} parent=1 // pred_region
      _
    $region45: #{tpu_custom_call.1} parent=1 // pred_fallthru
      _
    // Predicated region
    $region46: #{tpu_custom_call.1} parent=1 // pred_check
      _
    $region47: #{tpu_custom_call.1} parent=1 // pred_check_branch
      %62 = sbr.rel (0) target = $region49
    $region48: #{tpu_custom_call.1} parent=1 // pred_region
      _
    $region49: #{tpu_custom_call.1} parent=1 // pred_fallthru
      _
    // Predicated region
    $region50: #{tpu_custom_call.1} parent=1 // pred_check
      _
    $region51: #{tpu_custom_call.1} parent=1 // pred_check_branch
      %64 = sbr.rel (0) target = $region53
    $region52: #{tpu_custom_call.1} parent=1 // pred_region
      _
    $region53: #{tpu_custom_call.1} parent=1 // pred_fallthru
      _
    // Predicated region
    $region54: #{tpu_custom_call.1} parent=1 // pred_check
      _
    $region55: #{tpu_custom_call.1} parent=1 // pred_check_branch
      %66 = sbr.rel (0) target = $region57
    $region56: #{tpu_custom_call.1} parent=1 // pred_region
      _
    $region57: #{tpu_custom_call.1} parent=1 // pred_fallthru
      _
    // Predicated region
    $region58: #{tpu_custom_call.1} parent=1 // pred_check
      _
    $region59: #{tpu_custom_call.1} parent=1 // pred_check_branch
      %68 = sbr.rel (0) target = $region61
    $region60: #{tpu_custom_call.1} parent=1 // pred_region
      _
    $region61: #{tpu_custom_call.1} parent=1 // pred_fallthru
      _
    // Predicated region
    $region62: #{tpu_custom_call.1} parent=1 // pred_check
      _
    $region63: #{tpu_custom_call.1} parent=1 // pred_check_branch
      %70 = sbr.rel (0) target = $region65
    $region64: #{tpu_custom_call.1} parent=1 // pred_region
      _
    $region65: #{tpu_custom_call.1} parent=1 // pred_fallthru
      _
    // Predicated region
    $region66: #{tpu_custom_call.1} parent=1 // pred_check
      _
    $region67: #{tpu_custom_call.1} parent=1 // pred_check_branch
      %72 = sbr.rel (0) target = $region69
    $region68: #{tpu_custom_call.1} parent=1 // pred_region
      _
    $region69: #{tpu_custom_call.1} parent=1 // pred_fallthru
      _
    // Predicated region
    $region70: #{tpu_custom_call.1} parent=1 // pred_check
      _
    $region71: #{tpu_custom_call.1} parent=1 // pred_check_branch
      %74 = sbr.rel (0) target = $region73
    $region72: #{tpu_custom_call.1} parent=1 // pred_region
      _
    $region73: #{tpu_custom_call.1} parent=1 // pred_fallthru
      _
    // Predicated region
    $region74: #{tpu_custom_call.1} parent=1 // pred_check
      _
    $region75: #{tpu_custom_call.1} parent=1 // pred_check_branch
      %76 = sbr.rel (0) target = $region77
    $region76: #{tpu_custom_call.1} parent=1 // pred_region
      _
    $region77: #{tpu_custom_call.1} parent=1 // pred_fallthru
      _
    // Predicated region
    $region78: #{tpu_custom_call.1} parent=1 // pred_check
      _
    $region79: #{tpu_custom_call.1} parent=1 // pred_check_branch
      %78 = sbr.rel (0) target = $region81
    $region80: #{tpu_custom_call.1} parent=1 // pred_region
      _
    $region81: #{tpu_custom_call.1} parent=1 // pred_fallthru
      _
    // Predicated region
    $region82: #{tpu_custom_call.1} parent=1 // pred_check
      _
    $region83: #{tpu_custom_call.1} parent=1 // pred_check_branch
      %80 = sbr.rel (0) target = $region85
    $region84: #{tpu_custom_call.1} parent=1 // pred_region
      _
    $region85: #{tpu_custom_call.1} parent=1 // pred_fallthru
      _
    // Predicated region
    $region86: #{tpu_custom_call.1} parent=1 // pred_check
      _
    $region87: #{tpu_custom_call.1} parent=1 // pred_check_branch
      %82 = sbr.rel (0) target = $region89
    $region88: #{tpu_custom_call.1} parent=1 // pred_region
      _
    $region89: #{tpu_custom_call.1} parent=1 // pred_fallthru
      _
    // Predicated region
    $region90: #{tpu_custom_call.1} parent=1 // pred_check
      _
    $region91: #{tpu_custom_call.1} parent=1 // pred_check_branch
      %84 = sbr.rel (0) target = $region93
    $region92: #{tpu_custom_call.1} parent=1 // pred_region
      _
    $region93: #{tpu_custom_call.1} parent=1 // pred_fallthru
      _
    // Predicated region
    $region94: #{tpu_custom_call.1} parent=1 // pred_check
      _
    $region95: #{tpu_custom_call.1} parent=1 // pred_check_branch
      %86 = sbr.rel (0) target = $region97
    $region96: #{tpu_custom_call.1} parent=1 // pred_region
      %88 = dma.done [#allocation10], 16
    $region97: #{tpu_custom_call.1} parent=1 // pred_fallthru
      _
    %89 = sfence
    %v91 = vld [vmem:[%s0] sm:$0xf]
    %v92 = vld [vmem:[%s0 + $0x4] sm:$0xf]
    %v93 = vld [vmem:[%s0 + $0x8] sm:$0xf]
    %v94 = vld [vmem:[%s0 + $0xc] sm:$0xf]
    %v95 = vld [vmem:[%s0 + $0x10] sm:$0xf]
    %v96 = vld [vmem:[%s0 + $0x14] sm:$0xf]
    %v97 = vld [vmem:[%s0 + $0x18] sm:$0xf]
    %v98 = vld [vmem:[%s0 + $0x1c] sm:$0xf]
    %v99 = vld [vmem:[%s0 + $0x20] sm:$0xf]
    %v100 = vld [vmem:[%s0 + $0x24] sm:$0xf]
    %v101 = vld [vmem:[%s0 + $0x28] sm:$0xf]
    %v102 = vld [vmem:[%s0 + $0x2c] sm:$0xf]
    %v103 = vld [vmem:[%s0 + $0x30] sm:$0xf]
    %v104 = vld [vmem:[%s0 + $0x34] sm:$0xf]
    %v105 = vld [vmem:[%s0 + $0x38] sm:$0xf]
    %v106 = vld [vmem:[%s0 + $0x3c] sm:$0xf]
    %v107 = vld [vmem:[%s0 + $0x40] sm:$0xf]
    %v108 = vld [vmem:[%s0 + $0x44] sm:$0xf]
    %v109 = vld [vmem:[%s0 + $0x48] sm:$0xf]
    %v110 = vld [vmem:[%s0 + $0x4c] sm:$0xf]
    %v111 = vld [vmem:[%s0 + $0x50] sm:$0xf]
    %v112 = vld [vmem:[%s0 + $0x54] sm:$0xf]
    %v113 = vld [vmem:[%s0 + $0x58] sm:$0xf]
    %v114 = vld [vmem:[%s0 + $0x5c] sm:$0xf]
    %v115 = vld [vmem:[%s0 + $0x60] sm:$0xf]
    %v116 = vld [vmem:[%s0 + $0x64] sm:$0xf]
    %v117 = vld [vmem:[%s0 + $0x68] sm:$0xf]
    %v118 = vld [vmem:[%s0 + $0x6c] sm:$0xf]
    %v119 = vld [vmem:[%s0 + $0x70] sm:$0xf]
    %v120 = vld [vmem:[%s0 + $0x74] sm:$0xf]
    %v121 = vld [vmem:[%s0 + $0x78] sm:$0xf]
    %v122 = vld [vmem:[%s0 + $0x7c] sm:$0xf]
    %s123 = sld [smem:[#allocation9]]
    %s124 = sshra.s32 %s123, 7
    %s125 = sand.u32 %s123, 127
    %s126 = smul.addr %s124, 8
    %s127 = scalar_lea.vmem %s1, %s126
    // Predicated region
    $region98: #{tpu_custom_call.1} parent=1 // pred_check
      _
    $region99: #{tpu_custom_call.1} parent=1 // pred_check_branch
      %129 = sbr.rel (0) target = $region101
    $region100: #{tpu_custom_call.1} parent=1 // pred_region
      loop: start=0, step=1, limit=1
      $region102: #{tpu_custom_call.1} parent=100 // loop_pre_header
        _
      $region103: #{tpu_custom_call.1} parent=100 // loop_header
        %s131 = sphi 0, %s135
        %p132 = scmp.ge.s32.totalorder %s131, 1
        %s136 = sphi %s127, %s127
        %s137 = sphi [#allocation5], [#allocation5]
      $region104: #{tpu_custom_call.1} parent=100 // loop_header_branch
        %134 = sbr.rel (%p132) target = $region108
      $region105: #{tpu_custom_call.1} parent=100 // loop_body
        %v138 = vld [vmem:[%s136] sm:$0xff]
        %139 = vst [vmem:[%s137] sm:$0xff] %v138
        %v140 = vld [vmem:[%s136 + $0x8] sm:$0xff]
        %141 = vst [vmem:[%s137 + $0x8] sm:$0xff] %v140
        %v142 = vld [vmem:[%s136 + $0x10] sm:$0xff]
        %143 = vst [vmem:[%s137 + $0x10] sm:$0xff] %v142
        %v144 = vld [vmem:[%s136 + $0x18] sm:$0xff]
        %145 = vst [vmem:[%s137 + $0x18] sm:$0xff] %v144
        %v146 = vld [vmem:[%s136 + $0x20] sm:$0xff]
        %147 = vst [vmem:[%s137 + $0x20] sm:$0xff] %v146
        %v148 = vld [vmem:[%s136 + $0x28] sm:$0xff]
        %149 = vst [vmem:[%s137 + $0x28] sm:$0xff] %v148
        %v150 = vld [vmem:[%s136 + $0x30] sm:$0xff]
        %151 = vst [vmem:[%s137 + $0x30] sm:$0xff] %v150
        %v152 = vld [vmem:[%s136 + $0x38] sm:$0xff]
        %153 = vst [vmem:[%s137 + $0x38] sm:$0xff] %v152
      $region106: #{tpu_custom_call.1} parent=100 // loop_footer
        %s135 = sadd.s32 1, %s131
      $region107: #{tpu_custom_call.1} parent=100 // loop_footer_branch
        %130 = sbr.rel target = $region103
      $region108: #{tpu_custom_call.1} parent=100 // loop_exit
        _
    $region101: #{tpu_custom_call.1} parent=1 // pred_fallthru
      _
    // Predicated region
    $region109: #{tpu_custom_call.1} parent=1 // pred_check
      _
    $region110: #{tpu_custom_call.1} parent=1 // pred_check_branch
      %155 = sbr.rel target = $region112
    $region111: #{tpu_custom_call.1} parent=1 // pred_region
      _
    $region112: #{tpu_custom_call.1} parent=1 // pred_fallthru
      _
    // Predicated region
    $region113: #{tpu_custom_call.1} parent=1 // pred_check
      _
    $region114: #{tpu_custom_call.1} parent=1 // pred_check_branch
      %158 = sbr.rel (0) target = $region116
    $region115: #{tpu_custom_call.1} parent=1 // pred_region
      %159 = vsyncadd [#allocation7], 1024
    $region116: #{tpu_custom_call.1} parent=1 // pred_fallthru
      _
    %v160 = vld [vmem:[%s6] sm:$0xf]
    %v161 = vld [vmem:[%s6 + $0x4] sm:$0xf]
    %v194 = vunpack.c.l.b16 %v91
    %v195 = vunpack.c.l.b16 %v92
    %v196 = vunpack.c.l.b16 %v93
    %v197 = vunpack.c.l.b16 %v94
    %v198 = vunpack.c.l.b16 %v95
    %v199 = vunpack.c.l.b16 %v96
    %v200 = vunpack.c.l.b16 %v97
    %v201 = vunpack.c.l.b16 %v98
    %v202 = vunpack.c.l.b16 %v99
    %v203 = vunpack.c.l.b16 %v100
    %v204 = vunpack.c.l.b16 %v101
    %v205 = vunpack.c.l.b16 %v102
    %v206 = vunpack.c.l.b16 %v103
    %v207 = vunpack.c.l.b16 %v104
    %v208 = vunpack.c.l.b16 %v105
    %v209 = vunpack.c.l.b16 %v106
    %v210 = vunpack.c.l.b16 %v107
    %v211 = vunpack.c.l.b16 %v108
    %v212 = vunpack.c.l.b16 %v109
    %v213 = vunpack.c.l.b16 %v110
    %v214 = vunpack.c.l.b16 %v111
    %v215 = vunpack.c.l.b16 %v112
    %v216 = vunpack.c.l.b16 %v113
    %v217 = vunpack.c.l.b16 %v114
    %v218 = vunpack.c.l.b16 %v115
    %v219 = vunpack.c.l.b16 %v116
    %v220 = vunpack.c.l.b16 %v117
    %v221 = vunpack.c.l.b16 %v118
    %v222 = vunpack.c.l.b16 %v119
    %v223 = vunpack.c.l.b16 %v120
    %v224 = vunpack.c.l.b16 %v121
    %v225 = vunpack.c.l.b16 %v122
    %v226 = vpack.c.b16 %v195, %v194
    %v227 = vpack.c.b16 %v197, %v196
    %v228 = vpack.c.b16 %v199, %v198
    %v229 = vpack.c.b16 %v201, %v200
    %v230 = vpack.c.b16 %v203, %v202
    %v231 = vpack.c.b16 %v205, %v204
    %v232 = vpack.c.b16 %v207, %v206
    %v233 = vpack.c.b16 %v209, %v208
    %v234 = vpack.c.b16 %v211, %v210
    %v235 = vpack.c.b16 %v213, %v212
    %v236 = vpack.c.b16 %v215, %v214
    %v237 = vpack.c.b16 %v217, %v216
    %v238 = vpack.c.b16 %v219, %v218
    %v239 = vpack.c.b16 %v221, %v220
    %v240 = vpack.c.b16 %v223, %v222
    %v241 = vpack.c.b16 %v225, %v224
    %v244 = vunpack.c.l.b16 %v160
    %v245 = vunpack.c.l.b16 %v161
    %v246 = vpack.c.b16 %v245, %v244
    %vm248 = vcmask 130048
    %v250 = vsel %vm248, %v226, 0
    %v253 = vsel %vm248, %v227, 0
    %v256 = vsel %vm248, %v228, 0
    %v259 = vsel %vm248, %v229, 0
    %v262 = vsel %vm248, %v230, 0
    %v265 = vsel %vm248, %v231, 0
    %v268 = vsel %vm248, %v232, 0
    %v271 = vsel %vm248, %v233, 0
    %v274 = vsel %vm248, %v234, 0
    %v277 = vsel %vm248, %v235, 0
    %v280 = vsel %vm248, %v236, 0
    %v283 = vsel %vm248, %v237, 0
    %v286 = vsel %vm248, %v238, 0
    %v289 = vsel %vm248, %v239, 0
    %v292 = vsel %vm248, %v240, 0
    %v295 = vsel %vm248, %v241, 0
    %297 = vmatpush.bf16.msra.mxu0 0
    %298 = vmatpush.bf16.msra.mxu0 0
    %299 = vmatpush.bf16.msra.mxu0 0
    %300 = vmatpush.bf16.msra.mxu0 0
    %301 = vmatpush.bf16.msra.mxu0 0
    %302 = vmatpush.bf16.msra.mxu0 0
    %303 = vmatpush.bf16.msra.mxu0 0
    %304 = vmatpush.bf16.msra.mxu0 %v246
    %305 = vmatmul.bf16.gmra.mxu0 %v250
    %v306 = vpop.f32.mrf.mxu0
    %v307 = vadd.f32 0.0, %v306
    %v308 = vpop.f32.mrf.mxu0
    %v309 = vadd.f32 0.0, %v308
    %310 = vmatmul.bf16.gmra.mxu0 %v253
    %v311 = vpop.f32.mrf.mxu0
    %v312 = vadd.f32 0.0, %v311
    %v313 = vpop.f32.mrf.mxu0
    %v314 = vadd.f32 0.0, %v313
    %315 = vmatmul.bf16.gmra.mxu0 %v256
    %v316 = vpop.f32.mrf.mxu0
    %v317 = vadd.f32 0.0, %v316
    %v318 = vpop.f32.mrf.mxu0
    %v319 = vadd.f32 0.0, %v318
    %320 = vmatmul.bf16.gmra.mxu0 %v259
    %v321 = vpop.f32.mrf.mxu0
    %v322 = vadd.f32 0.0, %v321
    %v323 = vpop.f32.mrf.mxu0
    %v324 = vadd.f32 0.0, %v323
    %325 = vmatmul.bf16.gmra.mxu0 %v262
    %v326 = vpop.f32.mrf.mxu0
    %v327 = vadd.f32 0.0, %v326
    %v328 = vpop.f32.mrf.mxu0
    %v329 = vadd.f32 0.0, %v328
    %330 = vmatmul.bf16.gmra.mxu0 %v265
    %v331 = vpop.f32.mrf.mxu0
    %v332 = vadd.f32 0.0, %v331
    %v333 = vpop.f32.mrf.mxu0
    %v334 = vadd.f32 0.0, %v333
    %335 = vmatmul.bf16.gmra.mxu0 %v268
    %v336 = vpop.f32.mrf.mxu0
    %v337 = vadd.f32 0.0, %v336
    %v338 = vpop.f32.mrf.mxu0
    %v339 = vadd.f32 0.0, %v338
    %340 = vmatmul.bf16.gmra.mxu0 %v271
    %v341 = vpop.f32.mrf.mxu0
    %v342 = vadd.f32 0.0, %v341
    %v343 = vpop.f32.mrf.mxu0
    %v344 = vadd.f32 0.0, %v343
    %345 = vmatmul.bf16.gmra.mxu0 %v274
    %v346 = vpop.f32.mrf.mxu0
    %v347 = vadd.f32 0.0, %v346
    %v348 = vpop.f32.mrf.mxu0
    %v349 = vadd.f32 0.0, %v348
    %350 = vmatmul.bf16.gmra.mxu0 %v277
    %v351 = vpop.f32.mrf.mxu0
    %v352 = vadd.f32 0.0, %v351
    %v353 = vpop.f32.mrf.mxu0
    %v354 = vadd.f32 0.0, %v353
    %355 = vmatmul.bf16.gmra.mxu0 %v280
    %v356 = vpop.f32.mrf.mxu0
    %v357 = vadd.f32 0.0, %v356
    %v358 = vpop.f32.mrf.mxu0
    %v359 = vadd.f32 0.0, %v358
    %360 = vmatmul.bf16.gmra.mxu0 %v283
    %v361 = vpop.f32.mrf.mxu0
    %v362 = vadd.f32 0.0, %v361
    %v363 = vpop.f32.mrf.mxu0
    %v364 = vadd.f32 0.0, %v363
    %365 = vmatmul.bf16.gmra.mxu0 %v286
    %v366 = vpop.f32.mrf.mxu0
    %v367 = vadd.f32 0.0, %v366
    %v368 = vpop.f32.mrf.mxu0
    %v369 = vadd.f32 0.0, %v368
    %370 = vmatmul.bf16.gmra.mxu0 %v289
    %v371 = vpop.f32.mrf.mxu0
    %v372 = vadd.f32 0.0, %v371
    %v373 = vpop.f32.mrf.mxu0
    %v374 = vadd.f32 0.0, %v373
    %375 = vmatmul.bf16.gmra.mxu0 %v292
    %v376 = vpop.f32.mrf.mxu0
    %v377 = vadd.f32 0.0, %v376
    %v378 = vpop.f32.mrf.mxu0
    %v379 = vadd.f32 0.0, %v378
    %380 = vmatmul.bf16.gmra.mxu0 %v295
    %v381 = vpop.f32.mrf.mxu0
    %v382 = vadd.f32 0.0, %v381
    %v383 = vpop.f32.mrf.mxu0
    %v384 = vadd.f32 0.0, %v383
    %385 = vdwg.mxu0
    %v386 = vmul.f32 %v307, 0.0026246717
    %v387 = vmul.f32 %v309, 0.0026246717
    %v388 = vmul.f32 %v312, 0.0026246717
    %v389 = vmul.f32 %v314, 0.0026246717
    %v390 = vmul.f32 %v317, 0.0026246717
    %v391 = vmul.f32 %v319, 0.0026246717
    %v392 = vmul.f32 %v322, 0.0026246717
    %v393 = vmul.f32 %v324, 0.0026246717
    %v394 = vmul.f32 %v327, 0.0026246717
    %v395 = vmul.f32 %v329, 0.0026246717
    %v396 = vmul.f32 %v332, 0.0026246717
    %v397 = vmul.f32 %v334, 0.0026246717
    %v398 = vmul.f32 %v337, 0.0026246717
    %v399 = vmul.f32 %v339, 0.0026246717
    %v400 = vmul.f32 %v342, 0.0026246717
    %v401 = vmul.f32 %v344, 0.0026246717
    %v402 = vmul.f32 %v347, 0.0026246717
    %v403 = vmul.f32 %v349, 0.0026246717
    %v404 = vmul.f32 %v352, 0.0026246717
    %v405 = vmul.f32 %v354, 0.0026246717
    %v406 = vmul.f32 %v357, 0.0026246717
    %v407 = vmul.f32 %v359, 0.0026246717
    %v408 = vmul.f32 %v362, 0.0026246717
    %v409 = vmul.f32 %v364, 0.0026246717
    %v410 = vmul.f32 %v367, 0.0026246717
    %v411 = vmul.f32 %v369, 0.0026246717
    %v412 = vmul.f32 %v372, 0.0026246717
    %v413 = vmul.f32 %v374, 0.0026246717
    %v414 = vmul.f32 %v377, 0.0026246717
    %v415 = vmul.f32 %v379, 0.0026246717
    %v416 = vmul.f32 %v382, 0.0026246717
    %v417 = vmul.f32 %v384, 0.0026246717
    %v418 = vpack.c.bf16 %v386, %v386
    %v419 = vpack.c.bf16 %v387, %v387
    %v420 = vpack.c.bf16 %v388, %v388
    %v421 = vpack.c.bf16 %v389, %v389
    %v422 = vpack.c.bf16 %v390, %v390
    %v423 = vpack.c.bf16 %v391, %v391
    %v424 = vpack.c.bf16 %v392, %v392
    %v425 = vpack.c.bf16 %v393, %v393
    %v426 = vpack.c.bf16 %v394, %v394
    %v427 = vpack.c.bf16 %v395, %v395
    %v428 = vpack.c.bf16 %v396, %v396
    %v429 = vpack.c.bf16 %v397, %v397
    %v430 = vpack.c.bf16 %v398, %v398
    %v431 = vpack.c.bf16 %v399, %v399
    %v432 = vpack.c.bf16 %v400, %v400
    %v433 = vpack.c.bf16 %v401, %v401
    %v434 = vpack.c.bf16 %v402, %v402
    %v435 = vpack.c.bf16 %v403, %v403
    %v436 = vpack.c.bf16 %v404, %v404
    %v437 = vpack.c.bf16 %v405, %v405
    %v438 = vpack.c.bf16 %v406, %v406
    %v439 = vpack.c.bf16 %v407, %v407
    %v440 = vpack.c.bf16 %v408, %v408
    %v441 = vpack.c.bf16 %v409, %v409
    %v442 = vpack.c.bf16 %v410, %v410
    %v443 = vpack.c.bf16 %v411, %v411
    %v444 = vpack.c.bf16 %v412, %v412
    %v445 = vpack.c.bf16 %v413, %v413
    %v446 = vpack.c.bf16 %v414, %v414
    %v447 = vpack.c.bf16 %v415, %v415
    %v448 = vpack.c.bf16 %v416, %v416
    %v449 = vpack.c.bf16 %v417, %v417
    %450 = vst [vmem:[#allocation4] sm:$0xf] %v418
    %451 = vst [vmem:[#allocation4 + $0x4] sm:$0xf] %v419
    %452 = vst [vmem:[#allocation4 + $0x8] sm:$0xf] %v420
    %453 = vst [vmem:[#allocation4 + $0xc] sm:$0xf] %v421
    %454 = vst [vmem:[#allocation4 + $0x10] sm:$0xf] %v422
    %455 = vst [vmem:[#allocation4 + $0x14] sm:$0xf] %v423
    %456 = vst [vmem:[#allocation4 + $0x18] sm:$0xf] %v424
    %457 = vst [vmem:[#allocation4 + $0x1c] sm:$0xf] %v425
    %458 = vst [vmem:[#allocation4 + $0x20] sm:$0xf] %v426
    %459 = vst [vmem:[#allocation4 + $0x24] sm:$0xf] %v427
    %460 = vst [vmem:[#allocation4 + $0x28] sm:$0xf] %v428
    %461 = vst [vmem:[#allocation4 + $0x2c] sm:$0xf] %v429
    %462 = vst [vmem:[#allocation4 + $0x30] sm:$0xf] %v430
    %463 = vst [vmem:[#allocation4 + $0x34] sm:$0xf] %v431
    %464 = vst [vmem:[#allocation4 + $0x38] sm:$0xf] %v432
    %465 = vst [vmem:[#allocation4 + $0x3c] sm:$0xf] %v433
    %466 = vst [vmem:[#allocation4 + $0x40] sm:$0xf] %v434
    %467 = vst [vmem:[#allocation4 + $0x44] sm:$0xf] %v435
    %468 = vst [vmem:[#allocation4 + $0x48] sm:$0xf] %v436
    %469 = vst [vmem:[#allocation4 + $0x4c] sm:$0xf] %v437
    %470 = vst [vmem:[#allocation4 + $0x50] sm:$0xf] %v438
    %471 = vst [vmem:[#allocation4 + $0x54] sm:$0xf] %v439
    %472 = vst [vmem:[#allocation4 + $0x58] sm:$0xf] %v440
    %473 = vst [vmem:[#allocation4 + $0x5c] sm:$0xf] %v441
    %474 = vst [vmem:[#allocation4 + $0x60] sm:$0xf] %v442
    %475 = vst [vmem:[#allocation4 + $0x64] sm:$0xf] %v443
    %476 = vst [vmem:[#allocation4 + $0x68] sm:$0xf] %v444
    %477 = vst [vmem:[#allocation4 + $0x6c] sm:$0xf] %v445
    %478 = vst [vmem:[#allocation4 + $0x70] sm:$0xf] %v446
    %479 = vst [vmem:[#allocation4 + $0x74] sm:$0xf] %v447
    %480 = vst [vmem:[#allocation4 + $0x78] sm:$0xf] %v448
    %481 = vst [vmem:[#allocation4 + $0x7c] sm:$0xf] %v449
    %v482 = vld [vmem:[%s7] sm:$0x1]
    %v484 = vperm.slane %v482, 0
    %v486 = vld [vmem:[%s8] sm:$0x1]
    %v488 = vperm.slane %v486, 0
    %v490 = vld [vmem:[%s9] sm:$0x1]
    %v492 = vperm.slane %v490, 0
    loop: start=0, step=1, limit=2
    $region117: #{tpu_custom_call.1} parent=1 // loop_pre_header
      _
    $region118: #{tpu_custom_call.1} parent=1 // loop_header
      %s495 = sphi 0, %s499
      %p496 = scmp.ge.s32.totalorder %s495, 2
    $region119: #{tpu_custom_call.1} parent=1 // loop_header_branch
      %498 = sbr.rel (%p496) target = $region123
    $region120: #{tpu_custom_call.1} parent=1 // loop_body
      %p500 = scmp.lt.s32.totalorder %s495, 0
      %s501 = ssub.s32 0, %s495
      %s502 = scalar_select %p500, %s501, %s495
      %s503 = sand.u32 %s502, 1
      %s504 = ssub.s32 0, %s503
      %s505 = scalar_select %p500, %s504, %s503
      %p506 = scmp.ne.s32.totalorder %s505, 0
      %p507 = scmp.lt.s32.totalorder %s505, 0
      %p508 = pnand %p507, %p506
      %p509 = pneg %p508
      %s510 = sadd.s32 %s505, 2
      %s511 = scalar_select %p509, %s510, %s505
      %s512 = sadd.s32 %s495, 1
      %p513 = scmp.lt.s32.totalorder %s512, 2
      // Predicated region
      $region124: #{tpu_custom_call.1} parent=120 // pred_check
        %p514 = pneg %p513
      $region125: #{tpu_custom_call.1} parent=120 // pred_check_branch
        %516 = sbr.rel (%p514) target = $region127
      $region126: #{tpu_custom_call.1} parent=120 // pred_region
        %s517 = ssub.s32 1, %s511
        %s518 = smul.u32 %s512, 128
        %s519 = sld [smem:[#allocation9 + %s512]]
        %s520 = sshra.s32 %s519, 7
        %s521 = sand.u32 %s519, 127
        %s522 = sshra.s32 %s518, 5
        %s523 = sand.u32 %s518, 31
        %s524 = smul.u32 %s522, 2
        %s525 = sadd.s32 %s520, %s524
        %s526 = smul.addr %s525, 8
        %s527 = scalar_lea.vmem %s1, %s526
        %s528 = smul.u32 %s517, 8
        %s529 = smul.addr %s528, 8
        %s530 = scalar_lea.vmem [#allocation5], %s529
        %s531 = scalar_lea.sflag [#allocation7], %s517
        // Predicated region
        $region128: #{tpu_custom_call.1} parent=126 // pred_check
          _
        $region129: #{tpu_custom_call.1} parent=126 // pred_check_branch
          %533 = sbr.rel (0) target = $region131
        $region130: #{tpu_custom_call.1} parent=126 // pred_region
          loop: start=0, step=1, limit=1
          $region132: #{tpu_custom_call.1} parent=130 // loop_pre_header
            _
          $region133: #{tpu_custom_call.1} parent=130 // loop_header
            %s535 = sphi 0, %s539
            %p536 = scmp.ge.s32.totalorder %s535, 1
            %s540 = sphi %s527, %s527
            %s541 = sphi %s530, %s530
          $region134: #{tpu_custom_call.1} parent=130 // loop_header_branch
            %538 = sbr.rel (%p536) target = $region138
          $region135: #{tpu_custom_call.1} parent=130 // loop_body
            %v542 = vld [vmem:[%s540] sm:$0xff]
            %543 = vst [vmem:[%s541] sm:$0xff] %v542
            %v544 = vld [vmem:[%s540 + $0x8] sm:$0xff]
            %545 = vst [vmem:[%s541 + $0x8] sm:$0xff] %v544
            %v546 = vld [vmem:[%s540 + $0x10] sm:$0xff]
            %547 = vst [vmem:[%s541 + $0x10] sm:$0xff] %v546
            %v548 = vld [vmem:[%s540 + $0x18] sm:$0xff]
            %549 = vst [vmem:[%s541 + $0x18] sm:$0xff] %v548
            %v550 = vld [vmem:[%s540 + $0x20] sm:$0xff]
            %551 = vst [vmem:[%s541 + $0x20] sm:$0xff] %v550
            %v552 = vld [vmem:[%s540 + $0x28] sm:$0xff]
            %553 = vst [vmem:[%s541 + $0x28] sm:$0xff] %v552
            %v554 = vld [vmem:[%s540 + $0x30] sm:$0xff]
            %555 = vst [vmem:[%s541 + $0x30] sm:$0xff] %v554
            %v556 = vld [vmem:[%s540 + $0x38] sm:$0xff]
            %557 = vst [vmem:[%s541 + $0x38] sm:$0xff] %v556
          $region136: #{tpu_custom_call.1} parent=130 // loop_footer
            %s539 = sadd.s32 1, %s535
          $region137: #{tpu_custom_call.1} parent=130 // loop_footer_branch
            %534 = sbr.rel target = $region133
          $region138: #{tpu_custom_call.1} parent=130 // loop_exit
            _
        $region131: #{tpu_custom_call.1} parent=126 // pred_fallthru
          _
        // Predicated region
        $region139: #{tpu_custom_call.1} parent=126 // pred_check
          _
        $region140: #{tpu_custom_call.1} parent=126 // pred_check_branch
          %559 = sbr.rel target = $region142
        $region141: #{tpu_custom_call.1} parent=126 // pred_region
          _
        $region142: #{tpu_custom_call.1} parent=126 // pred_fallthru
          _
        // Predicated region
        $region143: #{tpu_custom_call.1} parent=126 // pred_check
          _
        $region144: #{tpu_custom_call.1} parent=126 // pred_check_branch
          %562 = sbr.rel (0) target = $region146
        $region145: #{tpu_custom_call.1} parent=126 // pred_region
          %563 = vsyncadd %s531, 1024
        $region146: #{tpu_custom_call.1} parent=126 // pred_fallthru
          _
      $region127: #{tpu_custom_call.1} parent=120 // pred_fallthru
        _
      %s564 = smul.u32 %s495, 128
      %s565 = sld [smem:[#allocation9 + %s495]]
      %s566 = smul.u32 %s511, 8
      %s567 = smul.addr %s566, 8
      %s568 = scalar_lea.vmem [#allocation5], %s567
      %s569 = scalar_lea.sflag [#allocation7], %s511
      %s570 = smul.u32 2, 16
      %s571 = smul.u32 %s570, 2
      %s572 = sshll.u32 %s571, 4
      %573 = dma.done %s569, %s572
      %s574 = sld [smem:[#allocation9 + %s495]]
      %v575 = vld [vmem:[%s568] sm:$0xff]
      %v576 = vld [vmem:[%s568 + $0x8] sm:$0xff]
      %v577 = vld [vmem:[%s568 + $0x10] sm:$0xff]
      %v578 = vld [vmem:[%s568 + $0x18] sm:$0xff]
      %v579 = vld [vmem:[%s568 + $0x20] sm:$0xff]
      %v580 = vld [vmem:[%s568 + $0x28] sm:$0xff]
      %v581 = vld [vmem:[%s568 + $0x30] sm:$0xff]
      %v582 = vld [vmem:[%s568 + $0x38] sm:$0xff]
      %v583 = vunpack.c.0.s8 %v575
      %v584 = vunpack.c.0.s8 %v576
      %v585 = vunpack.c.1.s8 %v575
      %v586 = vunpack.c.1.s8 %v576
      %v587 = vunpack.c.2.s8 %v575
      %v588 = vunpack.c.2.s8 %v576
      %v589 = vunpack.c.3.s8 %v575
      %v590 = vunpack.c.3.s8 %v576
      %v591 = vunpack.c.0.s8 %v577
      %v592 = vunpack.c.0.s8 %v578
      %v593 = vunpack.c.1.s8 %v577
      %v594 = vunpack.c.1.s8 %v578
      %v595 = vunpack.c.2.s8 %v577
      %v596 = vunpack.c.2.s8 %v578
      %v597 = vunpack.c.3.s8 %v577
      %v598 = vunpack.c.3.s8 %v578
      %v599 = vunpack.c.0.s8 %v579
      %v600 = vunpack.c.0.s8 %v580
      %v601 = vunpack.c.1.s8 %v579
      %v602 = vunpack.c.1.s8 %v580
      %v603 = vunpack.c.2.s8 %v579
      %v604 = vunpack.c.2.s8 %v580
      %v605 = vunpack.c.3.s8 %v579
      %v606 = vunpack.c.3.s8 %v580
      %v607 = vunpack.c.0.s8 %v581
      %v608 = vunpack.c.0.s8 %v582
      %v609 = vunpack.c.1.s8 %v581
      %v610 = vunpack.c.1.s8 %v582
      %v611 = vunpack.c.2.s8 %v581
      %v612 = vunpack.c.2.s8 %v582
      %v613 = vunpack.c.3.s8 %v581
      %v614 = vunpack.c.3.s8 %v582
      %v615 = vcvt.s32.f32 %v583
      %v616 = vcvt.s32.f32 %v584
      %v617 = vcvt.s32.f32 %v585
      %v618 = vcvt.s32.f32 %v586
      %v619 = vcvt.s32.f32 %v587
      %v620 = vcvt.s32.f32 %v588
      %v621 = vcvt.s32.f32 %v589
      %v622 = vcvt.s32.f32 %v590
      %v623 = vcvt.s32.f32 %v591
      %v624 = vcvt.s32.f32 %v592
      %v625 = vcvt.s32.f32 %v593
      %v626 = vcvt.s32.f32 %v594
      %v627 = vcvt.s32.f32 %v595
      %v628 = vcvt.s32.f32 %v596
      %v629 = vcvt.s32.f32 %v597
      %v630 = vcvt.s32.f32 %v598
      %v631 = vcvt.s32.f32 %v599
      %v632 = vcvt.s32.f32 %v600
      %v633 = vcvt.s32.f32 %v601
      %v634 = vcvt.s32.f32 %v602
      %v635 = vcvt.s32.f32 %v603
      %v636 = vcvt.s32.f32 %v604
      %v637 = vcvt.s32.f32 %v605
      %v638 = vcvt.s32.f32 %v606
      %v639 = vcvt.s32.f32 %v607
      %v640 = vcvt.s32.f32 %v608
      %v641 = vcvt.s32.f32 %v609
      %v642 = vcvt.s32.f32 %v610
      %v643 = vcvt.s32.f32 %v611
      %v644 = vcvt.s32.f32 %v612
      %v645 = vcvt.s32.f32 %v613
      %v646 = vcvt.s32.f32 %v614
      %v647 = vpack.c.bf16 %v617, %v615
      %v648 = vpack.c.bf16 %v618, %v616
      %v649 = vpack.c.bf16 %v621, %v619
      %v650 = vpack.c.bf16 %v622, %v620
      %v651 = vpack.c.bf16 %v625, %v623
      %v652 = vpack.c.bf16 %v626, %v624
      %v653 = vpack.c.bf16 %v629, %v627
      %v654 = vpack.c.bf16 %v630, %v628
      %v655 = vpack.c.bf16 %v633, %v631
      %v656 = vpack.c.bf16 %v634, %v632
      %v657 = vpack.c.bf16 %v637, %v635
      %v658 = vpack.c.bf16 %v638, %v636
      %v659 = vpack.c.bf16 %v641, %v639
      %v660 = vpack.c.bf16 %v642, %v640
      %v661 = vpack.c.bf16 %v645, %v643
      %v662 = vpack.c.bf16 %v646, %v644
      %s663 = sshra.s32 %s574, 3
      %s664 = sand.u32 %s574, 7
      %s665 = smul.addr %s663, 4
      %s666 = scalar_lea.vmem [#allocation4], %s665
      %v667 = vld [vmem:[%s666] sm:$0xf]
      %v668 = vld [vmem:[%s666 + $0x4] sm:$0xf]
      %v669 = vld [vmem:[%s666 + $0x8] sm:$0xf]
      %v670 = vld [vmem:[%s666 + $0xc] sm:$0xf]
      %v671 = vld [vmem:[%s666 + $0x10] sm:$0xf]
      %v672 = vld [vmem:[%s666 + $0x14] sm:$0xf]
      %v673 = vld [vmem:[%s666 + $0x18] sm:$0xf]
      %v674 = vld [vmem:[%s666 + $0x1c] sm:$0xf]
      %v675 = vld [vmem:[%s666 + $0x20] sm:$0xf]
      %v676 = vld [vmem:[%s666 + $0x24] sm:$0xf]
      %v677 = vld [vmem:[%s666 + $0x28] sm:$0xf]
      %v678 = vld [vmem:[%s666 + $0x2c] sm:$0xf]
      %v679 = vld [vmem:[%s666 + $0x30] sm:$0xf]
      %v680 = vld [vmem:[%s666 + $0x34] sm:$0xf]
      %v681 = vld [vmem:[%s666 + $0x38] sm:$0xf]
      %v682 = vld [vmem:[%s666 + $0x3c] sm:$0xf]
      %v683 = vld [vmem:[%s666 + $0x40] sm:$0xf]
      %v684 = vld [vmem:[%s666 + $0x44] sm:$0xf]
      %v685 = vld [vmem:[%s666 + $0x48] sm:$0xf]
      %v686 = vld [vmem:[%s666 + $0x4c] sm:$0xf]
      %v687 = vld [vmem:[%s666 + $0x50] sm:$0xf]
      %v688 = vld [vmem:[%s666 + $0x54] sm:$0xf]
      %v689 = vld [vmem:[%s666 + $0x58] sm:$0xf]
      %v690 = vld [vmem:[%s666 + $0x5c] sm:$0xf]
      %v691 = vld [vmem:[%s666 + $0x60] sm:$0xf]
      %v692 = vld [vmem:[%s666 + $0x64] sm:$0xf]
      %v693 = vld [vmem:[%s666 + $0x68] sm:$0xf]
      %v694 = vld [vmem:[%s666 + $0x6c] sm:$0xf]
      %v695 = vld [vmem:[%s666 + $0x70] sm:$0xf]
      %v696 = vld [vmem:[%s666 + $0x74] sm:$0xf]
      %v697 = vld [vmem:[%s666 + $0x78] sm:$0xf]
      %v698 = vld [vmem:[%s666 + $0x7c] sm:$0xf]
      %v731 = vunpack.c.l.b16 %v667
      %v732 = vunpack.c.l.b16 %v668
      %v733 = vunpack.c.l.b16 %v669
      %v734 = vunpack.c.l.b16 %v670
      %v735 = vunpack.c.l.b16 %v671
      %v736 = vunpack.c.l.b16 %v672
      %v737 = vunpack.c.l.b16 %v673
      %v738 = vunpack.c.l.b16 %v674
      %v739 = vunpack.c.l.b16 %v675
      %v740 = vunpack.c.l.b16 %v676
      %v741 = vunpack.c.l.b16 %v677
      %v742 = vunpack.c.l.b16 %v678
      %v743 = vunpack.c.l.b16 %v679
      %v744 = vunpack.c.l.b16 %v680
      %v745 = vunpack.c.l.b16 %v681
      %v746 = vunpack.c.l.b16 %v682
      %v747 = vunpack.c.l.b16 %v683
      %v748 = vunpack.c.l.b16 %v684
      %v749 = vunpack.c.l.b16 %v685
      %v750 = vunpack.c.l.b16 %v686
      %v751 = vunpack.c.l.b16 %v687
      %v752 = vunpack.c.l.b16 %v688
      %v753 = vunpack.c.l.b16 %v689
      %v754 = vunpack.c.l.b16 %v690
      %v755 = vunpack.c.l.b16 %v691
      %v756 = vunpack.c.l.b16 %v692
      %v757 = vunpack.c.l.b16 %v693
      %v758 = vunpack.c.l.b16 %v694
      %v759 = vunpack.c.l.b16 %v695
      %v760 = vunpack.c.l.b16 %v696
      %v761 = vunpack.c.l.b16 %v697
      %v762 = vunpack.c.l.b16 %v698
      %v763 = vpack.c.b16 %v732, %v731
      %v764 = vpack.c.b16 %v734, %v733
      %v765 = vpack.c.b16 %v736, %v735
      %v766 = vpack.c.b16 %v738, %v737
      %v767 = vpack.c.b16 %v740, %v739
      %v768 = vpack.c.b16 %v742, %v741
      %v769 = vpack.c.b16 %v744, %v743
      %v770 = vpack.c.b16 %v746, %v745
      %v771 = vpack.c.b16 %v748, %v747
      %v772 = vpack.c.b16 %v750, %v749
      %v773 = vpack.c.b16 %v752, %v751
      %v774 = vpack.c.b16 %v754, %v753
      %v775 = vpack.c.b16 %v756, %v755
      %v776 = vpack.c.b16 %v758, %v757
      %v777 = vpack.c.b16 %v760, %v759
      %v778 = vpack.c.b16 %v762, %v761
      %795 = vmatpush.bf16.msra.mxu0 %v770
      %796 = vmatpush.bf16.msra.mxu0 %v769
      %797 = vmatpush.bf16.msra.mxu0 %v768
      %798 = vmatpush.bf16.msra.mxu0 %v767
      %799 = vmatpush.bf16.msra.mxu0 %v766
      %800 = vmatpush.bf16.msra.mxu0 %v765
      %801 = vmatpush.bf16.msra.mxu0 %v764
      %802 = vmatpush.bf16.msra.mxu0 %v763
      %803 = vmatmul.bf16.gmra.mxu0 %v647
      %v804 = vpop.f32.mrf.mxu0
      %v805 = vadd.f32 %v484, %v804
      %v806 = vpop.f32.mrf.mxu0
      %v807 = vadd.f32 %v484, %v806
      %808 = vmatmul.bf16.gmra.mxu0 %v649
      %v809 = vpop.f32.mrf.mxu0
      %v810 = vadd.f32 %v484, %v809
      %v811 = vpop.f32.mrf.mxu0
      %v812 = vadd.f32 %v484, %v811
      %813 = vmatmul.bf16.gmra.mxu0 %v651
      %v814 = vpop.f32.mrf.mxu0
      %v815 = vadd.f32 %v484, %v814
      %v816 = vpop.f32.mrf.mxu0
      %v817 = vadd.f32 %v484, %v816
      %818 = vmatmul.bf16.gmra.mxu0 %v653
      %v819 = vpop.f32.mrf.mxu0
      %v820 = vadd.f32 %v484, %v819
      %v821 = vpop.f32.mrf.mxu0
      %v822 = vadd.f32 %v484, %v821
      %823 = vmatmul.bf16.gmra.mxu0 %v655
      %v824 = vpop.f32.mrf.mxu0
      %v825 = vadd.f32 %v484, %v824
      %v826 = vpop.f32.mrf.mxu0
      %v827 = vadd.f32 %v484, %v826
      %828 = vmatmul.bf16.gmra.mxu0 %v657
      %v829 = vpop.f32.mrf.mxu0
      %v830 = vadd.f32 %v484, %v829
      %v831 = vpop.f32.mrf.mxu0
      %v832 = vadd.f32 %v484, %v831
      %833 = vmatmul.bf16.gmra.mxu0 %v659
      %v834 = vpop.f32.mrf.mxu0
      %v835 = vadd.f32 %v484, %v834
      %v836 = vpop.f32.mrf.mxu0
      %v837 = vadd.f32 %v484, %v836
      %838 = vmatmul.bf16.gmra.mxu0 %v661
      %v839 = vpop.f32.mrf.mxu0
      %v840 = vadd.f32 %v484, %v839
      %v841 = vpop.f32.mrf.mxu0
      %v842 = vadd.f32 %v484, %v841
      %843 = vdwg.mxu0
      %844 = vmatpush.bf16.msra.mxu0 %v778
      %845 = vmatpush.bf16.msra.mxu0 %v777
      %846 = vmatpush.bf16.msra.mxu0 %v776
      %847 = vmatpush.bf16.msra.mxu0 %v775
      %848 = vmatpush.bf16.msra.mxu0 %v774
      %849 = vmatpush.bf16.msra.mxu0 %v773
      %850 = vmatpush.bf16.msra.mxu0 %v772
      %851 = vmatpush.bf16.msra.mxu0 %v771
      %852 = vmatmul.bf16.gmra.mxu0 %v648
      %v853 = vpop.f32.mrf.mxu0
      %v854 = vadd.f32 %v805, %v853
      %v855 = vpop.f32.mrf.mxu0
      %v856 = vadd.f32 %v807, %v855
      %857 = vmatmul.bf16.gmra.mxu0 %v650
      %v858 = vpop.f32.mrf.mxu0
      %v859 = vadd.f32 %v810, %v858
      %v860 = vpop.f32.mrf.mxu0
      %v861 = vadd.f32 %v812, %v860
      %862 = vmatmul.bf16.gmra.mxu0 %v652
      %v863 = vpop.f32.mrf.mxu0
      %v864 = vadd.f32 %v815, %v863
      %v865 = vpop.f32.mrf.mxu0
      %v866 = vadd.f32 %v817, %v865
      %867 = vmatmul.bf16.gmra.mxu0 %v654
      %v868 = vpop.f32.mrf.mxu0
      %v869 = vadd.f32 %v820, %v868
      %v870 = vpop.f32.mrf.mxu0
      %v871 = vadd.f32 %v822, %v870
      %872 = vmatmul.bf16.gmra.mxu0 %v656
      %v873 = vpop.f32.mrf.mxu0
      %v874 = vadd.f32 %v825, %v873
      %v875 = vpop.f32.mrf.mxu0
      %v876 = vadd.f32 %v827, %v875
      %877 = vmatmul.bf16.gmra.mxu0 %v658
      %v878 = vpop.f32.mrf.mxu0
      %v879 = vadd.f32 %v830, %v878
      %v880 = vpop.f32.mrf.mxu0
      %v881 = vadd.f32 %v832, %v880
      %882 = vmatmul.bf16.gmra.mxu0 %v660
      %v883 = vpop.f32.mrf.mxu0
      %v884 = vadd.f32 %v835, %v883
      %v885 = vpop.f32.mrf.mxu0
      %v886 = vadd.f32 %v837, %v885
      %887 = vmatmul.bf16.gmra.mxu0 %v662
      %v888 = vpop.f32.mrf.mxu0
      %v889 = vadd.f32 %v840, %v888
      %v890 = vpop.f32.mrf.mxu0
      %v891 = vadd.f32 %v842, %v890
      %892 = vdwg.mxu0
      %v893 = vmax.f32 %v854, 0.0
      %v894 = vmax.f32 %v856, 0.0
      %v895 = vmax.f32 %v859, 0.0
      %v896 = vmax.f32 %v861, 0.0
      %v897 = vmax.f32 %v864, 0.0
      %v898 = vmax.f32 %v866, 0.0
      %v899 = vmax.f32 %v869, 0.0
      %v900 = vmax.f32 %v871, 0.0
      %v901 = vmax.f32 %v874, 0.0
      %v902 = vmax.f32 %v876, 0.0
      %v903 = vmax.f32 %v879, 0.0
      %v904 = vmax.f32 %v881, 0.0
      %v905 = vmax.f32 %v884, 0.0
      %v906 = vmax.f32 %v886, 0.0
      %v907 = vmax.f32 %v889, 0.0
      %v908 = vmax.f32 %v891, 0.0
      %v909 = vmul.f32 %v893, %v488
      %v910 = vmul.f32 %v894, %v488
      %v911 = vmul.f32 %v895, %v488
      %v912 = vmul.f32 %v896, %v488
      %v913 = vmul.f32 %v897, %v488
      %v914 = vmul.f32 %v898, %v488
      %v915 = vmul.f32 %v899, %v488
      %v916 = vmul.f32 %v900, %v488
      %v917 = vmul.f32 %v901, %v488
      %v918 = vmul.f32 %v902, %v488
      %v919 = vmul.f32 %v903, %v488
      %v920 = vmul.f32 %v904, %v488
      %v921 = vmul.f32 %v905, %v488
      %v922 = vmul.f32 %v906, %v488
      %v923 = vmul.f32 %v907, %v488
      %v924 = vmul.f32 %v908, %v488
      %v925 = vadd.f32 %v909, %v492
      %v926 = vadd.f32 %v910, %v492
      %v927 = vadd.f32 %v911, %v492
      %v928 = vadd.f32 %v912, %v492
      %v929 = vadd.f32 %v913, %v492
      %v930 = vadd.f32 %v914, %v492
      %v931 = vadd.f32 %v915, %v492
      %v932 = vadd.f32 %v916, %v492
      %v933 = vadd.f32 %v917, %v492
      %v934 = vadd.f32 %v918, %v492
      %v935 = vadd.f32 %v919, %v492
      %v936 = vadd.f32 %v920, %v492
      %v937 = vadd.f32 %v921, %v492
      %v938 = vadd.f32 %v922, %v492
      %v939 = vadd.f32 %v923, %v492
      %v940 = vadd.f32 %v924, %v492
      %s941 = scalar_lea.vmem [#allocation2], %s564
      %942 = vst [vmem:[%s941] sm:$0xff] %v925
      %943 = vst [vmem:[%s941 + $0x8] sm:$0xff] %v926
      %944 = vst [vmem:[%s941 + $0x10] sm:$0xff] %v927
      %945 = vst [vmem:[%s941 + $0x18] sm:$0xff] %v928
      %946 = vst [vmem:[%s941 + $0x20] sm:$0xff] %v929
      %947 = vst [vmem:[%s941 + $0x28] sm:$0xff] %v930
      %948 = vst [vmem:[%s941 + $0x30] sm:$0xff] %v931
      %949 = vst [vmem:[%s941 + $0x38] sm:$0xff] %v932
      %950 = vst [vmem:[%s941 + $0x40] sm:$0xff] %v933
      %951 = vst [vmem:[%s941 + $0x48] sm:$0xff] %v934
      %952 = vst [vmem:[%s941 + $0x50] sm:$0xff] %v935
      %953 = vst [vmem:[%s941 + $0x58] sm:$0xff] %v936
      %954 = vst [vmem:[%s941 + $0x60] sm:$0xff] %v937
      %955 = vst [vmem:[%s941 + $0x68] sm:$0xff] %v938
      %956 = vst [vmem:[%s941 + $0x70] sm:$0xff] %v939
      %957 = vst [vmem:[%s941 + $0x78] sm:$0xff] %v940
      %v958 = vpack.c.bf16 %v925, %v925
      %v959 = vpack.c.bf16 %v926, %v926
      %v960 = vpack.c.bf16 %v927, %v927
      %v961 = vpack.c.bf16 %v928, %v928
      %v962 = vpack.c.bf16 %v929, %v929
      %v963 = vpack.c.bf16 %v930, %v930
      %v964 = vpack.c.bf16 %v931, %v931
      %v965 = vpack.c.bf16 %v932, %v932
      %v966 = vpack.c.bf16 %v933, %v933
      %v967 = vpack.c.bf16 %v934, %v934
      %v968 = vpack.c.bf16 %v935, %v935
      %v969 = vpack.c.bf16 %v936, %v936
      %v970 = vpack.c.bf16 %v937, %v937
      %v971 = vpack.c.bf16 %v938, %v938
      %v972 = vpack.c.bf16 %v939, %v939
      %v973 = vpack.c.bf16 %v940, %v940
      %s974 = sshra.s32 %s564, 3
      %s975 = sand.u32 %s564, 7
      %s976 = smul.addr %s974, 4
      %s977 = scalar_lea.vmem [#allocation3], %s976
      %978 = vst [vmem:[%s977] sm:$0xf] %v958
      %979 = vst [vmem:[%s977 + $0x4] sm:$0xf] %v959
      %980 = vst [vmem:[%s977 + $0x8] sm:$0xf] %v960
      %981 = vst [vmem:[%s977 + $0xc] sm:$0xf] %v961
      %982 = vst [vmem:[%s977 + $0x10] sm:$0xf] %v962
      %983 = vst [vmem:[%s977 + $0x14] sm:$0xf] %v963
      %984 = vst [vmem:[%s977 + $0x18] sm:$0xf] %v964
      %985 = vst [vmem:[%s977 + $0x1c] sm:$0xf] %v965
      %986 = vst [vmem:[%s977 + $0x20] sm:$0xf] %v966
      %987 = vst [vmem:[%s977 + $0x24] sm:$0xf] %v967
      %988 = vst [vmem:[%s977 + $0x28] sm:$0xf] %v968
      %989 = vst [vmem:[%s977 + $0x2c] sm:$0xf] %v969
      %990 = vst [vmem:[%s977 + $0x30] sm:$0xf] %v970
      %991 = vst [vmem:[%s977 + $0x34] sm:$0xf] %v971
      %992 = vst [vmem:[%s977 + $0x38] sm:$0xf] %v972
      %993 = vst [vmem:[%s977 + $0x3c] sm:$0xf] %v973
    $region121: #{tpu_custom_call.1} parent=1 // loop_footer
      %s499 = sadd.s32 1, %s495
    $region122: #{tpu_custom_call.1} parent=1 // loop_footer_branch
      %494 = sbr.rel target = $region118
    $region123: #{tpu_custom_call.1} parent=1 // loop_exit
      _
    %v994 = vld [vmem:[#allocation3] sm:$0xf]
    %v995 = vld [vmem:[#allocation3 + $0x4] sm:$0xf]
    %v996 = vld [vmem:[#allocation3 + $0x8] sm:$0xf]
    %v997 = vld [vmem:[#allocation3 + $0xc] sm:$0xf]
    %v998 = vld [vmem:[#allocation3 + $0x10] sm:$0xf]
    %v999 = vld [vmem:[#allocation3 + $0x14] sm:$0xf]
    %v1000 = vld [vmem:[#allocation3 + $0x18] sm:$0xf]
    %v1001 = vld [vmem:[#allocation3 + $0x1c] sm:$0xf]
    %v1002 = vld [vmem:[#allocation3 + $0x20] sm:$0xf]
    %v1003 = vld [vmem:[#allocation3 + $0x24] sm:$0xf]
    %v1004 = vld [vmem:[#allocation3 + $0x28] sm:$0xf]
    %v1005 = vld [vmem:[#allocation3 + $0x2c] sm:$0xf]
    %v1006 = vld [vmem:[#allocation3 + $0x30] sm:$0xf]
    %v1007 = vld [vmem:[#allocation3 + $0x34] sm:$0xf]
    %v1008 = vld [vmem:[#allocation3 + $0x38] sm:$0xf]
    %v1009 = vld [vmem:[#allocation3 + $0x3c] sm:$0xf]
    %v1010 = vld [vmem:[#allocation3 + $0x40] sm:$0xf]
    %v1011 = vld [vmem:[#allocation3 + $0x44] sm:$0xf]
    %v1012 = vld [vmem:[#allocation3 + $0x48] sm:$0xf]
    %v1013 = vld [vmem:[#allocation3 + $0x4c] sm:$0xf]
    %v1014 = vld [vmem:[#allocation3 + $0x50] sm:$0xf]
    %v1015 = vld [vmem:[#allocation3 + $0x54] sm:$0xf]
    %v1016 = vld [vmem:[#allocation3 + $0x58] sm:$0xf]
    %v1017 = vld [vmem:[#allocation3 + $0x5c] sm:$0xf]
    %v1018 = vld [vmem:[#allocation3 + $0x60] sm:$0xf]
    %v1019 = vld [vmem:[#allocation3 + $0x64] sm:$0xf]
    %v1020 = vld [vmem:[#allocation3 + $0x68] sm:$0xf]
    %v1021 = vld [vmem:[#allocation3 + $0x6c] sm:$0xf]
    %v1022 = vld [vmem:[#allocation3 + $0x70] sm:$0xf]
    %v1023 = vld [vmem:[#allocation3 + $0x74] sm:$0xf]
    %v1024 = vld [vmem:[#allocation3 + $0x78] sm:$0xf]
    %v1025 = vld [vmem:[#allocation3 + $0x7c] sm:$0xf]
    %s1026 = sld [smem:[#allocation9]]
    %s1027 = sshra.s32 %s1026, 7
    %s1028 = sand.u32 %s1026, 127
    %s1029 = smul.addr %s1027, 8
    %s1030 = scalar_lea.vmem %s1, %s1029
    // Predicated region
    $region147: #{tpu_custom_call.1} parent=1 // pred_check
      _
    $region148: #{tpu_custom_call.1} parent=1 // pred_check_branch
      %1032 = sbr.rel (0) target = $region150
    $region149: #{tpu_custom_call.1} parent=1 // pred_region
      loop: start=0, step=1, limit=1
      $region151: #{tpu_custom_call.1} parent=149 // loop_pre_header
        _
      $region152: #{tpu_custom_call.1} parent=149 // loop_header
        %s1034 = sphi 0, %s1038
        %p1035 = scmp.ge.s32.totalorder %s1034, 1
        %s1039 = sphi %s1030, %s1030
        %s1040 = sphi [#allocation5], [#allocation5]
      $region153: #{tpu_custom_call.1} parent=149 // loop_header_branch
        %1037 = sbr.rel (%p1035) target = $region157
      $region154: #{tpu_custom_call.1} parent=149 // loop_body
        %v1041 = vld [vmem:[%s1039] sm:$0xff]
        %1042 = vst [vmem:[%s1040] sm:$0xff] %v1041
        %v1043 = vld [vmem:[%s1039 + $0x8] sm:$0xff]
        %1044 = vst [vmem:[%s1040 + $0x8] sm:$0xff] %v1043
        %v1045 = vld [vmem:[%s1039 + $0x10] sm:$0xff]
        %1046 = vst [vmem:[%s1040 + $0x10] sm:$0xff] %v1045
        %v1047 = vld [vmem:[%s1039 + $0x18] sm:$0xff]
        %1048 = vst [vmem:[%s1040 + $0x18] sm:$0xff] %v1047
        %v1049 = vld [vmem:[%s1039 + $0x20] sm:$0xff]
        %1050 = vst [vmem:[%s1040 + $0x20] sm:$0xff] %v1049
        %v1051 = vld [vmem:[%s1039 + $0x28] sm:$0xff]
        %1052 = vst [vmem:[%s1040 + $0x28] sm:$0xff] %v1051
        %v1053 = vld [vmem:[%s1039 + $0x30] sm:$0xff]
        %1054 = vst [vmem:[%s1040 + $0x30] sm:$0xff] %v1053
        %v1055 = vld [vmem:[%s1039 + $0x38] sm:$0xff]
        %1056 = vst [vmem:[%s1040 + $0x38] sm:$0xff] %v1055
      $region155: #{tpu_custom_call.1} parent=149 // loop_footer
        %s1038 = sadd.s32 1, %s1034
      $region156: #{tpu_custom_call.1} parent=149 // loop_footer_branch
        %1033 = sbr.rel target = $region152
      $region157: #{tpu_custom_call.1} parent=149 // loop_exit
        _
    $region150: #{tpu_custom_call.1} parent=1 // pred_fallthru
      _
    // Predicated region
    $region158: #{tpu_custom_call.1} parent=1 // pred_check
      _
    $region159: #{tpu_custom_call.1} parent=1 // pred_check_branch
      %1058 = sbr.rel target = $region161
    $region160: #{tpu_custom_call.1} parent=1 // pred_region
      _
    $region161: #{tpu_custom_call.1} parent=1 // pred_fallthru
      _
    // Predicated region
    $region162: #{tpu_custom_call.1} parent=1 // pred_check
      _
    $region163: #{tpu_custom_call.1} parent=1 // pred_check_branch
      %1061 = sbr.rel (0) target = $region165
    $region164: #{tpu_custom_call.1} parent=1 // pred_region
      %1062 = vsyncadd [#allocation7], 1024
    $region165: #{tpu_custom_call.1} parent=1 // pred_fallthru
      _
    %v1063 = vld [vmem:[%s10] sm:$0xf]
    %v1064 = vld [vmem:[%s10 + $0x4] sm:$0xf]
    %v1065 = vld [vmem:[%s10 + $0x8] sm:$0xf]
    %v1066 = vld [vmem:[%s10 + $0xc] sm:$0xf]
    %v1067 = vld [vmem:[%s10 + $0x10] sm:$0xf]
    %v1068 = vld [vmem:[%s10 + $0x14] sm:$0xf]
    %v1069 = vld [vmem:[%s10 + $0x18] sm:$0xf]
    %v1070 = vld [vmem:[%s10 + $0x1c] sm:$0xf]
    %v1071 = vld [vmem:[%s10 + $0x20] sm:$0xf]
    %v1072 = vld [vmem:[%s10 + $0x24] sm:$0xf]
    %v1073 = vld [vmem:[%s10 + $0x28] sm:$0xf]
    %v1074 = vld [vmem:[%s10 + $0x2c] sm:$0xf]
    %v1075 = vld [vmem:[%s10 + $0x30] sm:$0xf]
    %v1076 = vld [vmem:[%s10 + $0x34] sm:$0xf]
    %v1077 = vld [vmem:[%s10 + $0x38] sm:$0xf]
    %v1078 = vld [vmem:[%s10 + $0x3c] sm:$0xf]
    %v1111 = vunpack.c.l.b16 %v994
    %v1112 = vunpack.c.l.b16 %v995
    %v1113 = vunpack.c.l.b16 %v996
    %v1114 = vunpack.c.l.b16 %v997
    %v1115 = vunpack.c.l.b16 %v998
    %v1116 = vunpack.c.l.b16 %v999
    %v1117 = vunpack.c.l.b16 %v1000
    %v1118 = vunpack.c.l.b16 %v1001
    %v1119 = vunpack.c.l.b16 %v1002
    %v1120 = vunpack.c.l.b16 %v1003
    %v1121 = vunpack.c.l.b16 %v1004
    %v1122 = vunpack.c.l.b16 %v1005
    %v1123 = vunpack.c.l.b16 %v1006
    %v1124 = vunpack.c.l.b16 %v1007
    %v1125 = vunpack.c.l.b16 %v1008
    %v1126 = vunpack.c.l.b16 %v1009
    %v1127 = vunpack.c.l.b16 %v1010
    %v1128 = vunpack.c.l.b16 %v1011
    %v1129 = vunpack.c.l.b16 %v1012
    %v1130 = vunpack.c.l.b16 %v1013
    %v1131 = vunpack.c.l.b16 %v1014
    %v1132 = vunpack.c.l.b16 %v1015
    %v1133 = vunpack.c.l.b16 %v1016
    %v1134 = vunpack.c.l.b16 %v1017
    %v1135 = vunpack.c.l.b16 %v1018
    %v1136 = vunpack.c.l.b16 %v1019
    %v1137 = vunpack.c.l.b16 %v1020
    %v1138 = vunpack.c.l.b16 %v1021
    %v1139 = vunpack.c.l.b16 %v1022
    %v1140 = vunpack.c.l.b16 %v1023
    %v1141 = vunpack.c.l.b16 %v1024
    %v1142 = vunpack.c.l.b16 %v1025
    %v1143 = vpack.c.b16 %v1112, %v1111
    %v1144 = vpack.c.b16 %v1114, %v1113
    %v1145 = vpack.c.b16 %v1116, %v1115
    %v1146 = vpack.c.b16 %v1118, %v1117
    %v1147 = vpack.c.b16 %v1120, %v1119
    %v1148 = vpack.c.b16 %v1122, %v1121
    %v1149 = vpack.c.b16 %v1124, %v1123
    %v1150 = vpack.c.b16 %v1126, %v1125
    %v1151 = vpack.c.b16 %v1128, %v1127
    %v1152 = vpack.c.b16 %v1130, %v1129
    %v1153 = vpack.c.b16 %v1132, %v1131
    %v1154 = vpack.c.b16 %v1134, %v1133
    %v1155 = vpack.c.b16 %v1136, %v1135
    %v1156 = vpack.c.b16 %v1138, %v1137
    %v1157 = vpack.c.b16 %v1140, %v1139
    %v1158 = vpack.c.b16 %v1142, %v1141
    %v1191 = vunpack.c.l.b16 %v1063
    %v1192 = vunpack.c.l.b16 %v1064
    %v1193 = vunpack.c.l.b16 %v1065
    %v1194 = vunpack.c.l.b16 %v1066
    %v1195 = vunpack.c.l.b16 %v1067
    %v1196 = vunpack.c.l.b16 %v1068
    %v1197 = vunpack.c.l.b16 %v1069
    %v1198 = vunpack.c.l.b16 %v1070
    %v1199 = vunpack.c.l.b16 %v1071
    %v1200 = vunpack.c.l.b16 %v1072
    %v1201 = vunpack.c.l.b16 %v1073
    %v1202 = vunpack.c.l.b16 %v1074
    %v1203 = vunpack.c.l.b16 %v1075
    %v1204 = vunpack.c.l.b16 %v1076
    %v1205 = vunpack.c.l.b16 %v1077
    %v1206 = vunpack.c.l.b16 %v1078
    %v1207 = vpack.c.b16 %v1192, %v1191
    %v1208 = vpack.c.b16 %v1194, %v1193
    %v1209 = vpack.c.b16 %v1196, %v1195
    %v1210 = vpack.c.b16 %v1198, %v1197
    %v1211 = vpack.c.b16 %v1200, %v1199
    %v1212 = vpack.c.b16 %v1202, %v1201
    %v1213 = vpack.c.b16 %v1204, %v1203
    %v1214 = vpack.c.b16 %v1206, %v1205
    %1223 = vmatpush.bf16.msra.mxu0 %v1214
    %1224 = vmatpush.bf16.msra.mxu0 %v1213
    %1225 = vmatpush.bf16.msra.mxu0 %v1212
    %1226 = vmatpush.bf16.msra.mxu0 %v1211
    %1227 = vmatpush.bf16.msra.mxu0 %v1210
    %1228 = vmatpush.bf16.msra.mxu0 %v1209
    %1229 = vmatpush.bf16.msra.mxu0 %v1208
    %1230 = vmatpush.bf16.msra.mxu0 %v1207
    %1231 = vmatmul.bf16.gmra.mxu0 %v1143
    %v1232 = vpop.f32.mrf.mxu0
    %v1233 = vadd.f32 0.0, %v1232
    %v1234 = vpop.f32.mrf.mxu0
    %v1235 = vadd.f32 0.0, %v1234
    %1236 = vmatmul.bf16.gmra.mxu0 %v1144
    %v1237 = vpop.f32.mrf.mxu0
    %v1238 = vadd.f32 0.0, %v1237
    %v1239 = vpop.f32.mrf.mxu0
    %v1240 = vadd.f32 0.0, %v1239
    %1241 = vmatmul.bf16.gmra.mxu0 %v1145
    %v1242 = vpop.f32.mrf.mxu0
    %v1243 = vadd.f32 0.0, %v1242
    %v1244 = vpop.f32.mrf.mxu0
    %v1245 = vadd.f32 0.0, %v1244
    %1246 = vmatmul.bf16.gmra.mxu0 %v1146
    %v1247 = vpop.f32.mrf.mxu0
    %v1248 = vadd.f32 0.0, %v1247
    %v1249 = vpop.f32.mrf.mxu0
    %v1250 = vadd.f32 0.0, %v1249
    %1251 = vmatmul.bf16.gmra.mxu0 %v1147
    %v1252 = vpop.f32.mrf.mxu0
    %v1253 = vadd.f32 0.0, %v1252
    %v1254 = vpop.f32.mrf.mxu0
    %v1255 = vadd.f32 0.0, %v1254
    %1256 = vmatmul.bf16.gmra.mxu0 %v1148
    %v1257 = vpop.f32.mrf.mxu0
    %v1258 = vadd.f32 0.0, %v1257
    %v1259 = vpop.f32.mrf.mxu0
    %v1260 = vadd.f32 0.0, %v1259
    %1261 = vmatmul.bf16.gmra.mxu0 %v1149
    %v1262 = vpop.f32.mrf.mxu0
    %v1263 = vadd.f32 0.0, %v1262
    %v1264 = vpop.f32.mrf.mxu0
    %v1265 = vadd.f32 0.0, %v1264
    %1266 = vmatmul.bf16.gmra.mxu0 %v1150
    %v1267 = vpop.f32.mrf.mxu0
    %v1268 = vadd.f32 0.0, %v1267
    %v1269 = vpop.f32.mrf.mxu0
    %v1270 = vadd.f32 0.0, %v1269
    %1271 = vmatmul.bf16.gmra.mxu0 %v1151
    %v1272 = vpop.f32.mrf.mxu0
    %v1273 = vadd.f32 0.0, %v1272
    %v1274 = vpop.f32.mrf.mxu0
    %v1275 = vadd.f32 0.0, %v1274
    %1276 = vmatmul.bf16.gmra.mxu0 %v1152
    %v1277 = vpop.f32.mrf.mxu0
    %v1278 = vadd.f32 0.0, %v1277
    %v1279 = vpop.f32.mrf.mxu0
    %v1280 = vadd.f32 0.0, %v1279
    %1281 = vmatmul.bf16.gmra.mxu0 %v1153
    %v1282 = vpop.f32.mrf.mxu0
    %v1283 = vadd.f32 0.0, %v1282
    %v1284 = vpop.f32.mrf.mxu0
    %v1285 = vadd.f32 0.0, %v1284
    %1286 = vmatmul.bf16.gmra.mxu0 %v1154
    %v1287 = vpop.f32.mrf.mxu0
    %v1288 = vadd.f32 0.0, %v1287
    %v1289 = vpop.f32.mrf.mxu0
    %v1290 = vadd.f32 0.0, %v1289
    %1291 = vmatmul.bf16.gmra.mxu0 %v1155
    %v1292 = vpop.f32.mrf.mxu0
    %v1293 = vadd.f32 0.0, %v1292
    %v1294 = vpop.f32.mrf.mxu0
    %v1295 = vadd.f32 0.0, %v1294
    %1296 = vmatmul.bf16.gmra.mxu0 %v1156
    %v1297 = vpop.f32.mrf.mxu0
    %v1298 = vadd.f32 0.0, %v1297
    %v1299 = vpop.f32.mrf.mxu0
    %v1300 = vadd.f32 0.0, %v1299
    %1301 = vmatmul.bf16.gmra.mxu0 %v1157
    %v1302 = vpop.f32.mrf.mxu0
    %v1303 = vadd.f32 0.0, %v1302
    %v1304 = vpop.f32.mrf.mxu0
    %v1305 = vadd.f32 0.0, %v1304
    %1306 = vmatmul.bf16.gmra.mxu0 %v1158
    %v1307 = vpop.f32.mrf.mxu0
    %v1308 = vadd.f32 0.0, %v1307
    %v1309 = vpop.f32.mrf.mxu0
    %v1310 = vadd.f32 0.0, %v1309
    %1311 = vdwg.mxu0
    %v1312 = vmul.f32 %v1233, 0.0026246717
    %v1313 = vmul.f32 %v1235, 0.0026246717
    %v1314 = vmul.f32 %v1238, 0.0026246717
    %v1315 = vmul.f32 %v1240, 0.0026246717
    %v1316 = vmul.f32 %v1243, 0.0026246717
    %v1317 = vmul.f32 %v1245, 0.0026246717
    %v1318 = vmul.f32 %v1248, 0.0026246717
    %v1319 = vmul.f32 %v1250, 0.0026246717
    %v1320 = vmul.f32 %v1253, 0.0026246717
    %v1321 = vmul.f32 %v1255, 0.0026246717
    %v1322 = vmul.f32 %v1258, 0.0026246717
    %v1323 = vmul.f32 %v1260, 0.0026246717
    %v1324 = vmul.f32 %v1263, 0.0026246717
    %v1325 = vmul.f32 %v1265, 0.0026246717
    %v1326 = vmul.f32 %v1268, 0.0026246717
    %v1327 = vmul.f32 %v1270, 0.0026246717
    %v1328 = vmul.f32 %v1273, 0.0026246717
    %v1329 = vmul.f32 %v1275, 0.0026246717
    %v1330 = vmul.f32 %v1278, 0.0026246717
    %v1331 = vmul.f32 %v1280, 0.0026246717
    %v1332 = vmul.f32 %v1283, 0.0026246717
    %v1333 = vmul.f32 %v1285, 0.0026246717
    %v1334 = vmul.f32 %v1288, 0.0026246717
    %v1335 = vmul.f32 %v1290, 0.0026246717
    %v1336 = vmul.f32 %v1293, 0.0026246717
    %v1337 = vmul.f32 %v1295, 0.0026246717
    %v1338 = vmul.f32 %v1298, 0.0026246717
    %v1339 = vmul.f32 %v1300, 0.0026246717
    %v1340 = vmul.f32 %v1303, 0.0026246717
    %v1341 = vmul.f32 %v1305, 0.0026246717
    %v1342 = vmul.f32 %v1308, 0.0026246717
    %v1343 = vmul.f32 %v1310, 0.0026246717
    %v1344 = vpack.c.bf16 %v1312, %v1312
    %v1345 = vpack.c.bf16 %v1313, %v1313
    %v1346 = vpack.c.bf16 %v1314, %v1314
    %v1347 = vpack.c.bf16 %v1315, %v1315
    %v1348 = vpack.c.bf16 %v1316, %v1316
    %v1349 = vpack.c.bf16 %v1317, %v1317
    %v1350 = vpack.c.bf16 %v1318, %v1318
    %v1351 = vpack.c.bf16 %v1319, %v1319
    %v1352 = vpack.c.bf16 %v1320, %v1320
    %v1353 = vpack.c.bf16 %v1321, %v1321
    %v1354 = vpack.c.bf16 %v1322, %v1322
    %v1355 = vpack.c.bf16 %v1323, %v1323
    %v1356 = vpack.c.bf16 %v1324, %v1324
    %v1357 = vpack.c.bf16 %v1325, %v1325
    %v1358 = vpack.c.bf16 %v1326, %v1326
    %v1359 = vpack.c.bf16 %v1327, %v1327
    %v1360 = vpack.c.bf16 %v1328, %v1328
    %v1361 = vpack.c.bf16 %v1329, %v1329
    %v1362 = vpack.c.bf16 %v1330, %v1330
    %v1363 = vpack.c.bf16 %v1331, %v1331
    %v1364 = vpack.c.bf16 %v1332, %v1332
    %v1365 = vpack.c.bf16 %v1333, %v1333
    %v1366 = vpack.c.bf16 %v1334, %v1334
    %v1367 = vpack.c.bf16 %v1335, %v1335
    %v1368 = vpack.c.bf16 %v1336, %v1336
    %v1369 = vpack.c.bf16 %v1337, %v1337
    %v1370 = vpack.c.bf16 %v1338, %v1338
    %v1371 = vpack.c.bf16 %v1339, %v1339
    %v1372 = vpack.c.bf16 %v1340, %v1340
    %v1373 = vpack.c.bf16 %v1341, %v1341
    %v1374 = vpack.c.bf16 %v1342, %v1342
    %v1375 = vpack.c.bf16 %v1343, %v1343
    %1376 = vst [vmem:[#allocation4] sm:$0xf] %v1344
    %1377 = vst [vmem:[#allocation4 + $0x4] sm:$0xf] %v1345
    %1378 = vst [vmem:[#allocation4 + $0x8] sm:$0xf] %v1346
    %1379 = vst [vmem:[#allocation4 + $0xc] sm:$0xf] %v1347
    %1380 = vst [vmem:[#allocation4 + $0x10] sm:$0xf] %v1348
    %1381 = vst [vmem:[#allocation4 + $0x14] sm:$0xf] %v1349
    %1382 = vst [vmem:[#allocation4 + $0x18] sm:$0xf] %v1350
    %1383 = vst [vmem:[#allocation4 + $0x1c] sm:$0xf] %v1351
    %1384 = vst [vmem:[#allocation4 + $0x20] sm:$0xf] %v1352
    %1385 = vst [vmem:[#allocation4 + $0x24] sm:$0xf] %v1353
    %1386 = vst [vmem:[#allocation4 + $0x28] sm:$0xf] %v1354
    %1387 = vst [vmem:[#allocation4 + $0x2c] sm:$0xf] %v1355
    %1388 = vst [vmem:[#allocation4 + $0x30] sm:$0xf] %v1356
    %1389 = vst [vmem:[#allocation4 + $0x34] sm:$0xf] %v1357
    %1390 = vst [vmem:[#allocation4 + $0x38] sm:$0xf] %v1358
    %1391 = vst [vmem:[#allocation4 + $0x3c] sm:$0xf] %v1359
    %1392 = vst [vmem:[#allocation4 + $0x40] sm:$0xf] %v1360
    %1393 = vst [vmem:[#allocation4 + $0x44] sm:$0xf] %v1361
    %1394 = vst [vmem:[#allocation4 + $0x48] sm:$0xf] %v1362
    %1395 = vst [vmem:[#allocation4 + $0x4c] sm:$0xf] %v1363
    %1396 = vst [vmem:[#allocation4 + $0x50] sm:$0xf] %v1364
    %1397 = vst [vmem:[#allocation4 + $0x54] sm:$0xf] %v1365
    %1398 = vst [vmem:[#allocation4 + $0x58] sm:$0xf] %v1366
    %1399 = vst [vmem:[#allocation4 + $0x5c] sm:$0xf] %v1367
    %1400 = vst [vmem:[#allocation4 + $0x60] sm:$0xf] %v1368
    %1401 = vst [vmem:[#allocation4 + $0x64] sm:$0xf] %v1369
    %1402 = vst [vmem:[#allocation4 + $0x68] sm:$0xf] %v1370
    %1403 = vst [vmem:[#allocation4 + $0x6c] sm:$0xf] %v1371
    %1404 = vst [vmem:[#allocation4 + $0x70] sm:$0xf] %v1372
    %1405 = vst [vmem:[#allocation4 + $0x74] sm:$0xf] %v1373
    %1406 = vst [vmem:[#allocation4 + $0x78] sm:$0xf] %v1374
    %1407 = vst [vmem:[#allocation4 + $0x7c] sm:$0xf] %v1375
    %v1408 = vld [vmem:[%s11] sm:$0x1]
    %v1410 = vperm.slane %v1408, 0
    %v1412 = vld [vmem:[%s12] sm:$0x1]
    %v1414 = vperm.slane %v1412, 0
    %v1416 = vld [vmem:[%s13] sm:$0x1]
    %v1418 = vperm.slane %v1416, 0
    loop: start=0, step=1, limit=2
    $region166: #{tpu_custom_call.1} parent=1 // loop_pre_header
      _
    $region167: #{tpu_custom_call.1} parent=1 // loop_header
      %s1421 = sphi 0, %s1425
      %p1422 = scmp.ge.s32.totalorder %s1421, 2
    $region168: #{tpu_custom_call.1} parent=1 // loop_header_branch
      %1424 = sbr.rel (%p1422) target = $region172
    $region169: #{tpu_custom_call.1} parent=1 // loop_body
      %p1426 = scmp.lt.s32.totalorder %s1421, 0
      %s1427 = ssub.s32 0, %s1421
      %s1428 = scalar_select %p1426, %s1427, %s1421
      %s1429 = sand.u32 %s1428, 1
      %s1430 = ssub.s32 0, %s1429
      %s1431 = scalar_select %p1426, %s1430, %s1429
      %p1432 = scmp.ne.s32.totalorder %s1431, 0
      %p1433 = scmp.lt.s32.totalorder %s1431, 0
      %p1434 = pnand %p1433, %p1432
      %p1435 = pneg %p1434
      %s1436 = sadd.s32 %s1431, 2
      %s1437 = scalar_select %p1435, %s1436, %s1431
      %s1438 = sadd.s32 %s1421, 1
      %p1439 = scmp.lt.s32.totalorder %s1438, 2
      // Predicated region
      $region173: #{tpu_custom_call.1} parent=169 // pred_check
        %p1440 = pneg %p1439
      $region174: #{tpu_custom_call.1} parent=169 // pred_check_branch
        %1442 = sbr.rel (%p1440) target = $region176
      $region175: #{tpu_custom_call.1} parent=169 // pred_region
        %s1443 = ssub.s32 1, %s1437
        %s1444 = smul.u32 %s1438, 128
        %s1445 = sld [smem:[#allocation9 + %s1438]]
        %s1446 = sshra.s32 %s1445, 7
        %s1447 = sand.u32 %s1445, 127
        %s1448 = sshra.s32 %s1444, 5
        %s1449 = sand.u32 %s1444, 31
        %s1450 = smul.u32 %s1448, 2
        %s1451 = sadd.s32 %s1446, %s1450
        %s1452 = smul.addr %s1451, 8
        %s1453 = scalar_lea.vmem %s1, %s1452
        %s1454 = smul.u32 %s1443, 8
        %s1455 = smul.addr %s1454, 8
        %s1456 = scalar_lea.vmem [#allocation5], %s1455
        %s1457 = scalar_lea.sflag [#allocation7], %s1443
        // Predicated region
        $region177: #{tpu_custom_call.1} parent=175 // pred_check
          _
        $region178: #{tpu_custom_call.1} parent=175 // pred_check_branch
          %1459 = sbr.rel (0) target = $region180
        $region179: #{tpu_custom_call.1} parent=175 // pred_region
          loop: start=0, step=1, limit=1
          $region181: #{tpu_custom_call.1} parent=179 // loop_pre_header
            _
          $region182: #{tpu_custom_call.1} parent=179 // loop_header
            %s1461 = sphi 0, %s1465
            %p1462 = scmp.ge.s32.totalorder %s1461, 1
            %s1466 = sphi %s1453, %s1453
            %s1467 = sphi %s1456, %s1456
          $region183: #{tpu_custom_call.1} parent=179 // loop_header_branch
            %1464 = sbr.rel (%p1462) target = $region187
          $region184: #{tpu_custom_call.1} parent=179 // loop_body
            %v1468 = vld [vmem:[%s1466] sm:$0xff]
            %1469 = vst [vmem:[%s1467] sm:$0xff] %v1468
            %v1470 = vld [vmem:[%s1466 + $0x8] sm:$0xff]
            %1471 = vst [vmem:[%s1467 + $0x8] sm:$0xff] %v1470
            %v1472 = vld [vmem:[%s1466 + $0x10] sm:$0xff]
            %1473 = vst [vmem:[%s1467 + $0x10] sm:$0xff] %v1472
            %v1474 = vld [vmem:[%s1466 + $0x18] sm:$0xff]
            %1475 = vst [vmem:[%s1467 + $0x18] sm:$0xff] %v1474
            %v1476 = vld [vmem:[%s1466 + $0x20] sm:$0xff]
            %1477 = vst [vmem:[%s1467 + $0x20] sm:$0xff] %v1476
            %v1478 = vld [vmem:[%s1466 + $0x28] sm:$0xff]
            %1479 = vst [vmem:[%s1467 + $0x28] sm:$0xff] %v1478
            %v1480 = vld [vmem:[%s1466 + $0x30] sm:$0xff]
            %1481 = vst [vmem:[%s1467 + $0x30] sm:$0xff] %v1480
            %v1482 = vld [vmem:[%s1466 + $0x38] sm:$0xff]
            %1483 = vst [vmem:[%s1467 + $0x38] sm:$0xff] %v1482
          $region185: #{tpu_custom_call.1} parent=179 // loop_footer
            %s1465 = sadd.s32 1, %s1461
          $region186: #{tpu_custom_call.1} parent=179 // loop_footer_branch
            %1460 = sbr.rel target = $region182
          $region187: #{tpu_custom_call.1} parent=179 // loop_exit
            _
        $region180: #{tpu_custom_call.1} parent=175 // pred_fallthru
          _
        // Predicated region
        $region188: #{tpu_custom_call.1} parent=175 // pred_check
          _
        $region189: #{tpu_custom_call.1} parent=175 // pred_check_branch
          %1485 = sbr.rel target = $region191
        $region190: #{tpu_custom_call.1} parent=175 // pred_region
          _
        $region191: #{tpu_custom_call.1} parent=175 // pred_fallthru
          _
        // Predicated region
        $region192: #{tpu_custom_call.1} parent=175 // pred_check
          _
        $region193: #{tpu_custom_call.1} parent=175 // pred_check_branch
          %1488 = sbr.rel (0) target = $region195
        $region194: #{tpu_custom_call.1} parent=175 // pred_region
          %1489 = vsyncadd %s1457, 1024
        $region195: #{tpu_custom_call.1} parent=175 // pred_fallthru
          _
      $region176: #{tpu_custom_call.1} parent=169 // pred_fallthru
        _
      %s1490 = smul.u32 %s1421, 128
      %s1491 = sld [smem:[#allocation9 + %s1421]]
      %s1492 = smul.u32 %s1437, 8
      %s1493 = smul.addr %s1492, 8
      %s1494 = scalar_lea.vmem [#allocation5], %s1493
      %s1495 = scalar_lea.sflag [#allocation7], %s1437
      %s1496 = smul.u32 2, 16
      %s1497 = smul.u32 %s1496, 2
      %s1498 = sshll.u32 %s1497, 4
      %1499 = dma.done %s1495, %s1498
      %s1500 = sld [smem:[#allocation9 + %s1421]]
      %v1501 = vld [vmem:[%s1494] sm:$0xff]
      %v1502 = vld [vmem:[%s1494 + $0x8] sm:$0xff]
      %v1503 = vld [vmem:[%s1494 + $0x10] sm:$0xff]
      %v1504 = vld [vmem:[%s1494 + $0x18] sm:$0xff]
      %v1505 = vld [vmem:[%s1494 + $0x20] sm:$0xff]
      %v1506 = vld [vmem:[%s1494 + $0x28] sm:$0xff]
      %v1507 = vld [vmem:[%s1494 + $0x30] sm:$0xff]
      %v1508 = vld [vmem:[%s1494 + $0x38] sm:$0xff]
      %v1509 = vunpack.c.0.s8 %v1501
      %v1510 = vunpack.c.0.s8 %v1502
      %v1511 = vunpack.c.1.s8 %v1501
      %v1512 = vunpack.c.1.s8 %v1502
      %v1513 = vunpack.c.2.s8 %v1501
      %v1514 = vunpack.c.2.s8 %v1502
      %v1515 = vunpack.c.3.s8 %v1501
      %v1516 = vunpack.c.3.s8 %v1502
      %v1517 = vunpack.c.0.s8 %v1503
      %v1518 = vunpack.c.0.s8 %v1504
      %v1519 = vunpack.c.1.s8 %v1503
      %v1520 = vunpack.c.1.s8 %v1504
      %v1521 = vunpack.c.2.s8 %v1503
      %v1522 = vunpack.c.2.s8 %v1504
      %v1523 = vunpack.c.3.s8 %v1503
      %v1524 = vunpack.c.3.s8 %v1504
      %v1525 = vunpack.c.0.s8 %v1505
      %v1526 = vunpack.c.0.s8 %v1506
      %v1527 = vunpack.c.1.s8 %v1505
      %v1528 = vunpack.c.1.s8 %v1506
      %v1529 = vunpack.c.2.s8 %v1505
      %v1530 = vunpack.c.2.s8 %v1506
      %v1531 = vunpack.c.3.s8 %v1505
      %v1532 = vunpack.c.3.s8 %v1506
      %v1533 = vunpack.c.0.s8 %v1507
      %v1534 = vunpack.c.0.s8 %v1508
      %v1535 = vunpack.c.1.s8 %v1507
      %v1536 = vunpack.c.1.s8 %v1508
      %v1537 = vunpack.c.2.s8 %v1507
      %v1538 = vunpack.c.2.s8 %v1508
      %v1539 = vunpack.c.3.s8 %v1507
      %v1540 = vunpack.c.3.s8 %v1508
      %v1541 = vcvt.s32.f32 %v1509
      %v1542 = vcvt.s32.f32 %v1510
      %v1543 = vcvt.s32.f32 %v1511
      %v1544 = vcvt.s32.f32 %v1512
      %v1545 = vcvt.s32.f32 %v1513
      %v1546 = vcvt.s32.f32 %v1514
      %v1547 = vcvt.s32.f32 %v1515
      %v1548 = vcvt.s32.f32 %v1516
      %v1549 = vcvt.s32.f32 %v1517
      %v1550 = vcvt.s32.f32 %v1518
      %v1551 = vcvt.s32.f32 %v1519
      %v1552 = vcvt.s32.f32 %v1520
      %v1553 = vcvt.s32.f32 %v1521
      %v1554 = vcvt.s32.f32 %v1522
      %v1555 = vcvt.s32.f32 %v1523
      %v1556 = vcvt.s32.f32 %v1524
      %v1557 = vcvt.s32.f32 %v1525
      %v1558 = vcvt.s32.f32 %v1526
      %v1559 = vcvt.s32.f32 %v1527
      %v1560 = vcvt.s32.f32 %v1528
      %v1561 = vcvt.s32.f32 %v1529
      %v1562 = vcvt.s32.f32 %v1530
      %v1563 = vcvt.s32.f32 %v1531
      %v1564 = vcvt.s32.f32 %v1532
      %v1565 = vcvt.s32.f32 %v1533
      %v1566 = vcvt.s32.f32 %v1534
      %v1567 = vcvt.s32.f32 %v1535
      %v1568 = vcvt.s32.f32 %v1536
      %v1569 = vcvt.s32.f32 %v1537
      %v1570 = vcvt.s32.f32 %v1538
      %v1571 = vcvt.s32.f32 %v1539
      %v1572 = vcvt.s32.f32 %v1540
      %v1573 = vpack.c.bf16 %v1543, %v1541
      %v1574 = vpack.c.bf16 %v1544, %v1542
      %v1575 = vpack.c.bf16 %v1547, %v1545
      %v1576 = vpack.c.bf16 %v1548, %v1546
      %v1577 = vpack.c.bf16 %v1551, %v1549
      %v1578 = vpack.c.bf16 %v1552, %v1550
      %v1579 = vpack.c.bf16 %v1555, %v1553
      %v1580 = vpack.c.bf16 %v1556, %v1554
      %v1581 = vpack.c.bf16 %v1559, %v1557
      %v1582 = vpack.c.bf16 %v1560, %v1558
      %v1583 = vpack.c.bf16 %v1563, %v1561
      %v1584 = vpack.c.bf16 %v1564, %v1562
      %v1585 = vpack.c.bf16 %v1567, %v1565
      %v1586 = vpack.c.bf16 %v1568, %v1566
      %v1587 = vpack.c.bf16 %v1571, %v1569
      %v1588 = vpack.c.bf16 %v1572, %v1570
      %s1589 = sshra.s32 %s1500, 3
      %s1590 = sand.u32 %s1500, 7
      %s1591 = smul.addr %s1589, 4
      %s1592 = scalar_lea.vmem [#allocation4], %s1591
      %v1593 = vld [vmem:[%s1592] sm:$0xf]
      %v1594 = vld [vmem:[%s1592 + $0x4] sm:$0xf]
      %v1595 = vld [vmem:[%s1592 + $0x8] sm:$0xf]
      %v1596 = vld [vmem:[%s1592 + $0xc] sm:$0xf]
      %v1597 = vld [vmem:[%s1592 + $0x10] sm:$0xf]
      %v1598 = vld [vmem:[%s1592 + $0x14] sm:$0xf]
      %v1599 = vld [vmem:[%s1592 + $0x18] sm:$0xf]
      %v1600 = vld [vmem:[%s1592 + $0x1c] sm:$0xf]
      %v1601 = vld [vmem:[%s1592 + $0x20] sm:$0xf]
      %v1602 = vld [vmem:[%s1592 + $0x24] sm:$0xf]
      %v1603 = vld [vmem:[%s1592 + $0x28] sm:$0xf]
      %v1604 = vld [vmem:[%s1592 + $0x2c] sm:$0xf]
      %v1605 = vld [vmem:[%s1592 + $0x30] sm:$0xf]
      %v1606 = vld [vmem:[%s1592 + $0x34] sm:$0xf]
      %v1607 = vld [vmem:[%s1592 + $0x38] sm:$0xf]
      %v1608 = vld [vmem:[%s1592 + $0x3c] sm:$0xf]
      %v1609 = vld [vmem:[%s1592 + $0x40] sm:$0xf]
      %v1610 = vld [vmem:[%s1592 + $0x44] sm:$0xf]
      %v1611 = vld [vmem:[%s1592 + $0x48] sm:$0xf]
      %v1612 = vld [vmem:[%s1592 + $0x4c] sm:$0xf]
      %v1613 = vld [vmem:[%s1592 + $0x50] sm:$0xf]
      %v1614 = vld [vmem:[%s1592 + $0x54] sm:$0xf]
      %v1615 = vld [vmem:[%s1592 + $0x58] sm:$0xf]
      %v1616 = vld [vmem:[%s1592 + $0x5c] sm:$0xf]
      %v1617 = vld [vmem:[%s1592 + $0x60] sm:$0xf]
      %v1618 = vld [vmem:[%s1592 + $0x64] sm:$0xf]
      %v1619 = vld [vmem:[%s1592 + $0x68] sm:$0xf]
      %v1620 = vld [vmem:[%s1592 + $0x6c] sm:$0xf]
      %v1621 = vld [vmem:[%s1592 + $0x70] sm:$0xf]
      %v1622 = vld [vmem:[%s1592 + $0x74] sm:$0xf]
      %v1623 = vld [vmem:[%s1592 + $0x78] sm:$0xf]
      %v1624 = vld [vmem:[%s1592 + $0x7c] sm:$0xf]
      %v1657 = vunpack.c.l.b16 %v1593
      %v1658 = vunpack.c.l.b16 %v1594
      %v1659 = vunpack.c.l.b16 %v1595
      %v1660 = vunpack.c.l.b16 %v1596
      %v1661 = vunpack.c.l.b16 %v1597
      %v1662 = vunpack.c.l.b16 %v1598
      %v1663 = vunpack.c.l.b16 %v1599
      %v1664 = vunpack.c.l.b16 %v1600
      %v1665 = vunpack.c.l.b16 %v1601
      %v1666 = vunpack.c.l.b16 %v1602
      %v1667 = vunpack.c.l.b16 %v1603
      %v1668 = vunpack.c.l.b16 %v1604
      %v1669 = vunpack.c.l.b16 %v1605
      %v1670 = vunpack.c.l.b16 %v1606
      %v1671 = vunpack.c.l.b16 %v1607
      %v1672 = vunpack.c.l.b16 %v1608
      %v1673 = vunpack.c.l.b16 %v1609
      %v1674 = vunpack.c.l.b16 %v1610
      %v1675 = vunpack.c.l.b16 %v1611
      %v1676 = vunpack.c.l.b16 %v1612
      %v1677 = vunpack.c.l.b16 %v1613
      %v1678 = vunpack.c.l.b16 %v1614
      %v1679 = vunpack.c.l.b16 %v1615
      %v1680 = vunpack.c.l.b16 %v1616
      %v1681 = vunpack.c.l.b16 %v1617
      %v1682 = vunpack.c.l.b16 %v1618
      %v1683 = vunpack.c.l.b16 %v1619
      %v1684 = vunpack.c.l.b16 %v1620
      %v1685 = vunpack.c.l.b16 %v1621
      %v1686 = vunpack.c.l.b16 %v1622
      %v1687 = vunpack.c.l.b16 %v1623
      %v1688 = vunpack.c.l.b16 %v1624
      %v1689 = vpack.c.b16 %v1658, %v1657
      %v1690 = vpack.c.b16 %v1660, %v1659
      %v1691 = vpack.c.b16 %v1662, %v1661
      %v1692 = vpack.c.b16 %v1664, %v1663
      %v1693 = vpack.c.b16 %v1666, %v1665
      %v1694 = vpack.c.b16 %v1668, %v1667
      %v1695 = vpack.c.b16 %v1670, %v1669
      %v1696 = vpack.c.b16 %v1672, %v1671
      %v1697 = vpack.c.b16 %v1674, %v1673
      %v1698 = vpack.c.b16 %v1676, %v1675
      %v1699 = vpack.c.b16 %v1678, %v1677
      %v1700 = vpack.c.b16 %v1680, %v1679
      %v1701 = vpack.c.b16 %v1682, %v1681
      %v1702 = vpack.c.b16 %v1684, %v1683
      %v1703 = vpack.c.b16 %v1686, %v1685
      %v1704 = vpack.c.b16 %v1688, %v1687
      %1721 = vmatpush.bf16.msra.mxu0 %v1696
      %1722 = vmatpush.bf16.msra.mxu0 %v1695
      %1723 = vmatpush.bf16.msra.mxu0 %v1694
      %1724 = vmatpush.bf16.msra.mxu0 %v1693
      %1725 = vmatpush.bf16.msra.mxu0 %v1692
      %1726 = vmatpush.bf16.msra.mxu0 %v1691
      %1727 = vmatpush.bf16.msra.mxu0 %v1690
      %1728 = vmatpush.bf16.msra.mxu0 %v1689
      %1729 = vmatmul.bf16.gmra.mxu0 %v1573
      %v1730 = vpop.f32.mrf.mxu0
      %v1731 = vadd.f32 %v1410, %v1730
      %v1732 = vpop.f32.mrf.mxu0
      %v1733 = vadd.f32 %v1410, %v1732
      %1734 = vmatmul.bf16.gmra.mxu0 %v1575
      %v1735 = vpop.f32.mrf.mxu0
      %v1736 = vadd.f32 %v1410, %v1735
      %v1737 = vpop.f32.mrf.mxu0
      %v1738 = vadd.f32 %v1410, %v1737
      %1739 = vmatmul.bf16.gmra.mxu0 %v1577
      %v1740 = vpop.f32.mrf.mxu0
      %v1741 = vadd.f32 %v1410, %v1740
      %v1742 = vpop.f32.mrf.mxu0
      %v1743 = vadd.f32 %v1410, %v1742
      %1744 = vmatmul.bf16.gmra.mxu0 %v1579
      %v1745 = vpop.f32.mrf.mxu0
      %v1746 = vadd.f32 %v1410, %v1745
      %v1747 = vpop.f32.mrf.mxu0
      %v1748 = vadd.f32 %v1410, %v1747
      %1749 = vmatmul.bf16.gmra.mxu0 %v1581
      %v1750 = vpop.f32.mrf.mxu0
      %v1751 = vadd.f32 %v1410, %v1750
      %v1752 = vpop.f32.mrf.mxu0
      %v1753 = vadd.f32 %v1410, %v1752
      %1754 = vmatmul.bf16.gmra.mxu0 %v1583
      %v1755 = vpop.f32.mrf.mxu0
      %v1756 = vadd.f32 %v1410, %v1755
      %v1757 = vpop.f32.mrf.mxu0
      %v1758 = vadd.f32 %v1410, %v1757
      %1759 = vmatmul.bf16.gmra.mxu0 %v1585
      %v1760 = vpop.f32.mrf.mxu0
      %v1761 = vadd.f32 %v1410, %v1760
      %v1762 = vpop.f32.mrf.mxu0
      %v1763 = vadd.f32 %v1410, %v1762
      %1764 = vmatmul.bf16.gmra.mxu0 %v1587
      %v1765 = vpop.f32.mrf.mxu0
      %v1766 = vadd.f32 %v1410, %v1765
      %v1767 = vpop.f32.mrf.mxu0
      %v1768 = vadd.f32 %v1410, %v1767
      %1769 = vdwg.mxu0
      %1770 = vmatpush.bf16.msra.mxu0 %v1704
      %1771 = vmatpush.bf16.msra.mxu0 %v1703
      %1772 = vmatpush.bf16.msra.mxu0 %v1702
      %1773 = vmatpush.bf16.msra.mxu0 %v1701
      %1774 = vmatpush.bf16.msra.mxu0 %v1700
      %1775 = vmatpush.bf16.msra.mxu0 %v1699
      %1776 = vmatpush.bf16.msra.mxu0 %v1698
      %1777 = vmatpush.bf16.msra.mxu0 %v1697
      %1778 = vmatmul.bf16.gmra.mxu0 %v1574
      %v1779 = vpop.f32.mrf.mxu0
      %v1780 = vadd.f32 %v1731, %v1779
      %v1781 = vpop.f32.mrf.mxu0
      %v1782 = vadd.f32 %v1733, %v1781
      %1783 = vmatmul.bf16.gmra.mxu0 %v1576
      %v1784 = vpop.f32.mrf.mxu0
      %v1785 = vadd.f32 %v1736, %v1784
      %v1786 = vpop.f32.mrf.mxu0
      %v1787 = vadd.f32 %v1738, %v1786
      %1788 = vmatmul.bf16.gmra.mxu0 %v1578
      %v1789 = vpop.f32.mrf.mxu0
      %v1790 = vadd.f32 %v1741, %v1789
      %v1791 = vpop.f32.mrf.mxu0
      %v1792 = vadd.f32 %v1743, %v1791
      %1793 = vmatmul.bf16.gmra.mxu0 %v1580
      %v1794 = vpop.f32.mrf.mxu0
      %v1795 = vadd.f32 %v1746, %v1794
      %v1796 = vpop.f32.mrf.mxu0
      %v1797 = vadd.f32 %v1748, %v1796
      %1798 = vmatmul.bf16.gmra.mxu0 %v1582
      %v1799 = vpop.f32.mrf.mxu0
      %v1800 = vadd.f32 %v1751, %v1799
      %v1801 = vpop.f32.mrf.mxu0
      %v1802 = vadd.f32 %v1753, %v1801
      %1803 = vmatmul.bf16.gmra.mxu0 %v1584
      %v1804 = vpop.f32.mrf.mxu0
      %v1805 = vadd.f32 %v1756, %v1804
      %v1806 = vpop.f32.mrf.mxu0
      %v1807 = vadd.f32 %v1758, %v1806
      %1808 = vmatmul.bf16.gmra.mxu0 %v1586
      %v1809 = vpop.f32.mrf.mxu0
      %v1810 = vadd.f32 %v1761, %v1809
      %v1811 = vpop.f32.mrf.mxu0
      %v1812 = vadd.f32 %v1763, %v1811
      %1813 = vmatmul.bf16.gmra.mxu0 %v1588
      %v1814 = vpop.f32.mrf.mxu0
      %v1815 = vadd.f32 %v1766, %v1814
      %v1816 = vpop.f32.mrf.mxu0
      %v1817 = vadd.f32 %v1768, %v1816
      %1818 = vdwg.mxu0
      %v1819 = vmax.f32 %v1780, 0.0
      %v1820 = vmax.f32 %v1782, 0.0
      %v1821 = vmax.f32 %v1785, 0.0
      %v1822 = vmax.f32 %v1787, 0.0
      %v1823 = vmax.f32 %v1790, 0.0
      %v1824 = vmax.f32 %v1792, 0.0
      %v1825 = vmax.f32 %v1795, 0.0
      %v1826 = vmax.f32 %v1797, 0.0
      %v1827 = vmax.f32 %v1800, 0.0
      %v1828 = vmax.f32 %v1802, 0.0
      %v1829 = vmax.f32 %v1805, 0.0
      %v1830 = vmax.f32 %v1807, 0.0
      %v1831 = vmax.f32 %v1810, 0.0
      %v1832 = vmax.f32 %v1812, 0.0
      %v1833 = vmax.f32 %v1815, 0.0
      %v1834 = vmax.f32 %v1817, 0.0
      %v1835 = vmul.f32 %v1819, %v1414
      %v1836 = vmul.f32 %v1820, %v1414
      %v1837 = vmul.f32 %v1821, %v1414
      %v1838 = vmul.f32 %v1822, %v1414
      %v1839 = vmul.f32 %v1823, %v1414
      %v1840 = vmul.f32 %v1824, %v1414
      %v1841 = vmul.f32 %v1825, %v1414
      %v1842 = vmul.f32 %v1826, %v1414
      %v1843 = vmul.f32 %v1827, %v1414
      %v1844 = vmul.f32 %v1828, %v1414
      %v1845 = vmul.f32 %v1829, %v1414
      %v1846 = vmul.f32 %v1830, %v1414
      %v1847 = vmul.f32 %v1831, %v1414
      %v1848 = vmul.f32 %v1832, %v1414
      %v1849 = vmul.f32 %v1833, %v1414
      %v1850 = vmul.f32 %v1834, %v1414
      %v1851 = vadd.f32 %v1835, %v1418
      %v1852 = vadd.f32 %v1836, %v1418
      %v1853 = vadd.f32 %v1837, %v1418
      %v1854 = vadd.f32 %v1838, %v1418
      %v1855 = vadd.f32 %v1839, %v1418
      %v1856 = vadd.f32 %v1840, %v1418
      %v1857 = vadd.f32 %v1841, %v1418
      %v1858 = vadd.f32 %v1842, %v1418
      %v1859 = vadd.f32 %v1843, %v1418
      %v1860 = vadd.f32 %v1844, %v1418
      %v1861 = vadd.f32 %v1845, %v1418
      %v1862 = vadd.f32 %v1846, %v1418
      %v1863 = vadd.f32 %v1847, %v1418
      %v1864 = vadd.f32 %v1848, %v1418
      %v1865 = vadd.f32 %v1849, %v1418
      %v1866 = vadd.f32 %v1850, %v1418
      %s1867 = scalar_lea.vmem [#allocation2], %s1490
      %v1868 = vld [vmem:[%s1867] sm:$0xff]
      %v1869 = vld [vmem:[%s1867 + $0x8] sm:$0xff]
      %v1870 = vld [vmem:[%s1867 + $0x10] sm:$0xff]
      %v1871 = vld [vmem:[%s1867 + $0x18] sm:$0xff]
      %v1872 = vld [vmem:[%s1867 + $0x20] sm:$0xff]
      %v1873 = vld [vmem:[%s1867 + $0x28] sm:$0xff]
      %v1874 = vld [vmem:[%s1867 + $0x30] sm:$0xff]
      %v1875 = vld [vmem:[%s1867 + $0x38] sm:$0xff]
      %v1876 = vld [vmem:[%s1867 + $0x40] sm:$0xff]
      %v1877 = vld [vmem:[%s1867 + $0x48] sm:$0xff]
      %v1878 = vld [vmem:[%s1867 + $0x50] sm:$0xff]
      %v1879 = vld [vmem:[%s1867 + $0x58] sm:$0xff]
      %v1880 = vld [vmem:[%s1867 + $0x60] sm:$0xff]
      %v1881 = vld [vmem:[%s1867 + $0x68] sm:$0xff]
      %v1882 = vld [vmem:[%s1867 + $0x70] sm:$0xff]
      %v1883 = vld [vmem:[%s1867 + $0x78] sm:$0xff]
      %v1884 = vadd.f32 %v1851, %v1868
      %v1885 = vadd.f32 %v1852, %v1869
      %v1886 = vadd.f32 %v1853, %v1870
      %v1887 = vadd.f32 %v1854, %v1871
      %v1888 = vadd.f32 %v1855, %v1872
      %v1889 = vadd.f32 %v1856, %v1873
      %v1890 = vadd.f32 %v1857, %v1874
      %v1891 = vadd.f32 %v1858, %v1875
      %v1892 = vadd.f32 %v1859, %v1876
      %v1893 = vadd.f32 %v1860, %v1877
      %v1894 = vadd.f32 %v1861, %v1878
      %v1895 = vadd.f32 %v1862, %v1879
      %v1896 = vadd.f32 %v1863, %v1880
      %v1897 = vadd.f32 %v1864, %v1881
      %v1898 = vadd.f32 %v1865, %v1882
      %v1899 = vadd.f32 %v1866, %v1883
      %1900 = vst [vmem:[%s1867] sm:$0xff] %v1884
      %1901 = vst [vmem:[%s1867 + $0x8] sm:$0xff] %v1885
      %1902 = vst [vmem:[%s1867 + $0x10] sm:$0xff] %v1886
      %1903 = vst [vmem:[%s1867 + $0x18] sm:$0xff] %v1887
      %1904 = vst [vmem:[%s1867 + $0x20] sm:$0xff] %v1888
      %1905 = vst [vmem:[%s1867 + $0x28] sm:$0xff] %v1889
      %1906 = vst [vmem:[%s1867 + $0x30] sm:$0xff] %v1890
      %1907 = vst [vmem:[%s1867 + $0x38] sm:$0xff] %v1891
      %1908 = vst [vmem:[%s1867 + $0x40] sm:$0xff] %v1892
      %1909 = vst [vmem:[%s1867 + $0x48] sm:$0xff] %v1893
      %1910 = vst [vmem:[%s1867 + $0x50] sm:$0xff] %v1894
      %1911 = vst [vmem:[%s1867 + $0x58] sm:$0xff] %v1895
      %1912 = vst [vmem:[%s1867 + $0x60] sm:$0xff] %v1896
      %1913 = vst [vmem:[%s1867 + $0x68] sm:$0xff] %v1897
      %1914 = vst [vmem:[%s1867 + $0x70] sm:$0xff] %v1898
      %1915 = vst [vmem:[%s1867 + $0x78] sm:$0xff] %v1899
      %v1916 = vpack.c.bf16 %v1884, %v1884
      %v1917 = vpack.c.bf16 %v1885, %v1885
      %v1918 = vpack.c.bf16 %v1886, %v1886
      %v1919 = vpack.c.bf16 %v1887, %v1887
      %v1920 = vpack.c.bf16 %v1888, %v1888
      %v1921 = vpack.c.bf16 %v1889, %v1889
      %v1922 = vpack.c.bf16 %v1890, %v1890
      %v1923 = vpack.c.bf16 %v1891, %v1891
      %v1924 = vpack.c.bf16 %v1892, %v1892
      %v1925 = vpack.c.bf16 %v1893, %v1893
      %v1926 = vpack.c.bf16 %v1894, %v1894
      %v1927 = vpack.c.bf16 %v1895, %v1895
      %v1928 = vpack.c.bf16 %v1896, %v1896
      %v1929 = vpack.c.bf16 %v1897, %v1897
      %v1930 = vpack.c.bf16 %v1898, %v1898
      %v1931 = vpack.c.bf16 %v1899, %v1899
      %s1932 = sshra.s32 %s1490, 3
      %s1933 = sand.u32 %s1490, 7
      %s1934 = smul.addr %s1932, 4
      %s1935 = scalar_lea.vmem [#allocation3], %s1934
      %1936 = vst [vmem:[%s1935] sm:$0xf] %v1916
      %1937 = vst [vmem:[%s1935 + $0x4] sm:$0xf] %v1917
      %1938 = vst [vmem:[%s1935 + $0x8] sm:$0xf] %v1918
      %1939 = vst [vmem:[%s1935 + $0xc] sm:$0xf] %v1919
      %1940 = vst [vmem:[%s1935 + $0x10] sm:$0xf] %v1920
      %1941 = vst [vmem:[%s1935 + $0x14] sm:$0xf] %v1921
      %1942 = vst [vmem:[%s1935 + $0x18] sm:$0xf] %v1922
      %1943 = vst [vmem:[%s1935 + $0x1c] sm:$0xf] %v1923
      %1944 = vst [vmem:[%s1935 + $0x20] sm:$0xf] %v1924
      %1945 = vst [vmem:[%s1935 + $0x24] sm:$0xf] %v1925
      %1946 = vst [vmem:[%s1935 + $0x28] sm:$0xf] %v1926
      %1947 = vst [vmem:[%s1935 + $0x2c] sm:$0xf] %v1927
      %1948 = vst [vmem:[%s1935 + $0x30] sm:$0xf] %v1928
      %1949 = vst [vmem:[%s1935 + $0x34] sm:$0xf] %v1929
      %1950 = vst [vmem:[%s1935 + $0x38] sm:$0xf] %v1930
      %1951 = vst [vmem:[%s1935 + $0x3c] sm:$0xf] %v1931
    $region170: #{tpu_custom_call.1} parent=1 // loop_footer
      %s1425 = sadd.s32 1, %s1421
    $region171: #{tpu_custom_call.1} parent=1 // loop_footer_branch
      %1420 = sbr.rel target = $region167
    $region172: #{tpu_custom_call.1} parent=1 // loop_exit
      _
    %v1952 = vld [vmem:[#allocation3] sm:$0xf]
    %v1953 = vld [vmem:[#allocation3 + $0x4] sm:$0xf]
    %v1954 = vld [vmem:[#allocation3 + $0x8] sm:$0xf]
    %v1955 = vld [vmem:[#allocation3 + $0xc] sm:$0xf]
    %v1956 = vld [vmem:[#allocation3 + $0x10] sm:$0xf]
    %v1957 = vld [vmem:[#allocation3 + $0x14] sm:$0xf]
    %v1958 = vld [vmem:[#allocation3 + $0x18] sm:$0xf]
    %v1959 = vld [vmem:[#allocation3 + $0x1c] sm:$0xf]
    %v1960 = vld [vmem:[#allocation3 + $0x20] sm:$0xf]
    %v1961 = vld [vmem:[#allocation3 + $0x24] sm:$0xf]
    %v1962 = vld [vmem:[#allocation3 + $0x28] sm:$0xf]
    %v1963 = vld [vmem:[#allocation3 + $0x2c] sm:$0xf]
    %v1964 = vld [vmem:[#allocation3 + $0x30] sm:$0xf]
    %v1965 = vld [vmem:[#allocation3 + $0x34] sm:$0xf]
    %v1966 = vld [vmem:[#allocation3 + $0x38] sm:$0xf]
    %v1967 = vld [vmem:[#allocation3 + $0x3c] sm:$0xf]
    %v1968 = vld [vmem:[#allocation3 + $0x40] sm:$0xf]
    %v1969 = vld [vmem:[#allocation3 + $0x44] sm:$0xf]
    %v1970 = vld [vmem:[#allocation3 + $0x48] sm:$0xf]
    %v1971 = vld [vmem:[#allocation3 + $0x4c] sm:$0xf]
    %v1972 = vld [vmem:[#allocation3 + $0x50] sm:$0xf]
    %v1973 = vld [vmem:[#allocation3 + $0x54] sm:$0xf]
    %v1974 = vld [vmem:[#allocation3 + $0x58] sm:$0xf]
    %v1975 = vld [vmem:[#allocation3 + $0x5c] sm:$0xf]
    %v1976 = vld [vmem:[#allocation3 + $0x60] sm:$0xf]
    %v1977 = vld [vmem:[#allocation3 + $0x64] sm:$0xf]
    %v1978 = vld [vmem:[#allocation3 + $0x68] sm:$0xf]
    %v1979 = vld [vmem:[#allocation3 + $0x6c] sm:$0xf]
    %v1980 = vld [vmem:[#allocation3 + $0x70] sm:$0xf]
    %v1981 = vld [vmem:[#allocation3 + $0x74] sm:$0xf]
    %v1982 = vld [vmem:[#allocation3 + $0x78] sm:$0xf]
    %v1983 = vld [vmem:[#allocation3 + $0x7c] sm:$0xf]
    %s1984 = sld [smem:[#allocation9]]
    %s1985 = sshra.s32 %s1984, 7
    %s1986 = sand.u32 %s1984, 127
    %s1987 = smul.addr %s1985, 8
    %s1988 = scalar_lea.vmem %s1, %s1987
    // Predicated region
    $region196: #{tpu_custom_call.1} parent=1 // pred_check
      _
    $region197: #{tpu_custom_call.1} parent=1 // pred_check_branch
      %1990 = sbr.rel (0) target = $region199
    $region198: #{tpu_custom_call.1} parent=1 // pred_region
      loop: start=0, step=1, limit=1
      $region200: #{tpu_custom_call.1} parent=198 // loop_pre_header
        _
      $region201: #{tpu_custom_call.1} parent=198 // loop_header
        %s1992 = sphi 0, %s1996
        %p1993 = scmp.ge.s32.totalorder %s1992, 1
        %s1997 = sphi %s1988, %s1988
        %s1998 = sphi [#allocation5], [#allocation5]
      $region202: #{tpu_custom_call.1} parent=198 // loop_header_branch
        %1995 = sbr.rel (%p1993) target = $region206
      $region203: #{tpu_custom_call.1} parent=198 // loop_body
        %v1999 = vld [vmem:[%s1997] sm:$0xff]
        %2000 = vst [vmem:[%s1998] sm:$0xff] %v1999
        %v2001 = vld [vmem:[%s1997 + $0x8] sm:$0xff]
        %2002 = vst [vmem:[%s1998 + $0x8] sm:$0xff] %v2001
        %v2003 = vld [vmem:[%s1997 + $0x10] sm:$0xff]
        %2004 = vst [vmem:[%s1998 + $0x10] sm:$0xff] %v2003
        %v2005 = vld [vmem:[%s1997 + $0x18] sm:$0xff]
        %2006 = vst [vmem:[%s1998 + $0x18] sm:$0xff] %v2005
        %v2007 = vld [vmem:[%s1997 + $0x20] sm:$0xff]
        %2008 = vst [vmem:[%s1998 + $0x20] sm:$0xff] %v2007
        %v2009 = vld [vmem:[%s1997 + $0x28] sm:$0xff]
        %2010 = vst [vmem:[%s1998 + $0x28] sm:$0xff] %v2009
        %v2011 = vld [vmem:[%s1997 + $0x30] sm:$0xff]
        %2012 = vst [vmem:[%s1998 + $0x30] sm:$0xff] %v2011
        %v2013 = vld [vmem:[%s1997 + $0x38] sm:$0xff]
        %2014 = vst [vmem:[%s1998 + $0x38] sm:$0xff] %v2013
      $region204: #{tpu_custom_call.1} parent=198 // loop_footer
        %s1996 = sadd.s32 1, %s1992
      $region205: #{tpu_custom_call.1} parent=198 // loop_footer_branch
        %1991 = sbr.rel target = $region201
      $region206: #{tpu_custom_call.1} parent=198 // loop_exit
        _
    $region199: #{tpu_custom_call.1} parent=1 // pred_fallthru
      _
    // Predicated region
    $region207: #{tpu_custom_call.1} parent=1 // pred_check
      _
    $region208: #{tpu_custom_call.1} parent=1 // pred_check_branch
      %2016 = sbr.rel target = $region210
    $region209: #{tpu_custom_call.1} parent=1 // pred_region
      _
    $region210: #{tpu_custom_call.1} parent=1 // pred_fallthru
      _
    // Predicated region
    $region211: #{tpu_custom_call.1} parent=1 // pred_check
      _
    $region212: #{tpu_custom_call.1} parent=1 // pred_check_branch
      %2019 = sbr.rel (0) target = $region214
    $region213: #{tpu_custom_call.1} parent=1 // pred_region
      %2020 = vsyncadd [#allocation7], 1024
    $region214: #{tpu_custom_call.1} parent=1 // pred_fallthru
      _
    %v2021 = vld [vmem:[%s14] sm:$0xf]
    %v2022 = vld [vmem:[%s14 + $0x4] sm:$0xf]
    %v2023 = vld [vmem:[%s14 + $0x8] sm:$0xf]
    %v2024 = vld [vmem:[%s14 + $0xc] sm:$0xf]
    %v2025 = vld [vmem:[%s14 + $0x10] sm:$0xf]
    %v2026 = vld [vmem:[%s14 + $0x14] sm:$0xf]
    %v2027 = vld [vmem:[%s14 + $0x18] sm:$0xf]
    %v2028 = vld [vmem:[%s14 + $0x1c] sm:$0xf]
    %v2029 = vld [vmem:[%s14 + $0x20] sm:$0xf]
    %v2030 = vld [vmem:[%s14 + $0x24] sm:$0xf]
    %v2031 = vld [vmem:[%s14 + $0x28] sm:$0xf]
    %v2032 = vld [vmem:[%s14 + $0x2c] sm:$0xf]
    %v2033 = vld [vmem:[%s14 + $0x30] sm:$0xf]
    %v2034 = vld [vmem:[%s14 + $0x34] sm:$0xf]
    %v2035 = vld [vmem:[%s14 + $0x38] sm:$0xf]
    %v2036 = vld [vmem:[%s14 + $0x3c] sm:$0xf]
    %v2069 = vunpack.c.l.b16 %v1952
    %v2070 = vunpack.c.l.b16 %v1953
    %v2071 = vunpack.c.l.b16 %v1954
    %v2072 = vunpack.c.l.b16 %v1955
    %v2073 = vunpack.c.l.b16 %v1956
    %v2074 = vunpack.c.l.b16 %v1957
    %v2075 = vunpack.c.l.b16 %v1958
    %v2076 = vunpack.c.l.b16 %v1959
    %v2077 = vunpack.c.l.b16 %v1960
    %v2078 = vunpack.c.l.b16 %v1961
    %v2079 = vunpack.c.l.b16 %v1962
    %v2080 = vunpack.c.l.b16 %v1963
    %v2081 = vunpack.c.l.b16 %v1964
    %v2082 = vunpack.c.l.b16 %v1965
    %v2083 = vunpack.c.l.b16 %v1966
    %v2084 = vunpack.c.l.b16 %v1967
    %v2085 = vunpack.c.l.b16 %v1968
    %v2086 = vunpack.c.l.b16 %v1969
    %v2087 = vunpack.c.l.b16 %v1970
    %v2088 = vunpack.c.l.b16 %v1971
    %v2089 = vunpack.c.l.b16 %v1972
    %v2090 = vunpack.c.l.b16 %v1973
    %v2091 = vunpack.c.l.b16 %v1974
    %v2092 = vunpack.c.l.b16 %v1975
    %v2093 = vunpack.c.l.b16 %v1976
    %v2094 = vunpack.c.l.b16 %v1977
    %v2095 = vunpack.c.l.b16 %v1978
    %v2096 = vunpack.c.l.b16 %v1979
    %v2097 = vunpack.c.l.b16 %v1980
    %v2098 = vunpack.c.l.b16 %v1981
    %v2099 = vunpack.c.l.b16 %v1982
    %v2100 = vunpack.c.l.b16 %v1983
    %v2101 = vpack.c.b16 %v2070, %v2069
    %v2102 = vpack.c.b16 %v2072, %v2071
    %v2103 = vpack.c.b16 %v2074, %v2073
    %v2104 = vpack.c.b16 %v2076, %v2075
    %v2105 = vpack.c.b16 %v2078, %v2077
    %v2106 = vpack.c.b16 %v2080, %v2079
    %v2107 = vpack.c.b16 %v2082, %v2081
    %v2108 = vpack.c.b16 %v2084, %v2083
    %v2109 = vpack.c.b16 %v2086, %v2085
    %v2110 = vpack.c.b16 %v2088, %v2087
    %v2111 = vpack.c.b16 %v2090, %v2089
    %v2112 = vpack.c.b16 %v2092, %v2091
    %v2113 = vpack.c.b16 %v2094, %v2093
    %v2114 = vpack.c.b16 %v2096, %v2095
    %v2115 = vpack.c.b16 %v2098, %v2097
    %v2116 = vpack.c.b16 %v2100, %v2099
    %v2149 = vunpack.c.l.b16 %v2021
    %v2150 = vunpack.c.l.b16 %v2022
    %v2151 = vunpack.c.l.b16 %v2023
    %v2152 = vunpack.c.l.b16 %v2024
    %v2153 = vunpack.c.l.b16 %v2025
    %v2154 = vunpack.c.l.b16 %v2026
    %v2155 = vunpack.c.l.b16 %v2027
    %v2156 = vunpack.c.l.b16 %v2028
    %v2157 = vunpack.c.l.b16 %v2029
    %v2158 = vunpack.c.l.b16 %v2030
    %v2159 = vunpack.c.l.b16 %v2031
    %v2160 = vunpack.c.l.b16 %v2032
    %v2161 = vunpack.c.l.b16 %v2033
    %v2162 = vunpack.c.l.b16 %v2034
    %v2163 = vunpack.c.l.b16 %v2035
    %v2164 = vunpack.c.l.b16 %v2036
    %v2165 = vpack.c.b16 %v2150, %v2149
    %v2166 = vpack.c.b16 %v2152, %v2151
    %v2167 = vpack.c.b16 %v2154, %v2153
    %v2168 = vpack.c.b16 %v2156, %v2155
    %v2169 = vpack.c.b16 %v2158, %v2157
    %v2170 = vpack.c.b16 %v2160, %v2159
    %v2171 = vpack.c.b16 %v2162, %v2161
    %v2172 = vpack.c.b16 %v2164, %v2163
    %2181 = vmatpush.bf16.msra.mxu0 %v2172
    %2182 = vmatpush.bf16.msra.mxu0 %v2171
    %2183 = vmatpush.bf16.msra.mxu0 %v2170
    %2184 = vmatpush.bf16.msra.mxu0 %v2169
    %2185 = vmatpush.bf16.msra.mxu0 %v2168
    %2186 = vmatpush.bf16.msra.mxu0 %v2167
    %2187 = vmatpush.bf16.msra.mxu0 %v2166
    %2188 = vmatpush.bf16.msra.mxu0 %v2165
    %2189 = vmatmul.bf16.gmra.mxu0 %v2101
    %v2190 = vpop.f32.mrf.mxu0
    %v2191 = vadd.f32 0.0, %v2190
    %v2192 = vpop.f32.mrf.mxu0
    %v2193 = vadd.f32 0.0, %v2192
    %2194 = vmatmul.bf16.gmra.mxu0 %v2102
    %v2195 = vpop.f32.mrf.mxu0
    %v2196 = vadd.f32 0.0, %v2195
    %v2197 = vpop.f32.mrf.mxu0
    %v2198 = vadd.f32 0.0, %v2197
    %2199 = vmatmul.bf16.gmra.mxu0 %v2103
    %v2200 = vpop.f32.mrf.mxu0
    %v2201 = vadd.f32 0.0, %v2200
    %v2202 = vpop.f32.mrf.mxu0
    %v2203 = vadd.f32 0.0, %v2202
    %2204 = vmatmul.bf16.gmra.mxu0 %v2104
    %v2205 = vpop.f32.mrf.mxu0
    %v2206 = vadd.f32 0.0, %v2205
    %v2207 = vpop.f32.mrf.mxu0
    %v2208 = vadd.f32 0.0, %v2207
    %2209 = vmatmul.bf16.gmra.mxu0 %v2105
    %v2210 = vpop.f32.mrf.mxu0
    %v2211 = vadd.f32 0.0, %v2210
    %v2212 = vpop.f32.mrf.mxu0
    %v2213 = vadd.f32 0.0, %v2212
    %2214 = vmatmul.bf16.gmra.mxu0 %v2106
    %v2215 = vpop.f32.mrf.mxu0
    %v2216 = vadd.f32 0.0, %v2215
    %v2217 = vpop.f32.mrf.mxu0
    %v2218 = vadd.f32 0.0, %v2217
    %2219 = vmatmul.bf16.gmra.mxu0 %v2107
    %v2220 = vpop.f32.mrf.mxu0
    %v2221 = vadd.f32 0.0, %v2220
    %v2222 = vpop.f32.mrf.mxu0
    %v2223 = vadd.f32 0.0, %v2222
    %2224 = vmatmul.bf16.gmra.mxu0 %v2108
    %v2225 = vpop.f32.mrf.mxu0
    %v2226 = vadd.f32 0.0, %v2225
    %v2227 = vpop.f32.mrf.mxu0
    %v2228 = vadd.f32 0.0, %v2227
    %2229 = vmatmul.bf16.gmra.mxu0 %v2109
    %v2230 = vpop.f32.mrf.mxu0
    %v2231 = vadd.f32 0.0, %v2230
    %v2232 = vpop.f32.mrf.mxu0
    %v2233 = vadd.f32 0.0, %v2232
    %2234 = vmatmul.bf16.gmra.mxu0 %v2110
    %v2235 = vpop.f32.mrf.mxu0
    %v2236 = vadd.f32 0.0, %v2235
    %v2237 = vpop.f32.mrf.mxu0
    %v2238 = vadd.f32 0.0, %v2237
    %2239 = vmatmul.bf16.gmra.mxu0 %v2111
    %v2240 = vpop.f32.mrf.mxu0
    %v2241 = vadd.f32 0.0, %v2240
    %v2242 = vpop.f32.mrf.mxu0
    %v2243 = vadd.f32 0.0, %v2242
    %2244 = vmatmul.bf16.gmra.mxu0 %v2112
    %v2245 = vpop.f32.mrf.mxu0
    %v2246 = vadd.f32 0.0, %v2245
    %v2247 = vpop.f32.mrf.mxu0
    %v2248 = vadd.f32 0.0, %v2247
    %2249 = vmatmul.bf16.gmra.mxu0 %v2113
    %v2250 = vpop.f32.mrf.mxu0
    %v2251 = vadd.f32 0.0, %v2250
    %v2252 = vpop.f32.mrf.mxu0
    %v2253 = vadd.f32 0.0, %v2252
    %2254 = vmatmul.bf16.gmra.mxu0 %v2114
    %v2255 = vpop.f32.mrf.mxu0
    %v2256 = vadd.f32 0.0, %v2255
    %v2257 = vpop.f32.mrf.mxu0
    %v2258 = vadd.f32 0.0, %v2257
    %2259 = vmatmul.bf16.gmra.mxu0 %v2115
    %v2260 = vpop.f32.mrf.mxu0
    %v2261 = vadd.f32 0.0, %v2260
    %v2262 = vpop.f32.mrf.mxu0
    %v2263 = vadd.f32 0.0, %v2262
    %2264 = vmatmul.bf16.gmra.mxu0 %v2116
    %v2265 = vpop.f32.mrf.mxu0
    %v2266 = vadd.f32 0.0, %v2265
    %v2267 = vpop.f32.mrf.mxu0
    %v2268 = vadd.f32 0.0, %v2267
    %2269 = vdwg.mxu0
    %v2270 = vmul.f32 %v2191, 0.0026246717
    %v2271 = vmul.f32 %v2193, 0.0026246717
    %v2272 = vmul.f32 %v2196, 0.0026246717
    %v2273 = vmul.f32 %v2198, 0.0026246717
    %v2274 = vmul.f32 %v2201, 0.0026246717
    %v2275 = vmul.f32 %v2203, 0.0026246717
    %v2276 = vmul.f32 %v2206, 0.0026246717
    %v2277 = vmul.f32 %v2208, 0.0026246717
    %v2278 = vmul.f32 %v2211, 0.0026246717
    %v2279 = vmul.f32 %v2213, 0.0026246717
    %v2280 = vmul.f32 %v2216, 0.0026246717
    %v2281 = vmul.f32 %v2218, 0.0026246717
    %v2282 = vmul.f32 %v2221, 0.0026246717
    %v2283 = vmul.f32 %v2223, 0.0026246717
    %v2284 = vmul.f32 %v2226, 0.0026246717
    %v2285 = vmul.f32 %v2228, 0.0026246717
    %v2286 = vmul.f32 %v2231, 0.0026246717
    %v2287 = vmul.f32 %v2233, 0.0026246717
    %v2288 = vmul.f32 %v2236, 0.0026246717
    %v2289 = vmul.f32 %v2238, 0.0026246717
    %v2290 = vmul.f32 %v2241, 0.0026246717
    %v2291 = vmul.f32 %v2243, 0.0026246717
    %v2292 = vmul.f32 %v2246, 0.0026246717
    %v2293 = vmul.f32 %v2248, 0.0026246717
    %v2294 = vmul.f32 %v2251, 0.0026246717
    %v2295 = vmul.f32 %v2253, 0.0026246717
    %v2296 = vmul.f32 %v2256, 0.0026246717
    %v2297 = vmul.f32 %v2258, 0.0026246717
    %v2298 = vmul.f32 %v2261, 0.0026246717
    %v2299 = vmul.f32 %v2263, 0.0026246717
    %v2300 = vmul.f32 %v2266, 0.0026246717
    %v2301 = vmul.f32 %v2268, 0.0026246717
    %v2302 = vpack.c.bf16 %v2270, %v2270
    %v2303 = vpack.c.bf16 %v2271, %v2271
    %v2304 = vpack.c.bf16 %v2272, %v2272
    %v2305 = vpack.c.bf16 %v2273, %v2273
    %v2306 = vpack.c.bf16 %v2274, %v2274
    %v2307 = vpack.c.bf16 %v2275, %v2275
    %v2308 = vpack.c.bf16 %v2276, %v2276
    %v2309 = vpack.c.bf16 %v2277, %v2277
    %v2310 = vpack.c.bf16 %v2278, %v2278
    %v2311 = vpack.c.bf16 %v2279, %v2279
    %v2312 = vpack.c.bf16 %v2280, %v2280
    %v2313 = vpack.c.bf16 %v2281, %v2281
    %v2314 = vpack.c.bf16 %v2282, %v2282
    %v2315 = vpack.c.bf16 %v2283, %v2283
    %v2316 = vpack.c.bf16 %v2284, %v2284
    %v2317 = vpack.c.bf16 %v2285, %v2285
    %v2318 = vpack.c.bf16 %v2286, %v2286
    %v2319 = vpack.c.bf16 %v2287, %v2287
    %v2320 = vpack.c.bf16 %v2288, %v2288
    %v2321 = vpack.c.bf16 %v2289, %v2289
    %v2322 = vpack.c.bf16 %v2290, %v2290
    %v2323 = vpack.c.bf16 %v2291, %v2291
    %v2324 = vpack.c.bf16 %v2292, %v2292
    %v2325 = vpack.c.bf16 %v2293, %v2293
    %v2326 = vpack.c.bf16 %v2294, %v2294
    %v2327 = vpack.c.bf16 %v2295, %v2295
    %v2328 = vpack.c.bf16 %v2296, %v2296
    %v2329 = vpack.c.bf16 %v2297, %v2297
    %v2330 = vpack.c.bf16 %v2298, %v2298
    %v2331 = vpack.c.bf16 %v2299, %v2299
    %v2332 = vpack.c.bf16 %v2300, %v2300
    %v2333 = vpack.c.bf16 %v2301, %v2301
    %2334 = vst [vmem:[#allocation4] sm:$0xf] %v2302
    %2335 = vst [vmem:[#allocation4 + $0x4] sm:$0xf] %v2303
    %2336 = vst [vmem:[#allocation4 + $0x8] sm:$0xf] %v2304
    %2337 = vst [vmem:[#allocation4 + $0xc] sm:$0xf] %v2305
    %2338 = vst [vmem:[#allocation4 + $0x10] sm:$0xf] %v2306
    %2339 = vst [vmem:[#allocation4 + $0x14] sm:$0xf] %v2307
    %2340 = vst [vmem:[#allocation4 + $0x18] sm:$0xf] %v2308
    %2341 = vst [vmem:[#allocation4 + $0x1c] sm:$0xf] %v2309
    %2342 = vst [vmem:[#allocation4 + $0x20] sm:$0xf] %v2310
    %2343 = vst [vmem:[#allocation4 + $0x24] sm:$0xf] %v2311
    %2344 = vst [vmem:[#allocation4 + $0x28] sm:$0xf] %v2312
    %2345 = vst [vmem:[#allocation4 + $0x2c] sm:$0xf] %v2313
    %2346 = vst [vmem:[#allocation4 + $0x30] sm:$0xf] %v2314
    %2347 = vst [vmem:[#allocation4 + $0x34] sm:$0xf] %v2315
    %2348 = vst [vmem:[#allocation4 + $0x38] sm:$0xf] %v2316
    %2349 = vst [vmem:[#allocation4 + $0x3c] sm:$0xf] %v2317
    %2350 = vst [vmem:[#allocation4 + $0x40] sm:$0xf] %v2318
    %2351 = vst [vmem:[#allocation4 + $0x44] sm:$0xf] %v2319
    %2352 = vst [vmem:[#allocation4 + $0x48] sm:$0xf] %v2320
    %2353 = vst [vmem:[#allocation4 + $0x4c] sm:$0xf] %v2321
    %2354 = vst [vmem:[#allocation4 + $0x50] sm:$0xf] %v2322
    %2355 = vst [vmem:[#allocation4 + $0x54] sm:$0xf] %v2323
    %2356 = vst [vmem:[#allocation4 + $0x58] sm:$0xf] %v2324
    %2357 = vst [vmem:[#allocation4 + $0x5c] sm:$0xf] %v2325
    %2358 = vst [vmem:[#allocation4 + $0x60] sm:$0xf] %v2326
    %2359 = vst [vmem:[#allocation4 + $0x64] sm:$0xf] %v2327
    %2360 = vst [vmem:[#allocation4 + $0x68] sm:$0xf] %v2328
    %2361 = vst [vmem:[#allocation4 + $0x6c] sm:$0xf] %v2329
    %2362 = vst [vmem:[#allocation4 + $0x70] sm:$0xf] %v2330
    %2363 = vst [vmem:[#allocation4 + $0x74] sm:$0xf] %v2331
    %2364 = vst [vmem:[#allocation4 + $0x78] sm:$0xf] %v2332
    %2365 = vst [vmem:[#allocation4 + $0x7c] sm:$0xf] %v2333
    %v2366 = vld [vmem:[%s15] sm:$0x1]
    %v2368 = vperm.slane %v2366, 0
    %v2370 = vld [vmem:[%s16] sm:$0x1]
    %v2372 = vperm.slane %v2370, 0
    %v2374 = vld [vmem:[%s17] sm:$0x1]
    %v2376 = vperm.slane %v2374, 0
    loop: start=0, step=1, limit=2
    $region215: #{tpu_custom_call.1} parent=1 // loop_pre_header
      _
    $region216: #{tpu_custom_call.1} parent=1 // loop_header
      %s2379 = sphi 0, %s2383
      %p2380 = scmp.ge.s32.totalorder %s2379, 2
    $region217: #{tpu_custom_call.1} parent=1 // loop_header_branch
      %2382 = sbr.rel (%p2380) target = $region221
    $region218: #{tpu_custom_call.1} parent=1 // loop_body
      %p2384 = scmp.lt.s32.totalorder %s2379, 0
      %s2385 = ssub.s32 0, %s2379
      %s2386 = scalar_select %p2384, %s2385, %s2379
      %s2387 = sand.u32 %s2386, 1
      %s2388 = ssub.s32 0, %s2387
      %s2389 = scalar_select %p2384, %s2388, %s2387
      %p2390 = scmp.ne.s32.totalorder %s2389, 0
      %p2391 = scmp.lt.s32.totalorder %s2389, 0
      %p2392 = pnand %p2391, %p2390
      %p2393 = pneg %p2392
      %s2394 = sadd.s32 %s2389, 2
      %s2395 = scalar_select %p2393, %s2394, %s2389
      %s2396 = sadd.s32 %s2379, 1
      %p2397 = scmp.lt.s32.totalorder %s2396, 2
      // Predicated region
      $region222: #{tpu_custom_call.1} parent=218 // pred_check
        %p2398 = pneg %p2397
      $region223: #{tpu_custom_call.1} parent=218 // pred_check_branch
        %2400 = sbr.rel (%p2398) target = $region225
      $region224: #{tpu_custom_call.1} parent=218 // pred_region
        %s2401 = ssub.s32 1, %s2395
        %s2402 = smul.u32 %s2396, 128
        %s2403 = sld [smem:[#allocation9 + %s2396]]
        %s2404 = sshra.s32 %s2403, 7
        %s2405 = sand.u32 %s2403, 127
        %s2406 = sshra.s32 %s2402, 5
        %s2407 = sand.u32 %s2402, 31
        %s2408 = smul.u32 %s2406, 2
        %s2409 = sadd.s32 %s2404, %s2408
        %s2410 = smul.addr %s2409, 8
        %s2411 = scalar_lea.vmem %s1, %s2410
        %s2412 = smul.u32 %s2401, 8
        %s2413 = smul.addr %s2412, 8
        %s2414 = scalar_lea.vmem [#allocation5], %s2413
        %s2415 = scalar_lea.sflag [#allocation7], %s2401
        // Predicated region
        $region226: #{tpu_custom_call.1} parent=224 // pred_check
          _
        $region227: #{tpu_custom_call.1} parent=224 // pred_check_branch
          %2417 = sbr.rel (0) target = $region229
        $region228: #{tpu_custom_call.1} parent=224 // pred_region
          loop: start=0, step=1, limit=1
          $region230: #{tpu_custom_call.1} parent=228 // loop_pre_header
            _
          $region231: #{tpu_custom_call.1} parent=228 // loop_header
            %s2419 = sphi 0, %s2423
            %p2420 = scmp.ge.s32.totalorder %s2419, 1
            %s2424 = sphi %s2411, %s2411
            %s2425 = sphi %s2414, %s2414
          $region232: #{tpu_custom_call.1} parent=228 // loop_header_branch
            %2422 = sbr.rel (%p2420) target = $region236
          $region233: #{tpu_custom_call.1} parent=228 // loop_body
            %v2426 = vld [vmem:[%s2424] sm:$0xff]
            %2427 = vst [vmem:[%s2425] sm:$0xff] %v2426
            %v2428 = vld [vmem:[%s2424 + $0x8] sm:$0xff]
            %2429 = vst [vmem:[%s2425 + $0x8] sm:$0xff] %v2428
            %v2430 = vld [vmem:[%s2424 + $0x10] sm:$0xff]
            %2431 = vst [vmem:[%s2425 + $0x10] sm:$0xff] %v2430
            %v2432 = vld [vmem:[%s2424 + $0x18] sm:$0xff]
            %2433 = vst [vmem:[%s2425 + $0x18] sm:$0xff] %v2432
            %v2434 = vld [vmem:[%s2424 + $0x20] sm:$0xff]
            %2435 = vst [vmem:[%s2425 + $0x20] sm:$0xff] %v2434
            %v2436 = vld [vmem:[%s2424 + $0x28] sm:$0xff]
            %2437 = vst [vmem:[%s2425 + $0x28] sm:$0xff] %v2436
            %v2438 = vld [vmem:[%s2424 + $0x30] sm:$0xff]
            %2439 = vst [vmem:[%s2425 + $0x30] sm:$0xff] %v2438
            %v2440 = vld [vmem:[%s2424 + $0x38] sm:$0xff]
            %2441 = vst [vmem:[%s2425 + $0x38] sm:$0xff] %v2440
          $region234: #{tpu_custom_call.1} parent=228 // loop_footer
            %s2423 = sadd.s32 1, %s2419
          $region235: #{tpu_custom_call.1} parent=228 // loop_footer_branch
            %2418 = sbr.rel target = $region231
          $region236: #{tpu_custom_call.1} parent=228 // loop_exit
            _
        $region229: #{tpu_custom_call.1} parent=224 // pred_fallthru
          _
        // Predicated region
        $region237: #{tpu_custom_call.1} parent=224 // pred_check
          _
        $region238: #{tpu_custom_call.1} parent=224 // pred_check_branch
          %2443 = sbr.rel target = $region240
        $region239: #{tpu_custom_call.1} parent=224 // pred_region
          _
        $region240: #{tpu_custom_call.1} parent=224 // pred_fallthru
          _
        // Predicated region
        $region241: #{tpu_custom_call.1} parent=224 // pred_check
          _
        $region242: #{tpu_custom_call.1} parent=224 // pred_check_branch
          %2446 = sbr.rel (0) target = $region244
        $region243: #{tpu_custom_call.1} parent=224 // pred_region
          %2447 = vsyncadd %s2415, 1024
        $region244: #{tpu_custom_call.1} parent=224 // pred_fallthru
          _
      $region225: #{tpu_custom_call.1} parent=218 // pred_fallthru
        _
      %s2448 = smul.u32 %s2379, 128
      %s2449 = sld [smem:[#allocation9 + %s2379]]
      %s2450 = smul.u32 %s2395, 8
      %s2451 = smul.addr %s2450, 8
      %s2452 = scalar_lea.vmem [#allocation5], %s2451
      %s2453 = scalar_lea.sflag [#allocation7], %s2395
      %s2454 = smul.u32 2, 16
      %s2455 = smul.u32 %s2454, 2
      %s2456 = sshll.u32 %s2455, 4
      %2457 = dma.done %s2453, %s2456
      %s2458 = sld [smem:[#allocation9 + %s2379]]
      %v2459 = vld [vmem:[%s2452] sm:$0xff]
      %v2460 = vld [vmem:[%s2452 + $0x8] sm:$0xff]
      %v2461 = vld [vmem:[%s2452 + $0x10] sm:$0xff]
      %v2462 = vld [vmem:[%s2452 + $0x18] sm:$0xff]
      %v2463 = vld [vmem:[%s2452 + $0x20] sm:$0xff]
      %v2464 = vld [vmem:[%s2452 + $0x28] sm:$0xff]
      %v2465 = vld [vmem:[%s2452 + $0x30] sm:$0xff]
      %v2466 = vld [vmem:[%s2452 + $0x38] sm:$0xff]
      %v2467 = vunpack.c.0.s8 %v2459
      %v2468 = vunpack.c.0.s8 %v2460
      %v2469 = vunpack.c.1.s8 %v2459
      %v2470 = vunpack.c.1.s8 %v2460
      %v2471 = vunpack.c.2.s8 %v2459
      %v2472 = vunpack.c.2.s8 %v2460
      %v2473 = vunpack.c.3.s8 %v2459
      %v2474 = vunpack.c.3.s8 %v2460
      %v2475 = vunpack.c.0.s8 %v2461
      %v2476 = vunpack.c.0.s8 %v2462
      %v2477 = vunpack.c.1.s8 %v2461
      %v2478 = vunpack.c.1.s8 %v2462
      %v2479 = vunpack.c.2.s8 %v2461
      %v2480 = vunpack.c.2.s8 %v2462
      %v2481 = vunpack.c.3.s8 %v2461
      %v2482 = vunpack.c.3.s8 %v2462
      %v2483 = vunpack.c.0.s8 %v2463
      %v2484 = vunpack.c.0.s8 %v2464
      %v2485 = vunpack.c.1.s8 %v2463
      %v2486 = vunpack.c.1.s8 %v2464
      %v2487 = vunpack.c.2.s8 %v2463
      %v2488 = vunpack.c.2.s8 %v2464
      %v2489 = vunpack.c.3.s8 %v2463
      %v2490 = vunpack.c.3.s8 %v2464
      %v2491 = vunpack.c.0.s8 %v2465
      %v2492 = vunpack.c.0.s8 %v2466
      %v2493 = vunpack.c.1.s8 %v2465
      %v2494 = vunpack.c.1.s8 %v2466
      %v2495 = vunpack.c.2.s8 %v2465
      %v2496 = vunpack.c.2.s8 %v2466
      %v2497 = vunpack.c.3.s8 %v2465
      %v2498 = vunpack.c.3.s8 %v2466
      %v2499 = vcvt.s32.f32 %v2467
      %v2500 = vcvt.s32.f32 %v2468
      %v2501 = vcvt.s32.f32 %v2469
      %v2502 = vcvt.s32.f32 %v2470
      %v2503 = vcvt.s32.f32 %v2471
      %v2504 = vcvt.s32.f32 %v2472
      %v2505 = vcvt.s32.f32 %v2473
      %v2506 = vcvt.s32.f32 %v2474
      %v2507 = vcvt.s32.f32 %v2475
      %v2508 = vcvt.s32.f32 %v2476
      %v2509 = vcvt.s32.f32 %v2477
      %v2510 = vcvt.s32.f32 %v2478
      %v2511 = vcvt.s32.f32 %v2479
      %v2512 = vcvt.s32.f32 %v2480
      %v2513 = vcvt.s32.f32 %v2481
      %v2514 = vcvt.s32.f32 %v2482
      %v2515 = vcvt.s32.f32 %v2483
      %v2516 = vcvt.s32.f32 %v2484
      %v2517 = vcvt.s32.f32 %v2485
      %v2518 = vcvt.s32.f32 %v2486
      %v2519 = vcvt.s32.f32 %v2487
      %v2520 = vcvt.s32.f32 %v2488
      %v2521 = vcvt.s32.f32 %v2489
      %v2522 = vcvt.s32.f32 %v2490
      %v2523 = vcvt.s32.f32 %v2491
      %v2524 = vcvt.s32.f32 %v2492
      %v2525 = vcvt.s32.f32 %v2493
      %v2526 = vcvt.s32.f32 %v2494
      %v2527 = vcvt.s32.f32 %v2495
      %v2528 = vcvt.s32.f32 %v2496
      %v2529 = vcvt.s32.f32 %v2497
      %v2530 = vcvt.s32.f32 %v2498
      %v2531 = vpack.c.bf16 %v2501, %v2499
      %v2532 = vpack.c.bf16 %v2502, %v2500
      %v2533 = vpack.c.bf16 %v2505, %v2503
      %v2534 = vpack.c.bf16 %v2506, %v2504
      %v2535 = vpack.c.bf16 %v2509, %v2507
      %v2536 = vpack.c.bf16 %v2510, %v2508
      %v2537 = vpack.c.bf16 %v2513, %v2511
      %v2538 = vpack.c.bf16 %v2514, %v2512
      %v2539 = vpack.c.bf16 %v2517, %v2515
      %v2540 = vpack.c.bf16 %v2518, %v2516
      %v2541 = vpack.c.bf16 %v2521, %v2519
      %v2542 = vpack.c.bf16 %v2522, %v2520
      %v2543 = vpack.c.bf16 %v2525, %v2523
      %v2544 = vpack.c.bf16 %v2526, %v2524
      %v2545 = vpack.c.bf16 %v2529, %v2527
      %v2546 = vpack.c.bf16 %v2530, %v2528
      %s2547 = sshra.s32 %s2458, 3
      %s2548 = sand.u32 %s2458, 7
      %s2549 = smul.addr %s2547, 4
      %s2550 = scalar_lea.vmem [#allocation4], %s2549
      %v2551 = vld [vmem:[%s2550] sm:$0xf]
      %v2552 = vld [vmem:[%s2550 + $0x4] sm:$0xf]
      %v2553 = vld [vmem:[%s2550 + $0x8] sm:$0xf]
      %v2554 = vld [vmem:[%s2550 + $0xc] sm:$0xf]
      %v2555 = vld [vmem:[%s2550 + $0x10] sm:$0xf]
      %v2556 = vld [vmem:[%s2550 + $0x14] sm:$0xf]
      %v2557 = vld [vmem:[%s2550 + $0x18] sm:$0xf]
      %v2558 = vld [vmem:[%s2550 + $0x1c] sm:$0xf]
      %v2559 = vld [vmem:[%s2550 + $0x20] sm:$0xf]
      %v2560 = vld [vmem:[%s2550 + $0x24] sm:$0xf]
      %v2561 = vld [vmem:[%s2550 + $0x28] sm:$0xf]
      %v2562 = vld [vmem:[%s2550 + $0x2c] sm:$0xf]
      %v2563 = vld [vmem:[%s2550 + $0x30] sm:$0xf]
      %v2564 = vld [vmem:[%s2550 + $0x34] sm:$0xf]
      %v2565 = vld [vmem:[%s2550 + $0x38] sm:$0xf]
      %v2566 = vld [vmem:[%s2550 + $0x3c] sm:$0xf]
      %v2567 = vld [vmem:[%s2550 + $0x40] sm:$0xf]
      %v2568 = vld [vmem:[%s2550 + $0x44] sm:$0xf]
      %v2569 = vld [vmem:[%s2550 + $0x48] sm:$0xf]
      %v2570 = vld [vmem:[%s2550 + $0x4c] sm:$0xf]
      %v2571 = vld [vmem:[%s2550 + $0x50] sm:$0xf]
      %v2572 = vld [vmem:[%s2550 + $0x54] sm:$0xf]
      %v2573 = vld [vmem:[%s2550 + $0x58] sm:$0xf]
      %v2574 = vld [vmem:[%s2550 + $0x5c] sm:$0xf]
      %v2575 = vld [vmem:[%s2550 + $0x60] sm:$0xf]
      %v2576 = vld [vmem:[%s2550 + $0x64] sm:$0xf]
      %v2577 = vld [vmem:[%s2550 + $0x68] sm:$0xf]
      %v2578 = vld [vmem:[%s2550 + $0x6c] sm:$0xf]
      %v2579 = vld [vmem:[%s2550 + $0x70] sm:$0xf]
      %v2580 = vld [vmem:[%s2550 + $0x74] sm:$0xf]
      %v2581 = vld [vmem:[%s2550 + $0x78] sm:$0xf]
      %v2582 = vld [vmem:[%s2550 + $0x7c] sm:$0xf]
      %v2615 = vunpack.c.l.b16 %v2551
      %v2616 = vunpack.c.l.b16 %v2552
      %v2617 = vunpack.c.l.b16 %v2553
      %v2618 = vunpack.c.l.b16 %v2554
      %v2619 = vunpack.c.l.b16 %v2555
      %v2620 = vunpack.c.l.b16 %v2556
      %v2621 = vunpack.c.l.b16 %v2557
      %v2622 = vunpack.c.l.b16 %v2558
      %v2623 = vunpack.c.l.b16 %v2559
      %v2624 = vunpack.c.l.b16 %v2560
      %v2625 = vunpack.c.l.b16 %v2561
      %v2626 = vunpack.c.l.b16 %v2562
      %v2627 = vunpack.c.l.b16 %v2563
      %v2628 = vunpack.c.l.b16 %v2564
      %v2629 = vunpack.c.l.b16 %v2565
      %v2630 = vunpack.c.l.b16 %v2566
      %v2631 = vunpack.c.l.b16 %v2567
      %v2632 = vunpack.c.l.b16 %v2568
      %v2633 = vunpack.c.l.b16 %v2569
      %v2634 = vunpack.c.l.b16 %v2570
      %v2635 = vunpack.c.l.b16 %v2571
      %v2636 = vunpack.c.l.b16 %v2572
      %v2637 = vunpack.c.l.b16 %v2573
      %v2638 = vunpack.c.l.b16 %v2574
      %v2639 = vunpack.c.l.b16 %v2575
      %v2640 = vunpack.c.l.b16 %v2576
      %v2641 = vunpack.c.l.b16 %v2577
      %v2642 = vunpack.c.l.b16 %v2578
      %v2643 = vunpack.c.l.b16 %v2579
      %v2644 = vunpack.c.l.b16 %v2580
      %v2645 = vunpack.c.l.b16 %v2581
      %v2646 = vunpack.c.l.b16 %v2582
      %v2647 = vpack.c.b16 %v2616, %v2615
      %v2648 = vpack.c.b16 %v2618, %v2617
      %v2649 = vpack.c.b16 %v2620, %v2619
      %v2650 = vpack.c.b16 %v2622, %v2621
      %v2651 = vpack.c.b16 %v2624, %v2623
      %v2652 = vpack.c.b16 %v2626, %v2625
      %v2653 = vpack.c.b16 %v2628, %v2627
      %v2654 = vpack.c.b16 %v2630, %v2629
      %v2655 = vpack.c.b16 %v2632, %v2631
      %v2656 = vpack.c.b16 %v2634, %v2633
      %v2657 = vpack.c.b16 %v2636, %v2635
      %v2658 = vpack.c.b16 %v2638, %v2637
      %v2659 = vpack.c.b16 %v2640, %v2639
      %v2660 = vpack.c.b16 %v2642, %v2641
      %v2661 = vpack.c.b16 %v2644, %v2643
      %v2662 = vpack.c.b16 %v2646, %v2645
      %2679 = vmatpush.bf16.msra.mxu0 %v2654
      %2680 = vmatpush.bf16.msra.mxu0 %v2653
      %2681 = vmatpush.bf16.msra.mxu0 %v2652
      %2682 = vmatpush.bf16.msra.mxu0 %v2651
      %2683 = vmatpush.bf16.msra.mxu0 %v2650
      %2684 = vmatpush.bf16.msra.mxu0 %v2649
      %2685 = vmatpush.bf16.msra.mxu0 %v2648
      %2686 = vmatpush.bf16.msra.mxu0 %v2647
      %2687 = vmatmul.bf16.gmra.mxu0 %v2531
      %v2688 = vpop.f32.mrf.mxu0
      %v2689 = vadd.f32 %v2368, %v2688
      %v2690 = vpop.f32.mrf.mxu0
      %v2691 = vadd.f32 %v2368, %v2690
      %2692 = vmatmul.bf16.gmra.mxu0 %v2533
      %v2693 = vpop.f32.mrf.mxu0
      %v2694 = vadd.f32 %v2368, %v2693
      %v2695 = vpop.f32.mrf.mxu0
      %v2696 = vadd.f32 %v2368, %v2695
      %2697 = vmatmul.bf16.gmra.mxu0 %v2535
      %v2698 = vpop.f32.mrf.mxu0
      %v2699 = vadd.f32 %v2368, %v2698
      %v2700 = vpop.f32.mrf.mxu0
      %v2701 = vadd.f32 %v2368, %v2700
      %2702 = vmatmul.bf16.gmra.mxu0 %v2537
      %v2703 = vpop.f32.mrf.mxu0
      %v2704 = vadd.f32 %v2368, %v2703
      %v2705 = vpop.f32.mrf.mxu0
      %v2706 = vadd.f32 %v2368, %v2705
      %2707 = vmatmul.bf16.gmra.mxu0 %v2539
      %v2708 = vpop.f32.mrf.mxu0
      %v2709 = vadd.f32 %v2368, %v2708
      %v2710 = vpop.f32.mrf.mxu0
      %v2711 = vadd.f32 %v2368, %v2710
      %2712 = vmatmul.bf16.gmra.mxu0 %v2541
      %v2713 = vpop.f32.mrf.mxu0
      %v2714 = vadd.f32 %v2368, %v2713
      %v2715 = vpop.f32.mrf.mxu0
      %v2716 = vadd.f32 %v2368, %v2715
      %2717 = vmatmul.bf16.gmra.mxu0 %v2543
      %v2718 = vpop.f32.mrf.mxu0
      %v2719 = vadd.f32 %v2368, %v2718
      %v2720 = vpop.f32.mrf.mxu0
      %v2721 = vadd.f32 %v2368, %v2720
      %2722 = vmatmul.bf16.gmra.mxu0 %v2545
      %v2723 = vpop.f32.mrf.mxu0
      %v2724 = vadd.f32 %v2368, %v2723
      %v2725 = vpop.f32.mrf.mxu0
      %v2726 = vadd.f32 %v2368, %v2725
      %2727 = vdwg.mxu0
      %2728 = vmatpush.bf16.msra.mxu0 %v2662
      %2729 = vmatpush.bf16.msra.mxu0 %v2661
      %2730 = vmatpush.bf16.msra.mxu0 %v2660
      %2731 = vmatpush.bf16.msra.mxu0 %v2659
      %2732 = vmatpush.bf16.msra.mxu0 %v2658
      %2733 = vmatpush.bf16.msra.mxu0 %v2657
      %2734 = vmatpush.bf16.msra.mxu0 %v2656
      %2735 = vmatpush.bf16.msra.mxu0 %v2655
      %2736 = vmatmul.bf16.gmra.mxu0 %v2532
      %v2737 = vpop.f32.mrf.mxu0
      %v2738 = vadd.f32 %v2689, %v2737
      %v2739 = vpop.f32.mrf.mxu0
      %v2740 = vadd.f32 %v2691, %v2739
      %2741 = vmatmul.bf16.gmra.mxu0 %v2534
      %v2742 = vpop.f32.mrf.mxu0
      %v2743 = vadd.f32 %v2694, %v2742
      %v2744 = vpop.f32.mrf.mxu0
      %v2745 = vadd.f32 %v2696, %v2744
      %2746 = vmatmul.bf16.gmra.mxu0 %v2536
      %v2747 = vpop.f32.mrf.mxu0
      %v2748 = vadd.f32 %v2699, %v2747
      %v2749 = vpop.f32.mrf.mxu0
      %v2750 = vadd.f32 %v2701, %v2749
      %2751 = vmatmul.bf16.gmra.mxu0 %v2538
      %v2752 = vpop.f32.mrf.mxu0
      %v2753 = vadd.f32 %v2704, %v2752
      %v2754 = vpop.f32.mrf.mxu0
      %v2755 = vadd.f32 %v2706, %v2754
      %2756 = vmatmul.bf16.gmra.mxu0 %v2540
      %v2757 = vpop.f32.mrf.mxu0
      %v2758 = vadd.f32 %v2709, %v2757
      %v2759 = vpop.f32.mrf.mxu0
      %v2760 = vadd.f32 %v2711, %v2759
      %2761 = vmatmul.bf16.gmra.mxu0 %v2542
      %v2762 = vpop.f32.mrf.mxu0
      %v2763 = vadd.f32 %v2714, %v2762
      %v2764 = vpop.f32.mrf.mxu0
      %v2765 = vadd.f32 %v2716, %v2764
      %2766 = vmatmul.bf16.gmra.mxu0 %v2544
      %v2767 = vpop.f32.mrf.mxu0
      %v2768 = vadd.f32 %v2719, %v2767
      %v2769 = vpop.f32.mrf.mxu0
      %v2770 = vadd.f32 %v2721, %v2769
      %2771 = vmatmul.bf16.gmra.mxu0 %v2546
      %v2772 = vpop.f32.mrf.mxu0
      %v2773 = vadd.f32 %v2724, %v2772
      %v2774 = vpop.f32.mrf.mxu0
      %v2775 = vadd.f32 %v2726, %v2774
      %2776 = vdwg.mxu0
      %v2777 = vmax.f32 %v2738, 0.0
      %v2778 = vmax.f32 %v2740, 0.0
      %v2779 = vmax.f32 %v2743, 0.0
      %v2780 = vmax.f32 %v2745, 0.0
      %v2781 = vmax.f32 %v2748, 0.0
      %v2782 = vmax.f32 %v2750, 0.0
      %v2783 = vmax.f32 %v2753, 0.0
      %v2784 = vmax.f32 %v2755, 0.0
      %v2785 = vmax.f32 %v2758, 0.0
      %v2786 = vmax.f32 %v2760, 0.0
      %v2787 = vmax.f32 %v2763, 0.0
      %v2788 = vmax.f32 %v2765, 0.0
      %v2789 = vmax.f32 %v2768, 0.0
      %v2790 = vmax.f32 %v2770, 0.0
      %v2791 = vmax.f32 %v2773, 0.0
      %v2792 = vmax.f32 %v2775, 0.0
      %v2793 = vmul.f32 %v2777, %v2372
      %v2794 = vmul.f32 %v2778, %v2372
      %v2795 = vmul.f32 %v2779, %v2372
      %v2796 = vmul.f32 %v2780, %v2372
      %v2797 = vmul.f32 %v2781, %v2372
      %v2798 = vmul.f32 %v2782, %v2372
      %v2799 = vmul.f32 %v2783, %v2372
      %v2800 = vmul.f32 %v2784, %v2372
      %v2801 = vmul.f32 %v2785, %v2372
      %v2802 = vmul.f32 %v2786, %v2372
      %v2803 = vmul.f32 %v2787, %v2372
      %v2804 = vmul.f32 %v2788, %v2372
      %v2805 = vmul.f32 %v2789, %v2372
      %v2806 = vmul.f32 %v2790, %v2372
      %v2807 = vmul.f32 %v2791, %v2372
      %v2808 = vmul.f32 %v2792, %v2372
      %v2809 = vadd.f32 %v2793, %v2376
      %v2810 = vadd.f32 %v2794, %v2376
      %v2811 = vadd.f32 %v2795, %v2376
      %v2812 = vadd.f32 %v2796, %v2376
      %v2813 = vadd.f32 %v2797, %v2376
      %v2814 = vadd.f32 %v2798, %v2376
      %v2815 = vadd.f32 %v2799, %v2376
      %v2816 = vadd.f32 %v2800, %v2376
      %v2817 = vadd.f32 %v2801, %v2376
      %v2818 = vadd.f32 %v2802, %v2376
      %v2819 = vadd.f32 %v2803, %v2376
      %v2820 = vadd.f32 %v2804, %v2376
      %v2821 = vadd.f32 %v2805, %v2376
      %v2822 = vadd.f32 %v2806, %v2376
      %v2823 = vadd.f32 %v2807, %v2376
      %v2824 = vadd.f32 %v2808, %v2376
      %s2825 = scalar_lea.vmem [#allocation2], %s2448
      %v2826 = vld [vmem:[%s2825] sm:$0xff]
      %v2827 = vld [vmem:[%s2825 + $0x8] sm:$0xff]
      %v2828 = vld [vmem:[%s2825 + $0x10] sm:$0xff]
      %v2829 = vld [vmem:[%s2825 + $0x18] sm:$0xff]
      %v2830 = vld [vmem:[%s2825 + $0x20] sm:$0xff]
      %v2831 = vld [vmem:[%s2825 + $0x28] sm:$0xff]
      %v2832 = vld [vmem:[%s2825 + $0x30] sm:$0xff]
      %v2833 = vld [vmem:[%s2825 + $0x38] sm:$0xff]
      %v2834 = vld [vmem:[%s2825 + $0x40] sm:$0xff]
      %v2835 = vld [vmem:[%s2825 + $0x48] sm:$0xff]
      %v2836 = vld [vmem:[%s2825 + $0x50] sm:$0xff]
      %v2837 = vld [vmem:[%s2825 + $0x58] sm:$0xff]
      %v2838 = vld [vmem:[%s2825 + $0x60] sm:$0xff]
      %v2839 = vld [vmem:[%s2825 + $0x68] sm:$0xff]
      %v2840 = vld [vmem:[%s2825 + $0x70] sm:$0xff]
      %v2841 = vld [vmem:[%s2825 + $0x78] sm:$0xff]
      %v2842 = vadd.f32 %v2809, %v2826
      %v2843 = vadd.f32 %v2810, %v2827
      %v2844 = vadd.f32 %v2811, %v2828
      %v2845 = vadd.f32 %v2812, %v2829
      %v2846 = vadd.f32 %v2813, %v2830
      %v2847 = vadd.f32 %v2814, %v2831
      %v2848 = vadd.f32 %v2815, %v2832
      %v2849 = vadd.f32 %v2816, %v2833
      %v2850 = vadd.f32 %v2817, %v2834
      %v2851 = vadd.f32 %v2818, %v2835
      %v2852 = vadd.f32 %v2819, %v2836
      %v2853 = vadd.f32 %v2820, %v2837
      %v2854 = vadd.f32 %v2821, %v2838
      %v2855 = vadd.f32 %v2822, %v2839
      %v2856 = vadd.f32 %v2823, %v2840
      %v2857 = vadd.f32 %v2824, %v2841
      %2858 = vst [vmem:[%s2825] sm:$0xff] %v2842
      %2859 = vst [vmem:[%s2825 + $0x8] sm:$0xff] %v2843
      %2860 = vst [vmem:[%s2825 + $0x10] sm:$0xff] %v2844
      %2861 = vst [vmem:[%s2825 + $0x18] sm:$0xff] %v2845
      %2862 = vst [vmem:[%s2825 + $0x20] sm:$0xff] %v2846
      %2863 = vst [vmem:[%s2825 + $0x28] sm:$0xff] %v2847
      %2864 = vst [vmem:[%s2825 + $0x30] sm:$0xff] %v2848
      %2865 = vst [vmem:[%s2825 + $0x38] sm:$0xff] %v2849
      %2866 = vst [vmem:[%s2825 + $0x40] sm:$0xff] %v2850
      %2867 = vst [vmem:[%s2825 + $0x48] sm:$0xff] %v2851
      %2868 = vst [vmem:[%s2825 + $0x50] sm:$0xff] %v2852
      %2869 = vst [vmem:[%s2825 + $0x58] sm:$0xff] %v2853
      %2870 = vst [vmem:[%s2825 + $0x60] sm:$0xff] %v2854
      %2871 = vst [vmem:[%s2825 + $0x68] sm:$0xff] %v2855
      %2872 = vst [vmem:[%s2825 + $0x70] sm:$0xff] %v2856
      %2873 = vst [vmem:[%s2825 + $0x78] sm:$0xff] %v2857
      %v2874 = vpack.c.bf16 %v2842, %v2842
      %v2875 = vpack.c.bf16 %v2843, %v2843
      %v2876 = vpack.c.bf16 %v2844, %v2844
      %v2877 = vpack.c.bf16 %v2845, %v2845
      %v2878 = vpack.c.bf16 %v2846, %v2846
      %v2879 = vpack.c.bf16 %v2847, %v2847
      %v2880 = vpack.c.bf16 %v2848, %v2848
      %v2881 = vpack.c.bf16 %v2849, %v2849
      %v2882 = vpack.c.bf16 %v2850, %v2850
      %v2883 = vpack.c.bf16 %v2851, %v2851
      %v2884 = vpack.c.bf16 %v2852, %v2852
      %v2885 = vpack.c.bf16 %v2853, %v2853
      %v2886 = vpack.c.bf16 %v2854, %v2854
      %v2887 = vpack.c.bf16 %v2855, %v2855
      %v2888 = vpack.c.bf16 %v2856, %v2856
      %v2889 = vpack.c.bf16 %v2857, %v2857
      %s2890 = sshra.s32 %s2448, 3
      %s2891 = sand.u32 %s2448, 7
      %s2892 = smul.addr %s2890, 4
      %s2893 = scalar_lea.vmem [#allocation3], %s2892
      %2894 = vst [vmem:[%s2893] sm:$0xf] %v2874
      %2895 = vst [vmem:[%s2893 + $0x4] sm:$0xf] %v2875
      %2896 = vst [vmem:[%s2893 + $0x8] sm:$0xf] %v2876
      %2897 = vst [vmem:[%s2893 + $0xc] sm:$0xf] %v2877
      %2898 = vst [vmem:[%s2893 + $0x10] sm:$0xf] %v2878
      %2899 = vst [vmem:[%s2893 + $0x14] sm:$0xf] %v2879
      %2900 = vst [vmem:[%s2893 + $0x18] sm:$0xf] %v2880
      %2901 = vst [vmem:[%s2893 + $0x1c] sm:$0xf] %v2881
      %2902 = vst [vmem:[%s2893 + $0x20] sm:$0xf] %v2882
      %2903 = vst [vmem:[%s2893 + $0x24] sm:$0xf] %v2883
      %2904 = vst [vmem:[%s2893 + $0x28] sm:$0xf] %v2884
      %2905 = vst [vmem:[%s2893 + $0x2c] sm:$0xf] %v2885
      %2906 = vst [vmem:[%s2893 + $0x30] sm:$0xf] %v2886
      %2907 = vst [vmem:[%s2893 + $0x34] sm:$0xf] %v2887
      %2908 = vst [vmem:[%s2893 + $0x38] sm:$0xf] %v2888
      %2909 = vst [vmem:[%s2893 + $0x3c] sm:$0xf] %v2889
    $region219: #{tpu_custom_call.1} parent=1 // loop_footer
      %s2383 = sadd.s32 1, %s2379
    $region220: #{tpu_custom_call.1} parent=1 // loop_footer_branch
      %2378 = sbr.rel target = $region216
    $region221: #{tpu_custom_call.1} parent=1 // loop_exit
      _
    %v2910 = vld [vmem:[%s19] sm:$0x1]
    %v2912 = vperm.slane %v2910, 0
    %v2914 = vld [vmem:[%s20] sm:$0x1]
    %v2916 = vperm.slane %v2914, 0
    loop: start=0, step=1, limit=2
    $region245: #{tpu_custom_call.1} parent=1 // loop_pre_header
      _
    $region246: #{tpu_custom_call.1} parent=1 // loop_header
      %s2919 = sphi 0, %s2923
      %p2920 = scmp.ge.s32.totalorder %s2919, 2
    $region247: #{tpu_custom_call.1} parent=1 // loop_header_branch
      %2922 = sbr.rel (%p2920) target = $region251
    $region248: #{tpu_custom_call.1} parent=1 // loop_body
      %s2924 = smul.u32 %s2919, 128
      %s2925 = sshra.s32 %s2924, 3
      %s2926 = sand.u32 %s2924, 7
      %s2927 = smul.addr %s2925, 4
      %s2928 = scalar_lea.vmem [#allocation3], %s2927
      %v2929 = vld [vmem:[%s2928] sm:$0xf]
      %v2930 = vld [vmem:[%s2928 + $0x4] sm:$0xf]
      %v2931 = vld [vmem:[%s2928 + $0x8] sm:$0xf]
      %v2932 = vld [vmem:[%s2928 + $0xc] sm:$0xf]
      %v2933 = vld [vmem:[%s2928 + $0x10] sm:$0xf]
      %v2934 = vld [vmem:[%s2928 + $0x14] sm:$0xf]
      %v2935 = vld [vmem:[%s2928 + $0x18] sm:$0xf]
      %v2936 = vld [vmem:[%s2928 + $0x1c] sm:$0xf]
      %v2937 = vld [vmem:[%s2928 + $0x20] sm:$0xf]
      %v2938 = vld [vmem:[%s2928 + $0x24] sm:$0xf]
      %v2939 = vld [vmem:[%s2928 + $0x28] sm:$0xf]
      %v2940 = vld [vmem:[%s2928 + $0x2c] sm:$0xf]
      %v2941 = vld [vmem:[%s2928 + $0x30] sm:$0xf]
      %v2942 = vld [vmem:[%s2928 + $0x34] sm:$0xf]
      %v2943 = vld [vmem:[%s2928 + $0x38] sm:$0xf]
      %v2944 = vld [vmem:[%s2928 + $0x3c] sm:$0xf]
      %v2945 = vld [vmem:[%s18] sm:$0xf]
      %v2946 = vld [vmem:[%s18 + $0x4] sm:$0xf]
      %v2947 = vld [vmem:[%s18 + $0x8] sm:$0xf]
      %v2948 = vld [vmem:[%s18 + $0xc] sm:$0xf]
      %v2949 = vld [vmem:[%s18 + $0x10] sm:$0xf]
      %v2950 = vld [vmem:[%s18 + $0x14] sm:$0xf]
      %v2951 = vld [vmem:[%s18 + $0x18] sm:$0xf]
      %v2952 = vld [vmem:[%s18 + $0x1c] sm:$0xf]
      %v2953 = vld [vmem:[%s18 + $0x20] sm:$0xf]
      %v2954 = vld [vmem:[%s18 + $0x24] sm:$0xf]
      %v2955 = vld [vmem:[%s18 + $0x28] sm:$0xf]
      %v2956 = vld [vmem:[%s18 + $0x2c] sm:$0xf]
      %v2957 = vld [vmem:[%s18 + $0x30] sm:$0xf]
      %v2958 = vld [vmem:[%s18 + $0x34] sm:$0xf]
      %v2959 = vld [vmem:[%s18 + $0x38] sm:$0xf]
      %v2960 = vld [vmem:[%s18 + $0x3c] sm:$0xf]
      %v2977 = vunpack.c.l.b16 %v2929
      %v2978 = vunpack.c.l.b16 %v2930
      %v2979 = vunpack.c.l.b16 %v2931
      %v2980 = vunpack.c.l.b16 %v2932
      %v2981 = vunpack.c.l.b16 %v2933
      %v2982 = vunpack.c.l.b16 %v2934
      %v2983 = vunpack.c.l.b16 %v2935
      %v2984 = vunpack.c.l.b16 %v2936
      %v2985 = vunpack.c.l.b16 %v2937
      %v2986 = vunpack.c.l.b16 %v2938
      %v2987 = vunpack.c.l.b16 %v2939
      %v2988 = vunpack.c.l.b16 %v2940
      %v2989 = vunpack.c.l.b16 %v2941
      %v2990 = vunpack.c.l.b16 %v2942
      %v2991 = vunpack.c.l.b16 %v2943
      %v2992 = vunpack.c.l.b16 %v2944
      %v2993 = vpack.c.b16 %v2978, %v2977
      %v2994 = vpack.c.b16 %v2980, %v2979
      %v2995 = vpack.c.b16 %v2982, %v2981
      %v2996 = vpack.c.b16 %v2984, %v2983
      %v2997 = vpack.c.b16 %v2986, %v2985
      %v2998 = vpack.c.b16 %v2988, %v2987
      %v2999 = vpack.c.b16 %v2990, %v2989
      %v3000 = vpack.c.b16 %v2992, %v2991
      %v3025 = vunpack.c.l.b16 %v2945
      %v3026 = vunpack.c.l.b16 %v2946
      %v3027 = vunpack.c.l.b16 %v2947
      %v3028 = vunpack.c.l.b16 %v2948
      %v3029 = vunpack.c.l.b16 %v2949
      %v3030 = vunpack.c.l.b16 %v2950
      %v3031 = vunpack.c.l.b16 %v2951
      %v3032 = vunpack.c.l.b16 %v2952
      %v3033 = vunpack.c.l.b16 %v2953
      %v3034 = vunpack.c.l.b16 %v2954
      %v3035 = vunpack.c.l.b16 %v2955
      %v3036 = vunpack.c.l.b16 %v2956
      %v3037 = vunpack.c.l.b16 %v2957
      %v3038 = vunpack.c.l.b16 %v2958
      %v3039 = vunpack.c.l.b16 %v2959
      %v3040 = vunpack.c.l.b16 %v2960
      %v3041 = vpack.c.b16 %v3026, %v3025
      %v3042 = vpack.c.b16 %v3028, %v3027
      %v3043 = vpack.c.b16 %v3030, %v3029
      %v3044 = vpack.c.b16 %v3032, %v3031
      %v3045 = vpack.c.b16 %v3034, %v3033
      %v3046 = vpack.c.b16 %v3036, %v3035
      %v3047 = vpack.c.b16 %v3038, %v3037
      %v3048 = vpack.c.b16 %v3040, %v3039
      %3057 = vmatpush.bf16.msra.mxu0 %v3048
      %3058 = vmatpush.bf16.msra.mxu0 %v3047
      %3059 = vmatpush.bf16.msra.mxu0 %v3046
      %3060 = vmatpush.bf16.msra.mxu0 %v3045
      %3061 = vmatpush.bf16.msra.mxu0 %v3044
      %3062 = vmatpush.bf16.msra.mxu0 %v3043
      %3063 = vmatpush.bf16.msra.mxu0 %v3042
      %3064 = vmatpush.bf16.msra.mxu0 %v3041
      %3065 = vmatmul.bf16.gmra.mxu0 %v2993
      %v3066 = vpop.f32.mrf.mxu0
      %v3067 = vadd.f32 %v2912, %v3066
      %v3068 = vpop.f32.mrf.mxu0
      %v3069 = vadd.f32 %v2912, %v3068
      %3070 = vmatmul.bf16.gmra.mxu0 %v2994
      %v3071 = vpop.f32.mrf.mxu0
      %v3072 = vadd.f32 %v2912, %v3071
      %v3073 = vpop.f32.mrf.mxu0
      %v3074 = vadd.f32 %v2912, %v3073
      %3075 = vmatmul.bf16.gmra.mxu0 %v2995
      %v3076 = vpop.f32.mrf.mxu0
      %v3077 = vadd.f32 %v2912, %v3076
      %v3078 = vpop.f32.mrf.mxu0
      %v3079 = vadd.f32 %v2912, %v3078
      %3080 = vmatmul.bf16.gmra.mxu0 %v2996
      %v3081 = vpop.f32.mrf.mxu0
      %v3082 = vadd.f32 %v2912, %v3081
      %v3083 = vpop.f32.mrf.mxu0
      %v3084 = vadd.f32 %v2912, %v3083
      %3085 = vmatmul.bf16.gmra.mxu0 %v2997
      %v3086 = vpop.f32.mrf.mxu0
      %v3087 = vadd.f32 %v2912, %v3086
      %v3088 = vpop.f32.mrf.mxu0
      %v3089 = vadd.f32 %v2912, %v3088
      %3090 = vmatmul.bf16.gmra.mxu0 %v2998
      %v3091 = vpop.f32.mrf.mxu0
      %v3092 = vadd.f32 %v2912, %v3091
      %v3093 = vpop.f32.mrf.mxu0
      %v3094 = vadd.f32 %v2912, %v3093
      %3095 = vmatmul.bf16.gmra.mxu0 %v2999
      %v3096 = vpop.f32.mrf.mxu0
      %v3097 = vadd.f32 %v2912, %v3096
      %v3098 = vpop.f32.mrf.mxu0
      %v3099 = vadd.f32 %v2912, %v3098
      %3100 = vmatmul.bf16.gmra.mxu0 %v3000
      %v3101 = vpop.f32.mrf.mxu0
      %v3102 = vadd.f32 %v2912, %v3101
      %v3103 = vpop.f32.mrf.mxu0
      %v3104 = vadd.f32 %v2912, %v3103
      %3105 = vdwg.mxu0
      %vm3106 = vcmp.gt.f32.partialorder %v3067, 0.0
      %vm3107 = vcmp.gt.f32.partialorder %v3069, 0.0
      %vm3108 = vcmp.gt.f32.partialorder %v3072, 0.0
      %vm3109 = vcmp.gt.f32.partialorder %v3074, 0.0
      %vm3110 = vcmp.gt.f32.partialorder %v3077, 0.0
      %vm3111 = vcmp.gt.f32.partialorder %v3079, 0.0
      %vm3112 = vcmp.gt.f32.partialorder %v3082, 0.0
      %vm3113 = vcmp.gt.f32.partialorder %v3084, 0.0
      %vm3114 = vcmp.gt.f32.partialorder %v3087, 0.0
      %vm3115 = vcmp.gt.f32.partialorder %v3089, 0.0
      %vm3116 = vcmp.gt.f32.partialorder %v3092, 0.0
      %vm3117 = vcmp.gt.f32.partialorder %v3094, 0.0
      %vm3118 = vcmp.gt.f32.partialorder %v3097, 0.0
      %vm3119 = vcmp.gt.f32.partialorder %v3099, 0.0
      %vm3120 = vcmp.gt.f32.partialorder %v3102, 0.0
      %vm3121 = vcmp.gt.f32.partialorder %v3104, 0.0
      %v3122 = vmul.f32 %v3067, 0.01
      %v3123 = vmul.f32 %v3069, 0.01
      %v3124 = vmul.f32 %v3072, 0.01
      %v3125 = vmul.f32 %v3074, 0.01
      %v3126 = vmul.f32 %v3077, 0.01
      %v3127 = vmul.f32 %v3079, 0.01
      %v3128 = vmul.f32 %v3082, 0.01
      %v3129 = vmul.f32 %v3084, 0.01
      %v3130 = vmul.f32 %v3087, 0.01
      %v3131 = vmul.f32 %v3089, 0.01
      %v3132 = vmul.f32 %v3092, 0.01
      %v3133 = vmul.f32 %v3094, 0.01
      %v3134 = vmul.f32 %v3097, 0.01
      %v3135 = vmul.f32 %v3099, 0.01
      %v3136 = vmul.f32 %v3102, 0.01
      %v3137 = vmul.f32 %v3104, 0.01
      %v3138 = vsel %vm3106, %v3067, %v3122
      %v3139 = vsel %vm3107, %v3069, %v3123
      %v3140 = vsel %vm3108, %v3072, %v3124
      %v3141 = vsel %vm3109, %v3074, %v3125
      %v3142 = vsel %vm3110, %v3077, %v3126
      %v3143 = vsel %vm3111, %v3079, %v3127
      %v3144 = vsel %vm3112, %v3082, %v3128
      %v3145 = vsel %vm3113, %v3084, %v3129
      %v3146 = vsel %vm3114, %v3087, %v3130
      %v3147 = vsel %vm3115, %v3089, %v3131
      %v3148 = vsel %vm3116, %v3092, %v3132
      %v3149 = vsel %vm3117, %v3094, %v3133
      %v3150 = vsel %vm3118, %v3097, %v3134
      %v3151 = vsel %vm3119, %v3099, %v3135
      %v3152 = vsel %vm3120, %v3102, %v3136
      %v3153 = vsel %vm3121, %v3104, %v3137
      %v3154 = vmul.f32 %v3138, %v2916
      %v3155 = vmul.f32 %v3139, %v2916
      %v3156 = vmul.f32 %v3140, %v2916
      %v3157 = vmul.f32 %v3141, %v2916
      %v3158 = vmul.f32 %v3142, %v2916
      %v3159 = vmul.f32 %v3143, %v2916
      %v3160 = vmul.f32 %v3144, %v2916
      %v3161 = vmul.f32 %v3145, %v2916
      %v3162 = vmul.f32 %v3146, %v2916
      %v3163 = vmul.f32 %v3147, %v2916
      %v3164 = vmul.f32 %v3148, %v2916
      %v3165 = vmul.f32 %v3149, %v2916
      %v3166 = vmul.f32 %v3150, %v2916
      %v3167 = vmul.f32 %v3151, %v2916
      %v3168 = vmul.f32 %v3152, %v2916
      %v3169 = vmul.f32 %v3153, %v2916
      %vm3170 = vcmask 523264
      %v3171 = vsel %vm3170, %v3154, 0.0
      %3172 = vadd.xlane.f32.xlu0 %v3171
      %v3173 = vpop.xlane.xlu0 %3172
      %v3174 = vsel %vm3170, %v3155, 0.0
      %3175 = vadd.xlane.f32.xlu0 %v3174
      %v3176 = vpop.xlane.xlu0 %3175
      %v3177 = vsel %vm3170, %v3156, 0.0
      %3178 = vadd.xlane.f32.xlu0 %v3177
      %v3179 = vpop.xlane.xlu0 %3178
      %v3180 = vsel %vm3170, %v3157, 0.0
      %3181 = vadd.xlane.f32.xlu0 %v3180
      %v3182 = vpop.xlane.xlu0 %3181
      %v3183 = vsel %vm3170, %v3158, 0.0
      %3184 = vadd.xlane.f32.xlu0 %v3183
      %v3185 = vpop.xlane.xlu0 %3184
      %v3186 = vsel %vm3170, %v3159, 0.0
      %3187 = vadd.xlane.f32.xlu0 %v3186
      %v3188 = vpop.xlane.xlu0 %3187
      %v3189 = vsel %vm3170, %v3160, 0.0
      %3190 = vadd.xlane.f32.xlu0 %v3189
      %v3191 = vpop.xlane.xlu0 %3190
      %v3192 = vsel %vm3170, %v3161, 0.0
      %3193 = vadd.xlane.f32.xlu0 %v3192
      %v3194 = vpop.xlane.xlu0 %3193
      %v3195 = vsel %vm3170, %v3162, 0.0
      %3196 = vadd.xlane.f32.xlu0 %v3195
      %v3197 = vpop.xlane.xlu0 %3196
      %v3198 = vsel %vm3170, %v3163, 0.0
      %3199 = vadd.xlane.f32.xlu0 %v3198
      %v3200 = vpop.xlane.xlu0 %3199
      %v3201 = vsel %vm3170, %v3164, 0.0
      %3202 = vadd.xlane.f32.xlu0 %v3201
      %v3203 = vpop.xlane.xlu0 %3202
      %v3204 = vsel %vm3170, %v3165, 0.0
      %3205 = vadd.xlane.f32.xlu0 %v3204
      %v3206 = vpop.xlane.xlu0 %3205
      %v3207 = vsel %vm3170, %v3166, 0.0
      %3208 = vadd.xlane.f32.xlu0 %v3207
      %v3209 = vpop.xlane.xlu0 %3208
      %v3210 = vsel %vm3170, %v3167, 0.0
      %3211 = vadd.xlane.f32.xlu0 %v3210
      %v3212 = vpop.xlane.xlu0 %3211
      %v3213 = vsel %vm3170, %v3168, 0.0
      %3214 = vadd.xlane.f32.xlu0 %v3213
      %v3215 = vpop.xlane.xlu0 %3214
      %v3216 = vsel %vm3170, %v3169, 0.0
      %3217 = vadd.xlane.f32.xlu0 %v3216
      %v3218 = vpop.xlane.xlu0 %3217
      %v3219 = vld [vmem:[#allocation8] sm:$0x1]
      %v3221 = vperm.slane %v3219, 0
      %v3223 = vadd.f32 %v3173, %v3221
      %v3224 = vadd.f32 %v3176, %v3221
      %v3225 = vadd.f32 %v3179, %v3221
      %v3226 = vadd.f32 %v3182, %v3221
      %v3227 = vadd.f32 %v3185, %v3221
      %v3228 = vadd.f32 %v3188, %v3221
      %v3229 = vadd.f32 %v3191, %v3221
      %v3230 = vadd.f32 %v3194, %v3221
      %v3231 = vadd.f32 %v3197, %v3221
      %v3232 = vadd.f32 %v3200, %v3221
      %v3233 = vadd.f32 %v3203, %v3221
      %v3234 = vadd.f32 %v3206, %v3221
      %v3235 = vadd.f32 %v3209, %v3221
      %v3236 = vadd.f32 %v3212, %v3221
      %v3237 = vadd.f32 %v3215, %v3221
      %v3238 = vadd.f32 %v3218, %v3221
      %s3239 = scalar_lea.vmem %s3, %s2924
      %v3240 = vld [vmem:[%s3239] sm:$0xff]
      %v3241 = vld [vmem:[%s3239 + $0x8] sm:$0xff]
      %v3242 = vld [vmem:[%s3239 + $0x10] sm:$0xff]
      %v3243 = vld [vmem:[%s3239 + $0x18] sm:$0xff]
      %v3244 = vld [vmem:[%s3239 + $0x20] sm:$0xff]
      %v3245 = vld [vmem:[%s3239 + $0x28] sm:$0xff]
      %v3246 = vld [vmem:[%s3239 + $0x30] sm:$0xff]
      %v3247 = vld [vmem:[%s3239 + $0x38] sm:$0xff]
      %v3248 = vld [vmem:[%s3239 + $0x40] sm:$0xff]
      %v3249 = vld [vmem:[%s3239 + $0x48] sm:$0xff]
      %v3250 = vld [vmem:[%s3239 + $0x50] sm:$0xff]
      %v3251 = vld [vmem:[%s3239 + $0x58] sm:$0xff]
      %v3252 = vld [vmem:[%s3239 + $0x60] sm:$0xff]
      %v3253 = vld [vmem:[%s3239 + $0x68] sm:$0xff]
      %v3254 = vld [vmem:[%s3239 + $0x70] sm:$0xff]
      %v3255 = vld [vmem:[%s3239 + $0x78] sm:$0xff]
      %vm3256 = vcmp.gt.f32.partialorder %v3240, 0.0
      %vm3257 = vcmp.gt.f32.partialorder %v3241, 0.0
      %vm3258 = vcmp.gt.f32.partialorder %v3242, 0.0
      %vm3259 = vcmp.gt.f32.partialorder %v3243, 0.0
      %vm3260 = vcmp.gt.f32.partialorder %v3244, 0.0
      %vm3261 = vcmp.gt.f32.partialorder %v3245, 0.0
      %vm3262 = vcmp.gt.f32.partialorder %v3246, 0.0
      %vm3263 = vcmp.gt.f32.partialorder %v3247, 0.0
      %vm3264 = vcmp.gt.f32.partialorder %v3248, 0.0
      %vm3265 = vcmp.gt.f32.partialorder %v3249, 0.0
      %vm3266 = vcmp.gt.f32.partialorder %v3250, 0.0
      %vm3267 = vcmp.gt.f32.partialorder %v3251, 0.0
      %vm3268 = vcmp.gt.f32.partialorder %v3252, 0.0
      %vm3269 = vcmp.gt.f32.partialorder %v3253, 0.0
      %vm3270 = vcmp.gt.f32.partialorder %v3254, 0.0
      %vm3271 = vcmp.gt.f32.partialorder %v3255, 0.0
      %v3272 = vsel %vm3256, %v3223, -1e+30
      %v3273 = vsel %vm3257, %v3224, -1e+30
      %v3274 = vsel %vm3258, %v3225, -1e+30
      %v3275 = vsel %vm3259, %v3226, -1e+30
      %v3276 = vsel %vm3260, %v3227, -1e+30
      %v3277 = vsel %vm3261, %v3228, -1e+30
      %v3278 = vsel %vm3262, %v3229, -1e+30
      %v3279 = vsel %vm3263, %v3230, -1e+30
      %v3280 = vsel %vm3264, %v3231, -1e+30
      %v3281 = vsel %vm3265, %v3232, -1e+30
      %v3282 = vsel %vm3266, %v3233, -1e+30
      %v3283 = vsel %vm3267, %v3234, -1e+30
      %v3284 = vsel %vm3268, %v3235, -1e+30
      %v3285 = vsel %vm3269, %v3236, -1e+30
      %v3286 = vsel %vm3270, %v3237, -1e+30
      %v3287 = vsel %vm3271, %v3238, -1e+30
      %s3288 = scalar_lea.vmem [#allocation6], %s2924
      %vm3289 = vcmask 7168
      %3290 = vst.msk [vmem:[%s3288] sm:$0xff] %vm3289, %v3272
      %3291 = vst.msk [vmem:[%s3288 + $0x8] sm:$0xff] %vm3289, %v3273
      %3292 = vst.msk [vmem:[%s3288 + $0x10] sm:$0xff] %vm3289, %v3274
      %3293 = vst.msk [vmem:[%s3288 + $0x18] sm:$0xff] %vm3289, %v3275
      %3294 = vst.msk [vmem:[%s3288 + $0x20] sm:$0xff] %vm3289, %v3276
      %3295 = vst.msk [vmem:[%s3288 + $0x28] sm:$0xff] %vm3289, %v3277
      %3296 = vst.msk [vmem:[%s3288 + $0x30] sm:$0xff] %vm3289, %v3278
      %3297 = vst.msk [vmem:[%s3288 + $0x38] sm:$0xff] %vm3289, %v3279
      %3298 = vst.msk [vmem:[%s3288 + $0x40] sm:$0xff] %vm3289, %v3280
      %3299 = vst.msk [vmem:[%s3288 + $0x48] sm:$0xff] %vm3289, %v3281
      %3300 = vst.msk [vmem:[%s3288 + $0x50] sm:$0xff] %vm3289, %v3282
      %3301 = vst.msk [vmem:[%s3288 + $0x58] sm:$0xff] %vm3289, %v3283
      %3302 = vst.msk [vmem:[%s3288 + $0x60] sm:$0xff] %vm3289, %v3284
      %3303 = vst.msk [vmem:[%s3288 + $0x68] sm:$0xff] %vm3289, %v3285
      %3304 = vst.msk [vmem:[%s3288 + $0x70] sm:$0xff] %vm3289, %v3286
      %3305 = vst.msk [vmem:[%s3288 + $0x78] sm:$0xff] %vm3289, %v3287
    $region249: #{tpu_custom_call.1} parent=1 // loop_footer
      %s2923 = sadd.s32 1, %s2919
    $region250: #{tpu_custom_call.1} parent=1 // loop_footer_branch
      %2918 = sbr.rel target = $region246
    $region251: #{tpu_custom_call.1} parent=1 // loop_exit
      _
    %v3306 = vld [vmem:[#allocation6] sm:$0xff]
    %v3307 = vld [vmem:[#allocation6 + $0x8] sm:$0xff]
    %v3308 = vld [vmem:[#allocation6 + $0x10] sm:$0xff]
    %v3309 = vld [vmem:[#allocation6 + $0x18] sm:$0xff]
    %v3310 = vld [vmem:[#allocation6 + $0x20] sm:$0xff]
    %v3311 = vld [vmem:[#allocation6 + $0x28] sm:$0xff]
    %v3312 = vld [vmem:[#allocation6 + $0x30] sm:$0xff]
    %v3313 = vld [vmem:[#allocation6 + $0x38] sm:$0xff]
    %v3314 = vld [vmem:[#allocation6 + $0x40] sm:$0xff]
    %v3315 = vld [vmem:[#allocation6 + $0x48] sm:$0xff]
    %v3316 = vld [vmem:[#allocation6 + $0x50] sm:$0xff]
    %v3317 = vld [vmem:[#allocation6 + $0x58] sm:$0xff]
    %v3318 = vld [vmem:[#allocation6 + $0x60] sm:$0xff]
    %v3319 = vld [vmem:[#allocation6 + $0x68] sm:$0xff]
    %v3320 = vld [vmem:[#allocation6 + $0x70] sm:$0xff]
    %v3321 = vld [vmem:[#allocation6 + $0x78] sm:$0xff]
    %v3322 = vld [vmem:[#allocation6 + $0x80] sm:$0xff]
    %v3323 = vld [vmem:[#allocation6 + $0x88] sm:$0xff]
    %v3324 = vld [vmem:[#allocation6 + $0x90] sm:$0xff]
    %v3325 = vld [vmem:[#allocation6 + $0x98] sm:$0xff]
    %v3326 = vld [vmem:[#allocation6 + $0xa0] sm:$0xff]
    %v3327 = vld [vmem:[#allocation6 + $0xa8] sm:$0xff]
    %v3328 = vld [vmem:[#allocation6 + $0xb0] sm:$0xff]
    %v3329 = vld [vmem:[#allocation6 + $0xb8] sm:$0xff]
    %v3330 = vld [vmem:[#allocation6 + $0xc0] sm:$0xff]
    %v3331 = vld [vmem:[#allocation6 + $0xc8] sm:$0xff]
    %v3332 = vld [vmem:[#allocation6 + $0xd0] sm:$0xff]
    %v3333 = vld [vmem:[#allocation6 + $0xd8] sm:$0xff]
    %v3334 = vld [vmem:[#allocation6 + $0xe0] sm:$0xff]
    %v3335 = vld [vmem:[#allocation6 + $0xe8] sm:$0xff]
    %v3336 = vld [vmem:[#allocation6 + $0xf0] sm:$0xff]
    %v3337 = vld [vmem:[#allocation6 + $0xf8] sm:$0xff]
    %vm3338 = vcmask 7168
    %v3339 = vsel %vm3338, %v3306, -inf
    %v3340 = vsel %vm3338, %v3307, -inf
    %v3341 = vsel %vm3338, %v3308, -inf
    %v3342 = vsel %vm3338, %v3309, -inf
    %v3343 = vsel %vm3338, %v3310, -inf
    %v3344 = vmax.f32 %v3339, %v3343
    %v3345 = vsel %vm3338, %v3311, -inf
    %v3346 = vmax.f32 %v3340, %v3345
    %v3347 = vsel %vm3338, %v3312, -inf
    %v3348 = vmax.f32 %v3341, %v3347
    %v3349 = vsel %vm3338, %v3313, -inf
    %v3350 = vmax.f32 %v3342, %v3349
    %v3351 = vsel %vm3338, %v3314, -inf
    %v3352 = vmax.f32 %v3344, %v3351
    %v3353 = vsel %vm3338, %v3315, -inf
    %v3354 = vmax.f32 %v3346, %v3353
    %v3355 = vsel %vm3338, %v3316, -inf
    %v3356 = vmax.f32 %v3348, %v3355
    %v3357 = vsel %vm3338, %v3317, -inf
    %v3358 = vmax.f32 %v3350, %v3357
    %v3359 = vsel %vm3338, %v3318, -inf
    %v3360 = vmax.f32 %v3352, %v3359
    %v3361 = vsel %vm3338, %v3319, -inf
    %v3362 = vmax.f32 %v3354, %v3361
    %v3363 = vsel %vm3338, %v3320, -inf
    %v3364 = vmax.f32 %v3356, %v3363
    %v3365 = vsel %vm3338, %v3321, -inf
    %v3366 = vmax.f32 %v3358, %v3365
    %v3367 = vsel %vm3338, %v3322, -inf
    %v3368 = vmax.f32 %v3360, %v3367
    %v3369 = vsel %vm3338, %v3323, -inf
    %v3370 = vmax.f32 %v3362, %v3369
    %v3371 = vsel %vm3338, %v3324, -inf
    %v3372 = vmax.f32 %v3364, %v3371
    %v3373 = vsel %vm3338, %v3325, -inf
    %v3374 = vmax.f32 %v3366, %v3373
    %v3375 = vsel %vm3338, %v3326, -inf
    %v3376 = vmax.f32 %v3368, %v3375
    %v3377 = vsel %vm3338, %v3327, -inf
    %v3378 = vmax.f32 %v3370, %v3377
    %v3379 = vsel %vm3338, %v3328, -inf
    %v3380 = vmax.f32 %v3372, %v3379
    %v3381 = vsel %vm3338, %v3329, -inf
    %v3382 = vmax.f32 %v3374, %v3381
    %v3383 = vsel %vm3338, %v3330, -inf
    %v3384 = vmax.f32 %v3376, %v3383
    %v3385 = vsel %vm3338, %v3331, -inf
    %v3386 = vmax.f32 %v3378, %v3385
    %v3387 = vsel %vm3338, %v3332, -inf
    %v3388 = vmax.f32 %v3380, %v3387
    %v3389 = vsel %vm3338, %v3333, -inf
    %v3390 = vmax.f32 %v3382, %v3389
    %v3391 = vsel %vm3338, %v3334, -inf
    %v3392 = vmax.f32 %v3384, %v3391
    %v3393 = vsel %vm3338, %v3335, -inf
    %v3394 = vmax.f32 %v3386, %v3393
    %v3395 = vsel %vm3338, %v3336, -inf
    %v3396 = vmax.f32 %v3388, %v3395
    %v3397 = vsel %vm3338, %v3337, -inf
    %v3398 = vmax.f32 %v3390, %v3397
    %v3399 = vmax.f32 %v3392, %v3394
    %v3400 = vmax.f32 %v3396, %v3398
    %v3401 = vmax.f32 %v3399, %v3400
    %v3402 = vrot.slane %v3401, 4
    %v3403 = vmax.f32 %v3401, %v3402
    %v3404 = vrot.slane %v3403, 2
    %v3405 = vmax.f32 %v3403, %v3404
    %v3406 = vrot.slane %v3405, 1
    %v3407 = vmax.f32 %v3405, %v3406
    %v3408 = vsub.f32 %v3306, %v3407
    %v3409 = vsub.f32 %v3307, %v3407
    %v3410 = vsub.f32 %v3308, %v3407
    %v3411 = vsub.f32 %v3309, %v3407
    %v3412 = vsub.f32 %v3310, %v3407
    %v3413 = vsub.f32 %v3311, %v3407
    %v3414 = vsub.f32 %v3312, %v3407
    %v3415 = vsub.f32 %v3313, %v3407
    %v3416 = vsub.f32 %v3314, %v3407
    %v3417 = vsub.f32 %v3315, %v3407
    %v3418 = vsub.f32 %v3316, %v3407
    %v3419 = vsub.f32 %v3317, %v3407
    %v3420 = vsub.f32 %v3318, %v3407
    %v3421 = vsub.f32 %v3319, %v3407
    %v3422 = vsub.f32 %v3320, %v3407
    %v3423 = vsub.f32 %v3321, %v3407
    %v3424 = vsub.f32 %v3322, %v3407
    %v3425 = vsub.f32 %v3323, %v3407
    %v3426 = vsub.f32 %v3324, %v3407
    %v3427 = vsub.f32 %v3325, %v3407
    %v3428 = vsub.f32 %v3326, %v3407
    %v3429 = vsub.f32 %v3327, %v3407
    %v3430 = vsub.f32 %v3328, %v3407
    %v3431 = vsub.f32 %v3329, %v3407
    %v3432 = vsub.f32 %v3330, %v3407
    %v3433 = vsub.f32 %v3331, %v3407
    %v3434 = vsub.f32 %v3332, %v3407
    %v3435 = vsub.f32 %v3333, %v3407
    %v3436 = vsub.f32 %v3334, %v3407
    %v3437 = vsub.f32 %v3335, %v3407
    %v3438 = vsub.f32 %v3336, %v3407
    %v3439 = vsub.f32 %v3337, %v3407
    %v3440 = vmul.f32 %v3408, 1.442695
    %v3441 = vpow.pop %v3440
    %v3442 = vmul.f32 %v3409, 1.442695
    %v3443 = vpow.pop %v3442
    %v3444 = vmul.f32 %v3410, 1.442695
    %v3445 = vpow.pop %v3444
    %v3446 = vmul.f32 %v3411, 1.442695
    %v3447 = vpow.pop %v3446
    %v3448 = vmul.f32 %v3412, 1.442695
    %v3449 = vpow.pop %v3448
    %v3450 = vmul.f32 %v3413, 1.442695
    %v3451 = vpow.pop %v3450
    %v3452 = vmul.f32 %v3414, 1.442695
    %v3453 = vpow.pop %v3452
    %v3454 = vmul.f32 %v3415, 1.442695
    %v3455 = vpow.pop %v3454
    %v3456 = vmul.f32 %v3416, 1.442695
    %v3457 = vpow.pop %v3456
    %v3458 = vmul.f32 %v3417, 1.442695
    %v3459 = vpow.pop %v3458
    %v3460 = vmul.f32 %v3418, 1.442695
    %v3461 = vpow.pop %v3460
    %v3462 = vmul.f32 %v3419, 1.442695
    %v3463 = vpow.pop %v3462
    %v3464 = vmul.f32 %v3420, 1.442695
    %v3465 = vpow.pop %v3464
    %v3466 = vmul.f32 %v3421, 1.442695
    %v3467 = vpow.pop %v3466
    %v3468 = vmul.f32 %v3422, 1.442695
    %v3469 = vpow.pop %v3468
    %v3470 = vmul.f32 %v3423, 1.442695
    %v3471 = vpow.pop %v3470
    %v3472 = vmul.f32 %v3424, 1.442695
    %v3473 = vpow.pop %v3472
    %v3474 = vmul.f32 %v3425, 1.442695
    %v3475 = vpow.pop %v3474
    %v3476 = vmul.f32 %v3426, 1.442695
    %v3477 = vpow.pop %v3476
    %v3478 = vmul.f32 %v3427, 1.442695
    %v3479 = vpow.pop %v3478
    %v3480 = vmul.f32 %v3428, 1.442695
    %v3481 = vpow.pop %v3480
    %v3482 = vmul.f32 %v3429, 1.442695
    %v3483 = vpow.pop %v3482
    %v3484 = vmul.f32 %v3430, 1.442695
    %v3485 = vpow.pop %v3484
    %v3486 = vmul.f32 %v3431, 1.442695
    %v3487 = vpow.pop %v3486
    %v3488 = vmul.f32 %v3432, 1.442695
    %v3489 = vpow.pop %v3488
    %v3490 = vmul.f32 %v3433, 1.442695
    %v3491 = vpow.pop %v3490
    %v3492 = vmul.f32 %v3434, 1.442695
    %v3493 = vpow.pop %v3492
    %v3494 = vmul.f32 %v3435, 1.442695
    %v3495 = vpow.pop %v3494
    %v3496 = vmul.f32 %v3436, 1.442695
    %v3497 = vpow.pop %v3496
    %v3498 = vmul.f32 %v3437, 1.442695
    %v3499 = vpow.pop %v3498
    %v3500 = vmul.f32 %v3438, 1.442695
    %v3501 = vpow.pop %v3500
    %v3502 = vmul.f32 %v3439, 1.442695
    %v3503 = vpow.pop %v3502
    %v3504 = vsel %vm3338, %v3441, 0.0
    %v3505 = vsel %vm3338, %v3443, 0.0
    %v3506 = vadd.f32 %v3504, %v3505
    %v3507 = vsel %vm3338, %v3445, 0.0
    %v3508 = vadd.f32 %v3506, %v3507
    %v3509 = vsel %vm3338, %v3447, 0.0
    %v3510 = vadd.f32 %v3508, %v3509
    %v3511 = vsel %vm3338, %v3449, 0.0
    %v3512 = vadd.f32 %v3510, %v3511
    %v3513 = vsel %vm3338, %v3451, 0.0
    %v3514 = vadd.f32 %v3512, %v3513
    %v3515 = vsel %vm3338, %v3453, 0.0
    %v3516 = vadd.f32 %v3514, %v3515
    %v3517 = vsel %vm3338, %v3455, 0.0
    %v3518 = vadd.f32 %v3516, %v3517
    %v3519 = vsel %vm3338, %v3457, 0.0
    %v3520 = vadd.f32 %v3518, %v3519
    %v3521 = vsel %vm3338, %v3459, 0.0
    %v3522 = vadd.f32 %v3520, %v3521
    %v3523 = vsel %vm3338, %v3461, 0.0
    %v3524 = vadd.f32 %v3522, %v3523
    %v3525 = vsel %vm3338, %v3463, 0.0
    %v3526 = vadd.f32 %v3524, %v3525
    %v3527 = vsel %vm3338, %v3465, 0.0
    %v3528 = vadd.f32 %v3526, %v3527
    %v3529 = vsel %vm3338, %v3467, 0.0
    %v3530 = vadd.f32 %v3528, %v3529
    %v3531 = vsel %vm3338, %v3469, 0.0
    %v3532 = vadd.f32 %v3530, %v3531
    %v3533 = vsel %vm3338, %v3471, 0.0
    %v3534 = vadd.f32 %v3532, %v3533
    %v3535 = vsel %vm3338, %v3473, 0.0
    %v3536 = vadd.f32 %v3534, %v3535
    %v3537 = vsel %vm3338, %v3475, 0.0
    %v3538 = vadd.f32 %v3536, %v3537
    %v3539 = vsel %vm3338, %v3477, 0.0
    %v3540 = vadd.f32 %v3538, %v3539
    %v3541 = vsel %vm3338, %v3479, 0.0
    %v3542 = vadd.f32 %v3540, %v3541
    %v3543 = vsel %vm3338, %v3481, 0.0
    %v3544 = vadd.f32 %v3542, %v3543
    %v3545 = vsel %vm3338, %v3483, 0.0
    %v3546 = vadd.f32 %v3544, %v3545
    %v3547 = vsel %vm3338, %v3485, 0.0
    %v3548 = vadd.f32 %v3546, %v3547
    %v3549 = vsel %vm3338, %v3487, 0.0
    %v3550 = vadd.f32 %v3548, %v3549
    %v3551 = vsel %vm3338, %v3489, 0.0
    %v3552 = vadd.f32 %v3550, %v3551
    %v3553 = vsel %vm3338, %v3491, 0.0
    %v3554 = vadd.f32 %v3552, %v3553
    %v3555 = vsel %vm3338, %v3493, 0.0
    %v3556 = vadd.f32 %v3554, %v3555
    %v3557 = vsel %vm3338, %v3495, 0.0
    %v3558 = vadd.f32 %v3556, %v3557
    %v3559 = vsel %vm3338, %v3497, 0.0
    %v3560 = vadd.f32 %v3558, %v3559
    %v3561 = vsel %vm3338, %v3499, 0.0
    %v3562 = vadd.f32 %v3560, %v3561
    %v3563 = vsel %vm3338, %v3501, 0.0
    %v3564 = vadd.f32 %v3562, %v3563
    %v3565 = vsel %vm3338, %v3503, 0.0
    %v3566 = vadd.f32 %v3564, %v3565
    %v3567 = vrot.slane %v3566, 4
    %v3568 = vadd.f32 %v3566, %v3567
    %v3569 = vrot.slane %v3568, 2
    %v3570 = vadd.f32 %v3568, %v3569
    %v3571 = vrot.slane %v3570, 1
    %v3572 = vadd.f32 %v3570, %v3571
    %v3573 = vrcp.pop %v3572
    loop: start=0, step=1, limit=2
    $region252: #{tpu_custom_call.1} parent=1 // loop_pre_header
      _
    $region253: #{tpu_custom_call.1} parent=1 // loop_header
      %s3575 = sphi 0, %s3579
      %p3576 = scmp.ge.s32.totalorder %s3575, 2
    $region254: #{tpu_custom_call.1} parent=1 // loop_header_branch
      %3578 = sbr.rel (%p3576) target = $region258
    $region255: #{tpu_custom_call.1} parent=1 // loop_body
      %s3580 = smul.u32 %s3575, 128
      %s3581 = scalar_lea.vmem [#allocation6], %s3580
      %v3582 = vld [vmem:[%s3581] sm:$0xff]
      %v3583 = vld [vmem:[%s3581 + $0x8] sm:$0xff]
      %v3584 = vld [vmem:[%s3581 + $0x10] sm:$0xff]
      %v3585 = vld [vmem:[%s3581 + $0x18] sm:$0xff]
      %v3586 = vld [vmem:[%s3581 + $0x20] sm:$0xff]
      %v3587 = vld [vmem:[%s3581 + $0x28] sm:$0xff]
      %v3588 = vld [vmem:[%s3581 + $0x30] sm:$0xff]
      %v3589 = vld [vmem:[%s3581 + $0x38] sm:$0xff]
      %v3590 = vld [vmem:[%s3581 + $0x40] sm:$0xff]
      %v3591 = vld [vmem:[%s3581 + $0x48] sm:$0xff]
      %v3592 = vld [vmem:[%s3581 + $0x50] sm:$0xff]
      %v3593 = vld [vmem:[%s3581 + $0x58] sm:$0xff]
      %v3594 = vld [vmem:[%s3581 + $0x60] sm:$0xff]
      %v3595 = vld [vmem:[%s3581 + $0x68] sm:$0xff]
      %v3596 = vld [vmem:[%s3581 + $0x70] sm:$0xff]
      %v3597 = vld [vmem:[%s3581 + $0x78] sm:$0xff]
      %v3598 = vsub.f32 %v3582, %v3407
      %v3599 = vsub.f32 %v3583, %v3407
      %v3600 = vsub.f32 %v3584, %v3407
      %v3601 = vsub.f32 %v3585, %v3407
      %v3602 = vsub.f32 %v3586, %v3407
      %v3603 = vsub.f32 %v3587, %v3407
      %v3604 = vsub.f32 %v3588, %v3407
      %v3605 = vsub.f32 %v3589, %v3407
      %v3606 = vsub.f32 %v3590, %v3407
      %v3607 = vsub.f32 %v3591, %v3407
      %v3608 = vsub.f32 %v3592, %v3407
      %v3609 = vsub.f32 %v3593, %v3407
      %v3610 = vsub.f32 %v3594, %v3407
      %v3611 = vsub.f32 %v3595, %v3407
      %v3612 = vsub.f32 %v3596, %v3407
      %v3613 = vsub.f32 %v3597, %v3407
      %v3614 = vmul.f32 %v3598, 1.442695
      %v3615 = vpow.pop %v3614
      %v3616 = vmul.f32 %v3599, 1.442695
      %v3617 = vpow.pop %v3616
      %v3618 = vmul.f32 %v3600, 1.442695
      %v3619 = vpow.pop %v3618
      %v3620 = vmul.f32 %v3601, 1.442695
      %v3621 = vpow.pop %v3620
      %v3622 = vmul.f32 %v3602, 1.442695
      %v3623 = vpow.pop %v3622
      %v3624 = vmul.f32 %v3603, 1.442695
      %v3625 = vpow.pop %v3624
      %v3626 = vmul.f32 %v3604, 1.442695
      %v3627 = vpow.pop %v3626
      %v3628 = vmul.f32 %v3605, 1.442695
      %v3629 = vpow.pop %v3628
      %v3630 = vmul.f32 %v3606, 1.442695
      %v3631 = vpow.pop %v3630
      %v3632 = vmul.f32 %v3607, 1.442695
      %v3633 = vpow.pop %v3632
      %v3634 = vmul.f32 %v3608, 1.442695
      %v3635 = vpow.pop %v3634
      %v3636 = vmul.f32 %v3609, 1.442695
      %v3637 = vpow.pop %v3636
      %v3638 = vmul.f32 %v3610, 1.442695
      %v3639 = vpow.pop %v3638
      %v3640 = vmul.f32 %v3611, 1.442695
      %v3641 = vpow.pop %v3640
      %v3642 = vmul.f32 %v3612, 1.442695
      %v3643 = vpow.pop %v3642
      %v3644 = vmul.f32 %v3613, 1.442695
      %v3645 = vpow.pop %v3644
      %v3646 = vmul.f32 %v3615, %v3573
      %v3647 = vmul.f32 %v3617, %v3573
      %v3648 = vmul.f32 %v3619, %v3573
      %v3649 = vmul.f32 %v3621, %v3573
      %v3650 = vmul.f32 %v3623, %v3573
      %v3651 = vmul.f32 %v3625, %v3573
      %v3652 = vmul.f32 %v3627, %v3573
      %v3653 = vmul.f32 %v3629, %v3573
      %v3654 = vmul.f32 %v3631, %v3573
      %v3655 = vmul.f32 %v3633, %v3573
      %v3656 = vmul.f32 %v3635, %v3573
      %v3657 = vmul.f32 %v3637, %v3573
      %v3658 = vmul.f32 %v3639, %v3573
      %v3659 = vmul.f32 %v3641, %v3573
      %v3660 = vmul.f32 %v3643, %v3573
      %v3661 = vmul.f32 %v3645, %v3573
      %s3662 = scalar_lea.vmem [#allocation2], %s3580
      %v3663 = vld [vmem:[%s3662] sm:$0xff]
      %v3664 = vld [vmem:[%s3662 + $0x8] sm:$0xff]
      %v3665 = vld [vmem:[%s3662 + $0x10] sm:$0xff]
      %v3666 = vld [vmem:[%s3662 + $0x18] sm:$0xff]
      %v3667 = vld [vmem:[%s3662 + $0x20] sm:$0xff]
      %v3668 = vld [vmem:[%s3662 + $0x28] sm:$0xff]
      %v3669 = vld [vmem:[%s3662 + $0x30] sm:$0xff]
      %v3670 = vld [vmem:[%s3662 + $0x38] sm:$0xff]
      %v3671 = vld [vmem:[%s3662 + $0x40] sm:$0xff]
      %v3672 = vld [vmem:[%s3662 + $0x48] sm:$0xff]
      %v3673 = vld [vmem:[%s3662 + $0x50] sm:$0xff]
      %v3674 = vld [vmem:[%s3662 + $0x58] sm:$0xff]
      %v3675 = vld [vmem:[%s3662 + $0x60] sm:$0xff]
      %v3676 = vld [vmem:[%s3662 + $0x68] sm:$0xff]
      %v3677 = vld [vmem:[%s3662 + $0x70] sm:$0xff]
      %v3678 = vld [vmem:[%s3662 + $0x78] sm:$0xff]
      %3680 = vset.pattern.permute.xlu0 0
      %3681 = vperm.xlu0 %3680, %v3646
      %v3682 = vpop.permute.xlu0 %3681
      %3685 = vset.pattern.permute.xlu0 0
      %3686 = vperm.xlu0 %3685, %v3647
      %v3687 = vpop.permute.xlu0 %3686
      %3690 = vset.pattern.permute.xlu0 0
      %3691 = vperm.xlu0 %3690, %v3648
      %v3692 = vpop.permute.xlu0 %3691
      %3695 = vset.pattern.permute.xlu0 0
      %3696 = vperm.xlu0 %3695, %v3649
      %v3697 = vpop.permute.xlu0 %3696
      %3700 = vset.pattern.permute.xlu0 0
      %3701 = vperm.xlu0 %3700, %v3650
      %v3702 = vpop.permute.xlu0 %3701
      %3705 = vset.pattern.permute.xlu0 0
      %3706 = vperm.xlu0 %3705, %v3651
      %v3707 = vpop.permute.xlu0 %3706
      %3710 = vset.pattern.permute.xlu0 0
      %3711 = vperm.xlu0 %3710, %v3652
      %v3712 = vpop.permute.xlu0 %3711
      %3715 = vset.pattern.permute.xlu0 0
      %3716 = vperm.xlu0 %3715, %v3653
      %v3717 = vpop.permute.xlu0 %3716
      %3720 = vset.pattern.permute.xlu0 0
      %3721 = vperm.xlu0 %3720, %v3654
      %v3722 = vpop.permute.xlu0 %3721
      %3725 = vset.pattern.permute.xlu0 0
      %3726 = vperm.xlu0 %3725, %v3655
      %v3727 = vpop.permute.xlu0 %3726
      %3730 = vset.pattern.permute.xlu0 0
      %3731 = vperm.xlu0 %3730, %v3656
      %v3732 = vpop.permute.xlu0 %3731
      %3735 = vset.pattern.permute.xlu0 0
      %3736 = vperm.xlu0 %3735, %v3657
      %v3737 = vpop.permute.xlu0 %3736
      %3740 = vset.pattern.permute.xlu0 0
      %3741 = vperm.xlu0 %3740, %v3658
      %v3742 = vpop.permute.xlu0 %3741
      %3745 = vset.pattern.permute.xlu0 0
      %3746 = vperm.xlu0 %3745, %v3659
      %v3747 = vpop.permute.xlu0 %3746
      %3750 = vset.pattern.permute.xlu0 0
      %3751 = vperm.xlu0 %3750, %v3660
      %v3752 = vpop.permute.xlu0 %3751
      %3755 = vset.pattern.permute.xlu0 0
      %3756 = vperm.xlu0 %3755, %v3661
      %v3757 = vpop.permute.xlu0 %3756
      %v3759 = vmul.f32 %v3663, %v3682
      %v3760 = vmul.f32 %v3664, %v3687
      %v3761 = vmul.f32 %v3665, %v3692
      %v3762 = vmul.f32 %v3666, %v3697
      %v3763 = vmul.f32 %v3667, %v3702
      %v3764 = vmul.f32 %v3668, %v3707
      %v3765 = vmul.f32 %v3669, %v3712
      %v3766 = vmul.f32 %v3670, %v3717
      %v3767 = vmul.f32 %v3671, %v3722
      %v3768 = vmul.f32 %v3672, %v3727
      %v3769 = vmul.f32 %v3673, %v3732
      %v3770 = vmul.f32 %v3674, %v3737
      %v3771 = vmul.f32 %v3675, %v3742
      %v3772 = vmul.f32 %v3676, %v3747
      %v3773 = vmul.f32 %v3677, %v3752
      %v3774 = vmul.f32 %v3678, %v3757
      %v3775 = vpack.c.bf16 %v3759, %v3759
      %v3776 = vpack.c.bf16 %v3760, %v3760
      %v3777 = vpack.c.bf16 %v3761, %v3761
      %v3778 = vpack.c.bf16 %v3762, %v3762
      %v3779 = vpack.c.bf16 %v3763, %v3763
      %v3780 = vpack.c.bf16 %v3764, %v3764
      %v3781 = vpack.c.bf16 %v3765, %v3765
      %v3782 = vpack.c.bf16 %v3766, %v3766
      %v3783 = vpack.c.bf16 %v3767, %v3767
      %v3784 = vpack.c.bf16 %v3768, %v3768
      %v3785 = vpack.c.bf16 %v3769, %v3769
      %v3786 = vpack.c.bf16 %v3770, %v3770
      %v3787 = vpack.c.bf16 %v3771, %v3771
      %v3788 = vpack.c.bf16 %v3772, %v3772
      %v3789 = vpack.c.bf16 %v3773, %v3773
      %v3790 = vpack.c.bf16 %v3774, %v3774
      %s3791 = sshra.s32 %s3580, 3
      %s3792 = sand.u32 %s3580, 7
      %s3793 = smul.addr %s3791, 4
      %s3794 = scalar_lea.vmem [#allocation4], %s3793
      %3795 = vst [vmem:[%s3794] sm:$0xf] %v3775
      %3796 = vst [vmem:[%s3794 + $0x4] sm:$0xf] %v3776
      %3797 = vst [vmem:[%s3794 + $0x8] sm:$0xf] %v3777
      %3798 = vst [vmem:[%s3794 + $0xc] sm:$0xf] %v3778
      %3799 = vst [vmem:[%s3794 + $0x10] sm:$0xf] %v3779
      %3800 = vst [vmem:[%s3794 + $0x14] sm:$0xf] %v3780
      %3801 = vst [vmem:[%s3794 + $0x18] sm:$0xf] %v3781
      %3802 = vst [vmem:[%s3794 + $0x1c] sm:$0xf] %v3782
      %3803 = vst [vmem:[%s3794 + $0x20] sm:$0xf] %v3783
      %3804 = vst [vmem:[%s3794 + $0x24] sm:$0xf] %v3784
      %3805 = vst [vmem:[%s3794 + $0x28] sm:$0xf] %v3785
      %3806 = vst [vmem:[%s3794 + $0x2c] sm:$0xf] %v3786
      %3807 = vst [vmem:[%s3794 + $0x30] sm:$0xf] %v3787
      %3808 = vst [vmem:[%s3794 + $0x34] sm:$0xf] %v3788
      %3809 = vst [vmem:[%s3794 + $0x38] sm:$0xf] %v3789
      %3810 = vst [vmem:[%s3794 + $0x3c] sm:$0xf] %v3790
    $region256: #{tpu_custom_call.1} parent=1 // loop_footer
      %s3579 = sadd.s32 1, %s3575
    $region257: #{tpu_custom_call.1} parent=1 // loop_footer_branch
      %3574 = sbr.rel target = $region253
    $region258: #{tpu_custom_call.1} parent=1 // loop_exit
      _
    %v3811 = vld [vmem:[%s4] sm:$0xf]
    %v3812 = vld [vmem:[#allocation4] sm:$0xf]
    %v3813 = vld [vmem:[#allocation4 + $0x4] sm:$0xf]
    %v3814 = vld [vmem:[#allocation4 + $0x8] sm:$0xf]
    %v3815 = vld [vmem:[#allocation4 + $0xc] sm:$0xf]
    %v3816 = vld [vmem:[#allocation4 + $0x10] sm:$0xf]
    %v3817 = vld [vmem:[#allocation4 + $0x14] sm:$0xf]
    %v3818 = vld [vmem:[#allocation4 + $0x18] sm:$0xf]
    %v3819 = vld [vmem:[#allocation4 + $0x1c] sm:$0xf]
    %v3820 = vld [vmem:[#allocation4 + $0x20] sm:$0xf]
    %v3821 = vld [vmem:[#allocation4 + $0x24] sm:$0xf]
    %v3822 = vld [vmem:[#allocation4 + $0x28] sm:$0xf]
    %v3823 = vld [vmem:[#allocation4 + $0x2c] sm:$0xf]
    %v3824 = vld [vmem:[#allocation4 + $0x30] sm:$0xf]
    %v3825 = vld [vmem:[#allocation4 + $0x34] sm:$0xf]
    %v3826 = vld [vmem:[#allocation4 + $0x38] sm:$0xf]
    %v3827 = vld [vmem:[#allocation4 + $0x3c] sm:$0xf]
    %v3828 = vld [vmem:[#allocation4 + $0x40] sm:$0xf]
    %v3829 = vld [vmem:[#allocation4 + $0x44] sm:$0xf]
    %v3830 = vld [vmem:[#allocation4 + $0x48] sm:$0xf]
    %v3831 = vld [vmem:[#allocation4 + $0x4c] sm:$0xf]
    %v3832 = vld [vmem:[#allocation4 + $0x50] sm:$0xf]
    %v3833 = vld [vmem:[#allocation4 + $0x54] sm:$0xf]
    %v3834 = vld [vmem:[#allocation4 + $0x58] sm:$0xf]
    %v3835 = vld [vmem:[#allocation4 + $0x5c] sm:$0xf]
    %v3836 = vld [vmem:[#allocation4 + $0x60] sm:$0xf]
    %v3837 = vld [vmem:[#allocation4 + $0x64] sm:$0xf]
    %v3838 = vld [vmem:[#allocation4 + $0x68] sm:$0xf]
    %v3839 = vld [vmem:[#allocation4 + $0x6c] sm:$0xf]
    %v3840 = vld [vmem:[#allocation4 + $0x70] sm:$0xf]
    %v3841 = vld [vmem:[#allocation4 + $0x74] sm:$0xf]
    %v3842 = vld [vmem:[#allocation4 + $0x78] sm:$0xf]
    %v3843 = vld [vmem:[#allocation4 + $0x7c] sm:$0xf]
    %3845 = vst [vmem:[#allocation1] ss:$4 sm:$0xff] %v3811
    %v3846 = vld.sshfl [vmem:[#allocation1] sm:$0xff pattern:$0x73625140]
    %v3847 = vld.sshfl [vmem:[#allocation1 + $0x8] sm:$0xff pattern:$0x73625140]
    %v3882 = vunpack.c.l.b16 %v3812
    %v3883 = vunpack.c.l.b16 %v3813
    %v3884 = vunpack.c.l.b16 %v3814
    %v3885 = vunpack.c.l.b16 %v3815
    %v3886 = vunpack.c.l.b16 %v3816
    %v3887 = vunpack.c.l.b16 %v3817
    %v3888 = vunpack.c.l.b16 %v3818
    %v3889 = vunpack.c.l.b16 %v3819
    %v3890 = vunpack.c.l.b16 %v3820
    %v3891 = vunpack.c.l.b16 %v3821
    %v3892 = vunpack.c.l.b16 %v3822
    %v3893 = vunpack.c.l.b16 %v3823
    %v3894 = vunpack.c.l.b16 %v3824
    %v3895 = vunpack.c.l.b16 %v3825
    %v3896 = vunpack.c.l.b16 %v3826
    %v3897 = vunpack.c.l.b16 %v3827
    %v3898 = vunpack.c.l.b16 %v3828
    %v3899 = vunpack.c.l.b16 %v3829
    %v3900 = vunpack.c.l.b16 %v3830
    %v3901 = vunpack.c.l.b16 %v3831
    %v3902 = vunpack.c.l.b16 %v3832
    %v3903 = vunpack.c.l.b16 %v3833
    %v3904 = vunpack.c.l.b16 %v3834
    %v3905 = vunpack.c.l.b16 %v3835
    %v3906 = vunpack.c.l.b16 %v3836
    %v3907 = vunpack.c.l.b16 %v3837
    %v3908 = vunpack.c.l.b16 %v3838
    %v3909 = vunpack.c.l.b16 %v3839
    %v3910 = vunpack.c.l.b16 %v3840
    %v3911 = vunpack.c.l.b16 %v3841
    %v3912 = vunpack.c.l.b16 %v3842
    %v3913 = vunpack.c.l.b16 %v3843
    %v3914 = vpack.c.b16 %v3883, %v3882
    %v3915 = vpack.c.b16 %v3885, %v3884
    %v3916 = vpack.c.b16 %v3887, %v3886
    %v3917 = vpack.c.b16 %v3889, %v3888
    %v3918 = vpack.c.b16 %v3891, %v3890
    %v3919 = vpack.c.b16 %v3893, %v3892
    %v3920 = vpack.c.b16 %v3895, %v3894
    %v3921 = vpack.c.b16 %v3897, %v3896
    %v3922 = vpack.c.b16 %v3899, %v3898
    %v3923 = vpack.c.b16 %v3901, %v3900
    %v3924 = vpack.c.b16 %v3903, %v3902
    %v3925 = vpack.c.b16 %v3905, %v3904
    %v3926 = vpack.c.b16 %v3907, %v3906
    %v3927 = vpack.c.b16 %v3909, %v3908
    %v3928 = vpack.c.b16 %v3911, %v3910
    %v3929 = vpack.c.b16 %v3913, %v3912
    %3946 = vmatpush.bf16.msra.mxu0 %v3921
    %3947 = vmatpush.bf16.msra.mxu0 %v3920
    %3948 = vmatpush.bf16.msra.mxu0 %v3919
    %3949 = vmatpush.bf16.msra.mxu0 %v3918
    %3950 = vmatpush.bf16.msra.mxu0 %v3917
    %3951 = vmatpush.bf16.msra.mxu0 %v3916
    %3952 = vmatpush.bf16.msra.mxu0 %v3915
    %3953 = vmatpush.bf16.msra.mxu0 %v3914
    %3954 = vmatmul.bf16.gmra.mxu0 %v3846
    %v3955 = vpop.f32.mrf.mxu0
    %v3956 = vadd.f32 0.0, %v3955
    %v3957 = vpop.f32.mrf.mxu0
    %3958 = vdwg.mxu0
    %3959 = vmatpush.bf16.msra.mxu0 %v3929
    %3960 = vmatpush.bf16.msra.mxu0 %v3928
    %3961 = vmatpush.bf16.msra.mxu0 %v3927
    %3962 = vmatpush.bf16.msra.mxu0 %v3926
    %3963 = vmatpush.bf16.msra.mxu0 %v3925
    %3964 = vmatpush.bf16.msra.mxu0 %v3924
    %3965 = vmatpush.bf16.msra.mxu0 %v3923
    %3966 = vmatpush.bf16.msra.mxu0 %v3922
    %3967 = vmatmul.bf16.gmra.mxu0 %v3847
    %v3968 = vpop.f32.mrf.mxu0
    %v3969 = vadd.f32 %v3956, %v3968
    %v3970 = vpop.f32.mrf.mxu0
    %3971 = vdwg.mxu0
    %v3972 = vld [vmem:[%s5] sm:$0xf]
    %3974 = vset.pattern.permute.xlu0 0
    %3975 = vperm.xlu0 %3974, %v3972
    %v3976 = vpop.permute.xlu0 %3975
    %v3978 = vmul.f32 %v3969, %v3976
    %v3979 = vld [vmem:[%s22] sm:$0xff]
    %v3980 = vld [vmem:[%s22 + $0x8] sm:$0xff]
    %v3981 = vld [vmem:[%s22 + $0x10] sm:$0xff]
    %v3982 = vld [vmem:[%s22 + $0x18] sm:$0xff]
    %v3983 = vld [vmem:[%s22 + $0x20] sm:$0xff]
    %v3984 = vld [vmem:[%s22 + $0x28] sm:$0xff]
    %v3985 = vld [vmem:[%s22 + $0x30] sm:$0xff]
    %v3986 = vld [vmem:[%s22 + $0x38] sm:$0xff]
    %v3987 = vld [vmem:[%s22 + $0x40] sm:$0xff]
    %v3988 = vld [vmem:[%s22 + $0x48] sm:$0xff]
    %v3989 = vld [vmem:[%s22 + $0x50] sm:$0xff]
    %v3990 = vld [vmem:[%s22 + $0x58] sm:$0xff]
    %v3991 = vld [vmem:[%s22 + $0x60] sm:$0xff]
    %v3992 = vld [vmem:[%s22 + $0x68] sm:$0xff]
    %v3993 = vld [vmem:[%s22 + $0x70] sm:$0xff]
    %v3994 = vld [vmem:[%s22 + $0x78] sm:$0xff]
    %v3995 = vld [vmem:[%s23] sm:$0x1]
    %v3997 = vperm.slane %v3995, 0
    %3999 = vmatpush.msra.mxu0 %v3994
    %4000 = vmatpush.msra.mxu0 %v3993
    %4001 = vmatpush.msra.mxu0 %v3992
    %4002 = vmatpush.msra.mxu0 %v3991
    %4003 = vmatpush.msra.mxu0 %v3990
    %4004 = vmatpush.msra.mxu0 %v3989
    %4005 = vmatpush.msra.mxu0 %v3988
    %4006 = vmatpush.msra.mxu0 %v3987
    %4007 = vmatpush.msra.mxu0 %v3986
    %4008 = vmatpush.msra.mxu0 %v3985
    %4009 = vmatpush.msra.mxu0 %v3984
    %4010 = vmatpush.msra.mxu0 %v3983
    %4011 = vmatpush.msra.mxu0 %v3982
    %4012 = vmatpush.msra.mxu0 %v3981
    %4013 = vmatpush.msra.mxu0 %v3980
    %4014 = vmatpush.msra.mxu0 %v3979
    %4015 = vmatmul.f32.gmra.mxu0 %v3978
    %v4016 = vpop.f32.mrf.mxu0
    %v4017 = vadd.f32 %v3997, %v4016
    %4018 = vdwg.mxu0
    %vm4019 = vcmask 11264
    %4020 = vst.msk [vmem:[%s24] sm:$0xf] %vm4019, %v4017
    // Predicated region
    $region259: #{tpu_custom_call.1} parent=1 // pred_check
      _
    $region260: #{tpu_custom_call.1} parent=1 // pred_check_branch
      %4022 = sbr.rel (0) target = $region262
    $region261: #{tpu_custom_call.1} parent=1 // pred_region
      _
    $region262: #{tpu_custom_call.1} parent=1 // pred_fallthru
      _
    // Predicated region
    $region263: #{tpu_custom_call.1} parent=1 // pred_check
      _
    $region264: #{tpu_custom_call.1} parent=1 // pred_check_branch
      %4024 = sbr.rel (0) target = $region266
    $region265: #{tpu_custom_call.1} parent=1 // pred_region
      _
    $region266: #{tpu_custom_call.1} parent=1 // pred_fallthru
      _
    %4025 = vsyncpa [#allocation10], 1
  %4026 = vsyncmov [#allocation7]
  %s4027 = vpop.sfrf %4026
  %p4028 = scmp.eq.s32.totalorder %s4027, 0
  %p4029 = pneg %p4028
  %4031 = shalt.err (%p4029)
  %s4032 = scalar_lea.sflag [#allocation7], 1
  %4033 = vsyncmov %s4032
  %s4034 = vpop.sfrf %4033
  %p4035 = scmp.eq.s32.totalorder %s4034, 0
  %p4036 = pneg %p4035
  %4038 = shalt.err (%p4036)

</llo_original>
